<compile_context>
chip_gen: v7x
topology: tpu7x:2x2x1
jax: 0.10.0
libtpu: 0.0.40
codegen_flags: <defaults>
</compile_context>

<pallas_src>
import math

import numpy as np
import jax
import jax.numpy as jnp
from jax import lax
from jax.experimental import pallas as pl
from jax.experimental.pallas import tpu as pltpu

BN_EPS = 1e-5
_INV_SQRT2 = 1.0 / math.sqrt(2.0)

LANE = 128              # lane padding for K and Co (set 256 on v6e/v7x at real widths)
TILE_M_MAX = 1024       # rows (=N*Ho*Wo) per grid step; ~0.5 MiB/operand at Kp=128 bf16
MXU_INPUT_DTYPE = jnp.bfloat16   # MXU operand dtype; accumulation stays f32


def _round_up(x, m):
    return (x + m - 1) // m * m


def _gelu_exact(z):
    return 0.5 * z * (1.0 + lax.erf(z * _INV_SQRT2))


# ---------------------------------------------------------------------------
# Pass 1 kernel: per-channel sum / sum-of-squares of (patches_tile @ W).
# Outputs are per-core accumulators (constant block index along the reduction
# axis => VMEM-resident; initialized at the first reduction step).
# ---------------------------------------------------------------------------
def _stats_kernel(p_ref, w_ref, sum_ref, sq_ref):
    @pl.when(pl.program_id(1) == 0)
    def _():
        sum_ref[...] = jnp.zeros_like(sum_ref)
        sq_ref[...] = jnp.zeros_like(sq_ref)

    y = jnp.dot(p_ref[...], w_ref[...], preferred_element_type=jnp.float32)
    # Zero-padded remainder rows give y == 0 (no conv bias), so they contribute
    # exactly 0 to both sums; dividing by the true M later is exact.
    sum_ref[...] += jnp.sum(y, axis=0, keepdims=True).reshape(sum_ref.shape)
    sq_ref[...] += jnp.sum(y * y, axis=0, keepdims=True).reshape(sq_ref.shape)


# ---------------------------------------------------------------------------
# Pass 2 kernel: recompute the matmul, apply folded BN affine, exact GELU.
# Fully independent tiles => "parallel" (megacore-shardable).
# ---------------------------------------------------------------------------
def _matmul_bn_gelu_kernel(p_ref, w_ref, scale_ref, shift_ref, o_ref):
    y = jnp.dot(p_ref[...], w_ref[...], preferred_element_type=jnp.float32)
    z = y * scale_ref[...] + shift_ref[...]
    o_ref[...] = _gelu_exact(z).astype(o_ref.dtype)


# ---------------------------------------------------------------------------
# Wrapper: two-phase conv (im2col GEMM) + batch-stat BN + GELU
# ---------------------------------------------------------------------------
def conv_bn_gelu(patches, w_mat, gamma, beta, out_dtype=jnp.float32):
    M, K = patches.shape
    Co = w_mat.shape[1]
    Kp = _round_up(K, LANE)
    Cop = _round_up(Co, LANE)

    tile_m = min(TILE_M_MAX, _round_up(M, 16))
    Mp = _round_up(M, tile_m)
    n_tiles = Mp // tile_m

    # v7x megacore: give each TensorCore its own private partial-stats block
    # when the tile count splits evenly; single-core chips just loop over it.
    split = 2 if (n_tiles % 2 == 0 and n_tiles >= 2) else 1
    tiles_per_core = n_tiles // split

    itm = jnp.dtype(MXU_INPUT_DTYPE).itemsize
    out_itm = jnp.dtype(out_dtype).itemsize

    # patches is expected to already be in MXU_INPUT_DTYPE (cast once upstream
    # on the small NHWC tensor); astype here is a no-op in that case.
    patches_p = jnp.pad(patches.astype(MXU_INPUT_DTYPE), ((0, Mp - M), (0, Kp - K)))
    w_p = jnp.pad(w_mat, ((0, Kp - K), (0, Cop - Co))).astype(MXU_INPUT_DTYPE)
    gamma_p = jnp.pad(gamma, (0, Cop - Co)).reshape(1, Cop).astype(jnp.float32)
    beta_p = jnp.pad(beta, (0, Cop - Co)).reshape(1, Cop).astype(jnp.float32)

    # ---- pass 1: per-core per-channel sum / sum-of-squares (no y writeback) ----
    ch_sum, ch_sq = pl.pallas_call(
        _stats_kernel,
        out_shape=(jax.ShapeDtypeStruct((split, 1, Cop), jnp.float32),
                   jax.ShapeDtypeStruct((split, 1, Cop), jnp.float32)),
        grid_spec=pltpu.PrefetchScalarGridSpec(
            num_scalar_prefetch=0,
            grid=(split, tiles_per_core),
            in_specs=[
                pl.BlockSpec((tile_m, Kp),
                             lambda c, i: (c * tiles_per_core + i, 0)),
                # constant index_map => weights stay VMEM-resident (no re-DMA)
                pl.BlockSpec((Kp, Cop), lambda c, i: (0, 0)),
            ],
            out_specs=[
                pl.BlockSpec((1, 1, Cop), lambda c, i: (c, 0, 0)),
                pl.BlockSpec((1, 1, Cop), lambda c, i: (c, 0, 0)),
            ]),
        compiler_params=pltpu.CompilerParams(
            dimension_semantics=("parallel", "arbitrary")),
        cost_estimate=pl.CostEstimate(
            flops=2 * Mp * Kp * Cop + 4 * Mp * Cop,
            transcendentals=0,
            bytes_accessed=itm * (Mp * Kp + Kp * Cop) + 4 * 2 * split * Cop),
    )(patches_p, w_p)

    # ---- tiny XLA glue: combine per-core partials, fold BN into scale/shift ----
    inv_m = 1.0 / float(M)
    mean = jnp.sum(ch_sum, axis=0).reshape(1, Cop) * inv_m
    # TODO(synk): E[y^2] - E[y]^2 cancels badly if |mean| >> std; fine at these
    # activation scales, switch to a shifted variance for general inputs.
    var = jnp.sum(ch_sq, axis=0).reshape(1, Cop) * inv_m - mean * mean
    scale = gamma_p * lax.rsqrt(var + BN_EPS)     # zero for padded channels (gamma=0)
    shift = beta_p - mean * scale

    # ---- pass 2: recompute matmul + fused BN affine + GELU, megacore-parallel ----
    out = pl.pallas_call(
        _matmul_bn_gelu_kernel,
        out_shape=jax.ShapeDtypeStruct((Mp, Cop), out_dtype),
        grid_spec=pltpu.PrefetchScalarGridSpec(
            num_scalar_prefetch=0,
            grid=(n_tiles,),
            in_specs=[
                pl.BlockSpec((tile_m, Kp), lambda i: (i, 0)),
                pl.BlockSpec((Kp, Cop), lambda i: (0, 0)),
                pl.BlockSpec((1, Cop), lambda i: (0, 0)),
                pl.BlockSpec((1, Cop), lambda i: (0, 0)),
            ],
            out_specs=pl.BlockSpec((tile_m, Cop), lambda i: (i, 0))),
        compiler_params=pltpu.CompilerParams(
            dimension_semantics=("parallel",)),
        cost_estimate=pl.CostEstimate(
            flops=2 * Mp * Kp * Cop + 8 * Mp * Cop,
            transcendentals=Mp * Cop,
            bytes_accessed=itm * (Mp * Kp + Kp * Cop) + 4 * 4 * Cop
                           + out_itm * Mp * Cop),
    )(patches_p, w_p, scale, shift)

    return out[:M, :Co]


# ---------------------------------------------------------------------------
# JAX glue: im2col + weight re-layout (layout plumbing, not the hot path)
# ---------------------------------------------------------------------------
def im2col(x_nhwc, ksize=3, stride=1, pad=1):
    N, H, W, C = x_nhwc.shape
    xp = jnp.pad(x_nhwc, ((0, 0), (pad, pad), (pad, pad), (0, 0)))
    Ho = (H + 2 * pad - ksize) // stride + 1
    Wo = (W + 2 * pad - ksize) // stride + 1
    cols = []
    for kh in range(ksize):
        for kw in range(ksize):
            sl = xp[:, kh:kh + (Ho - 1) * stride + 1:stride,
                      kw:kw + (Wo - 1) * stride + 1:stride, :]
            cols.append(sl)
    patches = jnp.concatenate(cols, axis=-1)          # (N, Ho, Wo, 9*C)
    return patches.reshape(N * Ho * Wo, ksize * ksize * C), (N, Ho, Wo)


def conv_weight_to_mat(w_oihw):
    # PyTorch conv weight (Co, Ci, KH, KW) -> (KH*KW*Ci, Co), matching im2col
    # patch ordering (kh outer, kw next, ci inner).
    Co, Ci, KH, KW = w_oihw.shape
    return jnp.transpose(w_oihw, (2, 3, 1, 0)).reshape(KH * KW * Ci, Co)


def conv_layer(x_nhwc, p, out_dtype):
    patches, (N, Ho, Wo) = im2col(x_nhwc, ksize=3, stride=1, pad=1)
    # NOTE: p["b"] (conv bias) is intentionally not passed — it is cancelled by
    # training-mode BatchNorm's mean subtraction, so the output is unchanged.
    out2d = conv_bn_gelu(patches, conv_weight_to_mat(p["w"]), p["gamma"], p["beta"],
                         out_dtype=out_dtype)
    Co = p["w"].shape[0]
    return out2d.reshape(N, Ho, Wo, Co)


# ---------------------------------------------------------------------------
# ConvBlock forward (NCHW in / NCHW out, like the PyTorch module)
# ---------------------------------------------------------------------------
def convblock_forward(x_nchw, params):
    x = jnp.transpose(x_nchw, (0, 2, 3, 1)).astype(MXU_INPUT_DTYPE)   # NCHW -> NHWC
    x = conv_layer(x, params["conv1"], out_dtype=MXU_INPUT_DTYPE)     # bf16 inter-layer
    x = conv_layer(x, params["conv2"], out_dtype=jnp.float32)
    return jnp.transpose(x, (0, 3, 1, 2))                             # NHWC -> NCHW


# ---------------------------------------------------------------------------
# Parameter init (deterministic, synthetic)
# ---------------------------------------------------------------------------
def init_conv_params(key, cin, cout):
    kw, kb, kg, kbeta = jax.random.split(key, 4)
    return {
        "w": jax.random.normal(kw, (cout, cin, 3, 3), jnp.float32) * 0.1,
        "b": jax.random.normal(kb, (cout,), jnp.float32) * 0.05,
        "gamma": 1.0 + 0.1 * jax.random.normal(kg, (cout,), jnp.float32),
        "beta": 0.1 * jax.random.normal(kbeta, (cout,), jnp.float32),
    }


# ---------------------------------------------------------------------------
# Pure-JAX f32 reference (same semantics, with the conv bias) for a sanity check
# ---------------------------------------------------------------------------
def _ref_conv_bn_gelu(x_nchw, p):
    y = lax.conv_general_dilated(
        x_nchw, p["w"], window_strides=(1, 1), padding=((1, 1), (1, 1)),
        dimension_numbers=("NCHW", "OIHW", "NCHW"))
    y = y + p["b"][None, :, None, None]
    mean = jnp.mean(y, axis=(0, 2, 3), keepdims=True)
    var = jnp.mean((y - mean) ** 2, axis=(0, 2, 3), keepdims=True)
    yhat = (y - mean) * lax.rsqrt(var + BN_EPS)
    z = p["gamma"][None, :, None, None] * yhat + p["beta"][None, :, None, None]
    return _gelu_exact(z)


def _ref_forward(x_nchw, params):
    x = _ref_conv_bn_gelu(x_nchw, params["conv1"])
    return _ref_conv_bn_gelu(x, params["conv2"])


if __name__ == "__main__":
    key = jax.random.PRNGKey(0)
    k_x, k_1, k_2 = jax.random.split(key, 3)

    N, C_IN, H, W = 2, 4, 16, 16
    C_OUT = 8

    x = jax.random.normal(k_x, (N, C_IN, H, W), jnp.float32)
    params = {
        "conv1": init_conv_params(k_1, C_IN, C_OUT),
        "conv2": init_conv_params(k_2, C_OUT, C_OUT),
    }

    out = jax.jit(convblock_forward)(x, params)
    out = jax.block_until_ready(out)
    assert out.shape == (N, C_OUT, H, W), out.shape

    ref = jax.block_until_ready(_ref_forward(x, params))
    # bf16 MXU operands + bf16 inter-layer activation vs. exact f32 reference:
    # tolerance loosened accordingly (values are O(1) after BN+GELU).
    np.testing.assert_allclose(np.asarray(out), np.asarray(ref),
                               rtol=5e-2, atol=5e-2)

    print("KERNEL_OK")
</pallas_src>

<mosaic_0001>
module attributes {stable_mosaic.version = 11 : i64} {
  func.func @_stats_kernel(%arg0: i32, %arg1: i32, %arg2: memref<512x128xbf16, #tpu.memory_space<vmem>>, %arg3: memref<128x128xbf16, #tpu.memory_space<vmem>>, %arg4: memref<1x1x128xf32, #tpu.memory_space<vmem>>, %arg5: memref<1x1x128xf32, #tpu.memory_space<vmem>>) attributes {dimension_semantics = [#tpu.dimension_semantics<parallel>, #tpu.dimension_semantics<arbitrary>], iteration_bounds = array<i64: 1, 1>, scalar_prefetch = 0 : i64, scratch_operands = 0 : i64, tpu.core_type = #tpu.core_type<tc>, window_params = [{transform_indices = @transform_0, window_bounds = array<i64: 512, 128>}, {pipeline_mode = #tpu.pipeline_mode<synchronous>, transform_indices = @transform_1, window_bounds = array<i64: 128, 128>}, {transform_indices = @transform_2, window_bounds = array<i64: 1, 1, 128>}, {transform_indices = @transform_3, window_bounds = array<i64: 1, 1, 128>}]} {
    %c0_i32 = arith.constant 0 : i32
    %0 = arith.cmpi eq, %arg1, %c0_i32 : i32
    %1 = arith.extui %0 : i1 to i32
    %c0_i32_0 = arith.constant 0 : i32
    %2 = arith.cmpi ne, %1, %c0_i32_0 : i32
    scf.if %2 {
      %cst_18 = arith.constant 0.000000e+00 : f32
      %19 = vector.broadcast %cst_18 : f32 to vector<1x1x128xf32>
      %c0_19 = arith.constant 0 : index
      %c0_20 = arith.constant 0 : index
      %c0_21 = arith.constant 0 : index
      %20 = vector.load %arg4[%c0_19, %c0_20, %c0_21] : memref<1x1x128xf32, #tpu.memory_space<vmem>>, vector<1x1x128xf32>
      tpu.vector_store %arg4[%c0_19, %c0_20, %c0_21], %19 {strides = array<i32>} : memref<1x1x128xf32, #tpu.memory_space<vmem>>, vector<1x1x128xf32>,
      %cst_22 = arith.constant 0.000000e+00 : f32
      %21 = vector.broadcast %cst_22 : f32 to vector<1x1x128xf32>
      %c0_23 = arith.constant 0 : index
      %c0_24 = arith.constant 0 : index
      %c0_25 = arith.constant 0 : index
      %22 = vector.load %arg5[%c0_23, %c0_24, %c0_25] : memref<1x1x128xf32, #tpu.memory_space<vmem>>, vector<1x1x128xf32>
      tpu.vector_store %arg5[%c0_23, %c0_24, %c0_25], %21 {strides = array<i32>} : memref<1x1x128xf32, #tpu.memory_space<vmem>>, vector<1x1x128xf32>,
    } else {
    }
    %c0 = arith.constant 0 : index
    %c0_1 = arith.constant 0 : index
    %3 = vector.load %arg2[%c0, %c0_1] : memref<512x128xbf16, #tpu.memory_space<vmem>>, vector<512x128xbf16>
    %c0_2 = arith.constant 0 : index
    %c0_3 = arith.constant 0 : index
    %4 = vector.load %arg3[%c0_2, %c0_3] : memref<128x128xbf16, #tpu.memory_space<vmem>>, vector<128x128xbf16>
    %cst = arith.constant dense<0.000000e+00> : vector<512x128xf32>
    %5 = tpu.matmul %3, %4, %cst {dimension_numbers = #tpu.dot_dimension_numbers<[1], [0], [0], [1], [0, 0, 1, 1], [], []>} : vector<512x128xbf16>, vector<128x128xbf16>, vector<512x128xf32> -> vector<512x128xf32>
    %c0_4 = arith.constant 0 : index
    %c0_5 = arith.constant 0 : index
    %c0_6 = arith.constant 0 : index
    %6 = vector.load %arg4[%c0_4, %c0_5, %c0_6] : memref<1x1x128xf32, #tpu.memory_space<vmem>>, vector<1x1x128xf32>
    %cst_7 = arith.constant dense<0.000000e+00> : vector<128xf32>
    %7 = vector.multi_reduction <add>, %5, %cst_7 [0] : vector<512x128xf32> to vector<128xf32>
    %8 = vector.shape_cast %7 : vector<128xf32> to vector<1x128xf32>
    %9 = vector.shape_cast %8 : vector<1x128xf32> to vector<1x1x128xf32>
    %10 = arith.addf %6, %9 : vector<1x1x128xf32>
    %c0_8 = arith.constant 0 : index
    %c0_9 = arith.constant 0 : index
    %c0_10 = arith.constant 0 : index
    %11 = vector.load %arg4[%c0_8, %c0_9, %c0_10] : memref<1x1x128xf32, #tpu.memory_space<vmem>>, vector<1x1x128xf32>
    tpu.vector_store %arg4[%c0_8, %c0_9, %c0_10], %10 {strides = array<i32>} : memref<1x1x128xf32, #tpu.memory_space<vmem>>, vector<1x1x128xf32>,
    %c0_11 = arith.constant 0 : index
    %c0_12 = arith.constant 0 : index
    %c0_13 = arith.constant 0 : index
    %12 = vector.load %arg5[%c0_11, %c0_12, %c0_13] : memref<1x1x128xf32, #tpu.memory_space<vmem>>, vector<1x1x128xf32>
    %13 = arith.mulf %5, %5 : vector<512x128xf32>
    %cst_14 = arith.constant dense<0.000000e+00> : vector<128xf32>
    %14 = vector.multi_reduction <add>, %13, %cst_14 [0] : vector<512x128xf32> to vector<128xf32>
    %15 = vector.shape_cast %14 : vector<128xf32> to vector<1x128xf32>
    %16 = vector.shape_cast %15 : vector<1x128xf32> to vector<1x1x128xf32>
    %17 = arith.addf %12, %16 : vector<1x1x128xf32>
    %c0_15 = arith.constant 0 : index
    %c0_16 = arith.constant 0 : index
    %c0_17 = arith.constant 0 : index
    %18 = vector.load %arg5[%c0_15, %c0_16, %c0_17] : memref<1x1x128xf32, #tpu.memory_space<vmem>>, vector<1x1x128xf32>
    tpu.vector_store %arg5[%c0_15, %c0_16, %c0_17], %17 {strides = array<i32>} : memref<1x1x128xf32, #tpu.memory_space<vmem>>, vector<1x1x128xf32>,
    return
  }
  func.func @transform_0(%arg0: i32, %arg1: i32) -> (i32, i32) {
    %c1_i32 = arith.constant 1 : i32
    %0 = arith.muli %arg0, %c1_i32 : i32
    %1 = arith.addi %0, %arg1 : i32
    %c0_i32 = arith.constant 0 : i32
    %c0_i32_0 = arith.constant 0 : i32
    return %1, %c0_i32 : i32, i32
  }
  func.func @transform_1(%arg0: i32, %arg1: i32) -> (i32, i32) {
    %c0_i32 = arith.constant 0 : i32
    %c0_i32_0 = arith.constant 0 : i32
    %c0_i32_1 = arith.constant 0 : i32
    return %c0_i32, %c0_i32_0 : i32, i32
  }
  func.func @transform_2(%arg0: i32, %arg1: i32) -> (i32, i32, i32) {
    %c0_i32 = arith.constant 0 : i32
    %c0_i32_0 = arith.constant 0 : i32
    %c0_i32_1 = arith.constant 0 : i32
    return %arg0, %c0_i32, %c0_i32_0 : i32, i32, i32
  }
  func.func @transform_3(%arg0: i32, %arg1: i32) -> (i32, i32, i32) {
    %c0_i32 = arith.constant 0 : i32
    %c0_i32_0 = arith.constant 0 : i32
    %c0_i32_1 = arith.constant 0 : i32
    return %arg0, %c0_i32, %c0_i32_0 : i32, i32, i32
  }
}

module attributes {stable_mosaic.version = 11 : i64} {
  func.func @_matmul_bn_gelu_kernel(%arg0: i32, %arg1: memref<512x128xbf16, #tpu.memory_space<vmem>>, %arg2: memref<128x128xbf16, #tpu.memory_space<vmem>>, %arg3: memref<1x128xf32, #tpu.memory_space<vmem>>, %arg4: memref<1x128xf32, #tpu.memory_space<vmem>>, %arg5: memref<512x128xbf16, #tpu.memory_space<vmem>>) attributes {dimension_semantics = [#tpu.dimension_semantics<parallel>], iteration_bounds = array<i64: 1>, scalar_prefetch = 0 : i64, scratch_operands = 0 : i64, tpu.core_type = #tpu.core_type<tc>, window_params = [{transform_indices = @transform_0, window_bounds = array<i64: 512, 128>}, {pipeline_mode = #tpu.pipeline_mode<synchronous>, transform_indices = @transform_1, window_bounds = array<i64: 128, 128>}, {pipeline_mode = #tpu.pipeline_mode<synchronous>, transform_indices = @transform_2, window_bounds = array<i64: 1, 128>}, {pipeline_mode = #tpu.pipeline_mode<synchronous>, transform_indices = @transform_3, window_bounds = array<i64: 1, 128>}, {transform_indices = @transform_4, window_bounds = array<i64: 512, 128>}]} {
    %c0 = arith.constant 0 : index
    %c0_0 = arith.constant 0 : index
    %0 = vector.load %arg1[%c0, %c0_0] : memref<512x128xbf16, #tpu.memory_space<vmem>>, vector<512x128xbf16>
    %c0_1 = arith.constant 0 : index
    %c0_2 = arith.constant 0 : index
    %1 = vector.load %arg2[%c0_1, %c0_2] : memref<128x128xbf16, #tpu.memory_space<vmem>>, vector<128x128xbf16>
    %cst = arith.constant dense<0.000000e+00> : vector<512x128xf32>
    %2 = tpu.matmul %0, %1, %cst {dimension_numbers = #tpu.dot_dimension_numbers<[1], [0], [0], [1], [0, 0, 1, 1], [], []>} : vector<512x128xbf16>, vector<128x128xbf16>, vector<512x128xf32> -> vector<512x128xf32>
    %c0_3 = arith.constant 0 : index
    %c0_4 = arith.constant 0 : index
    %3 = vector.load %arg3[%c0_3, %c0_4] : memref<1x128xf32, #tpu.memory_space<vmem>>, vector<1x128xf32>
    %4 = vector.broadcast %3 : vector<1x128xf32> to vector<512x128xf32>
    %5 = arith.mulf %2, %4 : vector<512x128xf32>
    %c0_5 = arith.constant 0 : index
    %c0_6 = arith.constant 0 : index
    %6 = vector.load %arg4[%c0_5, %c0_6] : memref<1x128xf32, #tpu.memory_space<vmem>>, vector<1x128xf32>
    %7 = vector.broadcast %6 : vector<1x128xf32> to vector<512x128xf32>
    %8 = arith.addf %5, %7 : vector<512x128xf32>
    %cst_7 = arith.constant 5.000000e-01 : f32
    %9 = vector.broadcast %cst_7 : f32 to vector<512x128xf32>
    %10 = arith.mulf %9, %8 : vector<512x128xf32>
    %cst_8 = arith.constant 0.707106769 : f32
    %11 = vector.broadcast %cst_8 : f32 to vector<512x128xf32>
    %12 = arith.mulf %8, %11 : vector<512x128xf32>
    %13 = math.erf %12 : vector<512x128xf32>
    %cst_9 = arith.constant 1.000000e+00 : f32
    %14 = vector.broadcast %cst_9 : f32 to vector<512x128xf32>
    %15 = arith.addf %14, %13 : vector<512x128xf32>
    %16 = arith.mulf %10, %15 : vector<512x128xf32>
    %17 = arith.truncf %16 : vector<512x128xf32> to vector<512x128xbf16>
    %c0_10 = arith.constant 0 : index
    %c0_11 = arith.constant 0 : index
    %18 = vector.load %arg5[%c0_10, %c0_11] : memref<512x128xbf16, #tpu.memory_space<vmem>>, vector<512x128xbf16>
    tpu.vector_store %arg5[%c0_10, %c0_11], %17 {strides = array<i32>} : memref<512x128xbf16, #tpu.memory_space<vmem>>, vector<512x128xbf16>,
    return
  }
  func.func @transform_0(%arg0: i32) -> (i32, i32) {
    %c0_i32 = arith.constant 0 : i32
    %c0_i32_0 = arith.constant 0 : i32
    return %arg0, %c0_i32 : i32, i32
  }
  func.func @transform_1(%arg0: i32) -> (i32, i32) {
    %c0_i32 = arith.constant 0 : i32
    %c0_i32_0 = arith.constant 0 : i32
    %c0_i32_1 = arith.constant 0 : i32
    return %c0_i32, %c0_i32_0 : i32, i32
  }
  func.func @transform_2(%arg0: i32) -> (i32, i32) {
    %c0_i32 = arith.constant 0 : i32
    %c0_i32_0 = arith.constant 0 : i32
    %c0_i32_1 = arith.constant 0 : i32
    return %c0_i32, %c0_i32_0 : i32, i32
  }
  func.func @transform_3(%arg0: i32) -> (i32, i32) {
    %c0_i32 = arith.constant 0 : i32
    %c0_i32_0 = arith.constant 0 : i32
    %c0_i32_1 = arith.constant 0 : i32
    return %c0_i32, %c0_i32_0 : i32, i32
  }
  func.func @transform_4(%arg0: i32) -> (i32, i32) {
    %c0_i32 = arith.constant 0 : i32
    %c0_i32_0 = arith.constant 0 : i32
    return %arg0, %c0_i32 : i32, i32
  }
}

module attributes {stable_mosaic.version = 11 : i64} {
  func.func @_matmul_bn_gelu_kernel(%arg0: i32, %arg1: memref<512x128xbf16, #tpu.memory_space<vmem>>, %arg2: memref<128x128xbf16, #tpu.memory_space<vmem>>, %arg3: memref<1x128xf32, #tpu.memory_space<vmem>>, %arg4: memref<1x128xf32, #tpu.memory_space<vmem>>, %arg5: memref<512x128xf32, #tpu.memory_space<vmem>>) attributes {dimension_semantics = [#tpu.dimension_semantics<parallel>], iteration_bounds = array<i64: 1>, scalar_prefetch = 0 : i64, scratch_operands = 0 : i64, tpu.core_type = #tpu.core_type<tc>, window_params = [{transform_indices = @transform_0, window_bounds = array<i64: 512, 128>}, {pipeline_mode = #tpu.pipeline_mode<synchronous>, transform_indices = @transform_1, window_bounds = array<i64: 128, 128>}, {pipeline_mode = #tpu.pipeline_mode<synchronous>, transform_indices = @transform_2, window_bounds = array<i64: 1, 128>}, {pipeline_mode = #tpu.pipeline_mode<synchronous>, transform_indices = @transform_3, window_bounds = array<i64: 1, 128>}, {transform_indices = @transform_4, window_bounds = array<i64: 512, 128>}]} {
    %c0 = arith.constant 0 : index
    %c0_0 = arith.constant 0 : index
    %0 = vector.load %arg1[%c0, %c0_0] : memref<512x128xbf16, #tpu.memory_space<vmem>>, vector<512x128xbf16>
    %c0_1 = arith.constant 0 : index
    %c0_2 = arith.constant 0 : index
    %1 = vector.load %arg2[%c0_1, %c0_2] : memref<128x128xbf16, #tpu.memory_space<vmem>>, vector<128x128xbf16>
    %cst = arith.constant dense<0.000000e+00> : vector<512x128xf32>
    %2 = tpu.matmul %0, %1, %cst {dimension_numbers = #tpu.dot_dimension_numbers<[1], [0], [0], [1], [0, 0, 1, 1], [], []>} : vector<512x128xbf16>, vector<128x128xbf16>, vector<512x128xf32> -> vector<512x128xf32>
    %c0_3 = arith.constant 0 : index
    %c0_4 = arith.constant 0 : index
    %3 = vector.load %arg3[%c0_3, %c0_4] : memref<1x128xf32, #tpu.memory_space<vmem>>, vector<1x128xf32>
    %4 = vector.broadcast %3 : vector<1x128xf32> to vector<512x128xf32>
    %5 = arith.mulf %2, %4 : vector<512x128xf32>
    %c0_5 = arith.constant 0 : index
    %c0_6 = arith.constant 0 : index
    %6 = vector.load %arg4[%c0_5, %c0_6] : memref<1x128xf32, #tpu.memory_space<vmem>>, vector<1x128xf32>
    %7 = vector.broadcast %6 : vector<1x128xf32> to vector<512x128xf32>
    %8 = arith.addf %5, %7 : vector<512x128xf32>
    %cst_7 = arith.constant 5.000000e-01 : f32
    %9 = vector.broadcast %cst_7 : f32 to vector<512x128xf32>
    %10 = arith.mulf %9, %8 : vector<512x128xf32>
    %cst_8 = arith.constant 0.707106769 : f32
    %11 = vector.broadcast %cst_8 : f32 to vector<512x128xf32>
    %12 = arith.mulf %8, %11 : vector<512x128xf32>
    %13 = math.erf %12 : vector<512x128xf32>
    %cst_9 = arith.constant 1.000000e+00 : f32
    %14 = vector.broadcast %cst_9 : f32 to vector<512x128xf32>
    %15 = arith.addf %14, %13 : vector<512x128xf32>
    %16 = arith.mulf %10, %15 : vector<512x128xf32>
    %c0_10 = arith.constant 0 : index
    %c0_11 = arith.constant 0 : index
    %17 = vector.load %arg5[%c0_10, %c0_11] : memref<512x128xf32, #tpu.memory_space<vmem>>, vector<512x128xf32>
    tpu.vector_store %arg5[%c0_10, %c0_11], %16 {strides = array<i32>} : memref<512x128xf32, #tpu.memory_space<vmem>>, vector<512x128xf32>,
    return
  }
  func.func @transform_0(%arg0: i32) -> (i32, i32) {
    %c0_i32 = arith.constant 0 : i32
    %c0_i32_0 = arith.constant 0 : i32
    return %arg0, %c0_i32 : i32, i32
  }
  func.func @transform_1(%arg0: i32) -> (i32, i32) {
    %c0_i32 = arith.constant 0 : i32
    %c0_i32_0 = arith.constant 0 : i32
    %c0_i32_1 = arith.constant 0 : i32
    return %c0_i32, %c0_i32_0 : i32, i32
  }
  func.func @transform_2(%arg0: i32) -> (i32, i32) {
    %c0_i32 = arith.constant 0 : i32
    %c0_i32_0 = arith.constant 0 : i32
    %c0_i32_1 = arith.constant 0 : i32
    return %c0_i32, %c0_i32_0 : i32, i32
  }
  func.func @transform_3(%arg0: i32) -> (i32, i32) {
    %c0_i32 = arith.constant 0 : i32
    %c0_i32_0 = arith.constant 0 : i32
    %c0_i32_1 = arith.constant 0 : i32
    return %c0_i32, %c0_i32_0 : i32, i32
  }
  func.func @transform_4(%arg0: i32) -> (i32, i32) {
    %c0_i32 = arith.constant 0 : i32
    %c0_i32_0 = arith.constant 0 : i32
    return %arg0, %c0_i32 : i32, i32
  }
}

</mosaic_0001>

<llo_original>
// kernel: convblock_forward.4
$region0: #{convblock_forward.4}
  #allocation0 [shape = 'u32[]', space=smem, size = 0x4, offset = 0x4, fixed_abs, tag = 'smem constant byte address 0x4 - core index']
  #allocation1 [shape = 'u32[144,128]{1,0:T(1,128)}', space=vmem, size = 0x12000, scoped, tag = 'internal scratch']
  %s0 = inlined_call_operand.vmem [shape: bf16[512,128], index: 0, kind: input, shape index: {}]
  %s1 = inlined_call_operand.vmem [shape: bf16[128,128], index: 1, kind: input, shape index: {}]
  %s2 = inlined_call_operand.vmem [shape: f32[1,1,128], index: 2, kind: output, shape index: {0}]
  %s3 = inlined_call_operand.vmem [shape: f32[1,1,128], index: 3, kind: output, shape index: {1}]
  %4 = xla_tuple %s2, %s3
  %s5 = sld [smem:[#allocation0]]
  $region30: #{convblock_forward.4} parent=0
    _
  %s7 = ssub.s32 1, %s5
  %s8 = scalar_select 0, %s7, %s5
  // Predicated region
  $region2: #{convblock_forward.4} parent=0 // pred_check
    _
  $region3: #{convblock_forward.4} parent=0 // pred_check_branch
    %10 = sbr.rel (0) target = $region5
  $region4: #{convblock_forward.4} parent=0 // pred_region
    %s11 = sadd.s32 0, 0
    %s12 = smul.u32 64, %s11
    %p13 = scmp.lt.s32.totalorder %s12, 63
    %s14 = scalar_select %p13, %s12, 63
    %s15 = smul.addr %s14, 4
    %s16 = scalar_lea.vmem %s0, %s15
    %s17 = sadd.s32 0, 0
    %s18 = smul.u32 64, %s17
  $region5: #{convblock_forward.4} parent=0 // pred_fallthru
    _
  // Predicated region
  $region6: #{convblock_forward.4} parent=0 // pred_check
    _
  $region7: #{convblock_forward.4} parent=0 // pred_check_branch
    %20 = sbr.rel (0) target = $region9
  $region8: #{convblock_forward.4} parent=0 // pred_region
    _
  $region9: #{convblock_forward.4} parent=0 // pred_fallthru
    _
  %s21 = sadd.s32 0, 0
  %s22 = smul.u32 64, %s21
  %p23 = scmp.lt.s32.totalorder %s22, 63
  %s24 = scalar_select %p23, %s22, 63
  %s25 = smul.addr %s24, 4
  %s26 = scalar_lea.vmem %s0, %s25
  %s27 = sadd.s32 0, 0
  %s28 = smul.u32 64, %s27
  %p29 = scmp.lt.s32.totalorder %s28, 63
  %s30 = scalar_select %p29, %s28, 63
  %s31 = smul.addr %s30, 4
  %s32 = scalar_lea.vmem %s0, %s31
  %s33 = sadd.s32 0, 0
  %s34 = smul.u32 64, %s33
  %p36 = scmp.eq.s32.totalorder 0, 0
  // Predicated region
  $region10: #{convblock_forward.4} parent=0 // pred_check
    %p37 = pneg %p36
  $region11: #{convblock_forward.4} parent=0 // pred_check_branch
    %39 = sbr.rel (%p37) target = $region13
  $region12: #{convblock_forward.4} parent=0 // pred_region
    %40 = vst [vmem:[%s2] sm:$0x1] 0.0
    %41 = vst [vmem:[%s3] sm:$0x1] 0.0
  $region13: #{convblock_forward.4} parent=0 // pred_fallthru
    _
  %v42 = vld [vmem:[%s32] sm:$0xf]
  %v43 = vld [vmem:[%s32 + $0x4] sm:$0xf]
  %v44 = vld [vmem:[%s32 + $0x8] sm:$0xf]
  %v45 = vld [vmem:[%s32 + $0xc] sm:$0xf]
  %v46 = vld [vmem:[%s32 + $0x10] sm:$0xf]
  %v47 = vld [vmem:[%s32 + $0x14] sm:$0xf]
  %v48 = vld [vmem:[%s32 + $0x18] sm:$0xf]
  %v49 = vld [vmem:[%s32 + $0x1c] sm:$0xf]
  %v50 = vld [vmem:[%s32 + $0x20] sm:$0xf]
  %v51 = vld [vmem:[%s32 + $0x24] sm:$0xf]
  %v52 = vld [vmem:[%s32 + $0x28] sm:$0xf]
  %v53 = vld [vmem:[%s32 + $0x2c] sm:$0xf]
  %v54 = vld [vmem:[%s32 + $0x30] sm:$0xf]
  %v55 = vld [vmem:[%s32 + $0x34] sm:$0xf]
  %v56 = vld [vmem:[%s32 + $0x38] sm:$0xf]
  %v57 = vld [vmem:[%s32 + $0x3c] sm:$0xf]
  %v58 = vld [vmem:[%s32 + $0x40] sm:$0xf]
  %v59 = vld [vmem:[%s32 + $0x44] sm:$0xf]
  %v60 = vld [vmem:[%s32 + $0x48] sm:$0xf]
  %v61 = vld [vmem:[%s32 + $0x4c] sm:$0xf]
  %v62 = vld [vmem:[%s32 + $0x50] sm:$0xf]
  %v63 = vld [vmem:[%s32 + $0x54] sm:$0xf]
  %v64 = vld [vmem:[%s32 + $0x58] sm:$0xf]
  %v65 = vld [vmem:[%s32 + $0x5c] sm:$0xf]
  %v66 = vld [vmem:[%s32 + $0x60] sm:$0xf]
  %v67 = vld [vmem:[%s32 + $0x64] sm:$0xf]
  %v68 = vld [vmem:[%s32 + $0x68] sm:$0xf]
  %v69 = vld [vmem:[%s32 + $0x6c] sm:$0xf]
  %v70 = vld [vmem:[%s32 + $0x70] sm:$0xf]
  %v71 = vld [vmem:[%s32 + $0x74] sm:$0xf]
  %v72 = vld [vmem:[%s32 + $0x78] sm:$0xf]
  %v73 = vld [vmem:[%s32 + $0x7c] sm:$0xf]
  %v74 = vld [vmem:[%s32 + $0x80] sm:$0xf]
  %v75 = vld [vmem:[%s32 + $0x84] sm:$0xf]
  %v76 = vld [vmem:[%s32 + $0x88] sm:$0xf]
  %v77 = vld [vmem:[%s32 + $0x8c] sm:$0xf]
  %v78 = vld [vmem:[%s32 + $0x90] sm:$0xf]
  %v79 = vld [vmem:[%s32 + $0x94] sm:$0xf]
  %v80 = vld [vmem:[%s32 + $0x98] sm:$0xf]
  %v81 = vld [vmem:[%s32 + $0x9c] sm:$0xf]
  %v82 = vld [vmem:[%s32 + $0xa0] sm:$0xf]
  %v83 = vld [vmem:[%s32 + $0xa4] sm:$0xf]
  %v84 = vld [vmem:[%s32 + $0xa8] sm:$0xf]
  %v85 = vld [vmem:[%s32 + $0xac] sm:$0xf]
  %v86 = vld [vmem:[%s32 + $0xb0] sm:$0xf]
  %v87 = vld [vmem:[%s32 + $0xb4] sm:$0xf]
  %v88 = vld [vmem:[%s32 + $0xb8] sm:$0xf]
  %v89 = vld [vmem:[%s32 + $0xbc] sm:$0xf]
  %v90 = vld [vmem:[%s32 + $0xc0] sm:$0xf]
  %v91 = vld [vmem:[%s32 + $0xc4] sm:$0xf]
  %v92 = vld [vmem:[%s32 + $0xc8] sm:$0xf]
  %v93 = vld [vmem:[%s32 + $0xcc] sm:$0xf]
  %v94 = vld [vmem:[%s32 + $0xd0] sm:$0xf]
  %v95 = vld [vmem:[%s32 + $0xd4] sm:$0xf]
  %v96 = vld [vmem:[%s32 + $0xd8] sm:$0xf]
  %v97 = vld [vmem:[%s32 + $0xdc] sm:$0xf]
  %v98 = vld [vmem:[%s32 + $0xe0] sm:$0xf]
  %v99 = vld [vmem:[%s32 + $0xe4] sm:$0xf]
  %v100 = vld [vmem:[%s32 + $0xe8] sm:$0xf]
  %v101 = vld [vmem:[%s32 + $0xec] sm:$0xf]
  %v102 = vld [vmem:[%s32 + $0xf0] sm:$0xf]
  %v103 = vld [vmem:[%s32 + $0xf4] sm:$0xf]
  %v104 = vld [vmem:[%s32 + $0xf8] sm:$0xf]
  %v105 = vld [vmem:[%s32 + $0xfc] sm:$0xf]
  %v106 = vld [vmem:[%s1] sm:$0xf]
  %v107 = vld [vmem:[%s1 + $0x4] sm:$0xf]
  %v108 = vld [vmem:[%s1 + $0x8] sm:$0xf]
  %v109 = vld [vmem:[%s1 + $0xc] sm:$0xf]
  %v110 = vld [vmem:[%s1 + $0x10] sm:$0xf]
  %v111 = vld [vmem:[%s1 + $0x14] sm:$0xf]
  %v112 = vld [vmem:[%s1 + $0x18] sm:$0xf]
  %v113 = vld [vmem:[%s1 + $0x1c] sm:$0xf]
  %v114 = vld [vmem:[%s1 + $0x20] sm:$0xf]
  %v115 = vld [vmem:[%s1 + $0x24] sm:$0xf]
  %v116 = vld [vmem:[%s1 + $0x28] sm:$0xf]
  %v117 = vld [vmem:[%s1 + $0x2c] sm:$0xf]
  %v118 = vld [vmem:[%s1 + $0x30] sm:$0xf]
  %v119 = vld [vmem:[%s1 + $0x34] sm:$0xf]
  %v120 = vld [vmem:[%s1 + $0x38] sm:$0xf]
  %v121 = vld [vmem:[%s1 + $0x3c] sm:$0xf]
  %v186 = vunpack.c.l.b16 %v42
  %v187 = vunpack.c.l.b16 %v43
  %v188 = vunpack.c.l.b16 %v44
  %v189 = vunpack.c.l.b16 %v45
  %v190 = vunpack.c.l.b16 %v46
  %v191 = vunpack.c.l.b16 %v47
  %v192 = vunpack.c.l.b16 %v48
  %v193 = vunpack.c.l.b16 %v49
  %v194 = vunpack.c.l.b16 %v50
  %v195 = vunpack.c.l.b16 %v51
  %v196 = vunpack.c.l.b16 %v52
  %v197 = vunpack.c.l.b16 %v53
  %v198 = vunpack.c.l.b16 %v54
  %v199 = vunpack.c.l.b16 %v55
  %v200 = vunpack.c.l.b16 %v56
  %v201 = vunpack.c.l.b16 %v57
  %v202 = vunpack.c.l.b16 %v58
  %v203 = vunpack.c.l.b16 %v59
  %v204 = vunpack.c.l.b16 %v60
  %v205 = vunpack.c.l.b16 %v61
  %v206 = vunpack.c.l.b16 %v62
  %v207 = vunpack.c.l.b16 %v63
  %v208 = vunpack.c.l.b16 %v64
  %v209 = vunpack.c.l.b16 %v65
  %v210 = vunpack.c.l.b16 %v66
  %v211 = vunpack.c.l.b16 %v67
  %v212 = vunpack.c.l.b16 %v68
  %v213 = vunpack.c.l.b16 %v69
  %v214 = vunpack.c.l.b16 %v70
  %v215 = vunpack.c.l.b16 %v71
  %v216 = vunpack.c.l.b16 %v72
  %v217 = vunpack.c.l.b16 %v73
  %v218 = vunpack.c.l.b16 %v74
  %v219 = vunpack.c.l.b16 %v75
  %v220 = vunpack.c.l.b16 %v76
  %v221 = vunpack.c.l.b16 %v77
  %v222 = vunpack.c.l.b16 %v78
  %v223 = vunpack.c.l.b16 %v79
  %v224 = vunpack.c.l.b16 %v80
  %v225 = vunpack.c.l.b16 %v81
  %v226 = vunpack.c.l.b16 %v82
  %v227 = vunpack.c.l.b16 %v83
  %v228 = vunpack.c.l.b16 %v84
  %v229 = vunpack.c.l.b16 %v85
  %v230 = vunpack.c.l.b16 %v86
  %v231 = vunpack.c.l.b16 %v87
  %v232 = vunpack.c.l.b16 %v88
  %v233 = vunpack.c.l.b16 %v89
  %v234 = vunpack.c.l.b16 %v90
  %v235 = vunpack.c.l.b16 %v91
  %v236 = vunpack.c.l.b16 %v92
  %v237 = vunpack.c.l.b16 %v93
  %v238 = vunpack.c.l.b16 %v94
  %v239 = vunpack.c.l.b16 %v95
  %v240 = vunpack.c.l.b16 %v96
  %v241 = vunpack.c.l.b16 %v97
  %v242 = vunpack.c.l.b16 %v98
  %v243 = vunpack.c.l.b16 %v99
  %v244 = vunpack.c.l.b16 %v100
  %v245 = vunpack.c.l.b16 %v101
  %v246 = vunpack.c.l.b16 %v102
  %v247 = vunpack.c.l.b16 %v103
  %v248 = vunpack.c.l.b16 %v104
  %v249 = vunpack.c.l.b16 %v105
  %v250 = vpack.c.b16 %v187, %v186
  %v251 = vpack.c.b16 %v189, %v188
  %v252 = vpack.c.b16 %v191, %v190
  %v253 = vpack.c.b16 %v193, %v192
  %v254 = vpack.c.b16 %v195, %v194
  %v255 = vpack.c.b16 %v197, %v196
  %v256 = vpack.c.b16 %v199, %v198
  %v257 = vpack.c.b16 %v201, %v200
  %v258 = vpack.c.b16 %v203, %v202
  %v259 = vpack.c.b16 %v205, %v204
  %v260 = vpack.c.b16 %v207, %v206
  %v261 = vpack.c.b16 %v209, %v208
  %v262 = vpack.c.b16 %v211, %v210
  %v263 = vpack.c.b16 %v213, %v212
  %v264 = vpack.c.b16 %v215, %v214
  %v265 = vpack.c.b16 %v217, %v216
  %v266 = vpack.c.b16 %v219, %v218
  %v267 = vpack.c.b16 %v221, %v220
  %v268 = vpack.c.b16 %v223, %v222
  %v269 = vpack.c.b16 %v225, %v224
  %v270 = vpack.c.b16 %v227, %v226
  %v271 = vpack.c.b16 %v229, %v228
  %v272 = vpack.c.b16 %v231, %v230
  %v273 = vpack.c.b16 %v233, %v232
  %v274 = vpack.c.b16 %v235, %v234
  %v275 = vpack.c.b16 %v237, %v236
  %v276 = vpack.c.b16 %v239, %v238
  %v277 = vpack.c.b16 %v241, %v240
  %v278 = vpack.c.b16 %v243, %v242
  %v279 = vpack.c.b16 %v245, %v244
  %v280 = vpack.c.b16 %v247, %v246
  %v281 = vpack.c.b16 %v249, %v248
  %v330 = vunpack.c.l.b16 %v106
  %v331 = vunpack.c.l.b16 %v107
  %v332 = vunpack.c.l.b16 %v108
  %v333 = vunpack.c.l.b16 %v109
  %v334 = vunpack.c.l.b16 %v110
  %v335 = vunpack.c.l.b16 %v111
  %v336 = vunpack.c.l.b16 %v112
  %v337 = vunpack.c.l.b16 %v113
  %v338 = vunpack.c.l.b16 %v114
  %v339 = vunpack.c.l.b16 %v115
  %v340 = vunpack.c.l.b16 %v116
  %v341 = vunpack.c.l.b16 %v117
  %v342 = vunpack.c.l.b16 %v118
  %v343 = vunpack.c.l.b16 %v119
  %v344 = vunpack.c.l.b16 %v120
  %v345 = vunpack.c.l.b16 %v121
  %v346 = vpack.c.b16 %v331, %v330
  %v347 = vpack.c.b16 %v333, %v332
  %v348 = vpack.c.b16 %v335, %v334
  %v349 = vpack.c.b16 %v337, %v336
  %v350 = vpack.c.b16 %v339, %v338
  %v351 = vpack.c.b16 %v341, %v340
  %v352 = vpack.c.b16 %v343, %v342
  %v353 = vpack.c.b16 %v345, %v344
  %362 = vmatprep.subr.bf16.mxu0 0
  %363 = vmatpush1.bf16.msra.mxu0 %v346
  %364 = vmatprep.subr.bf16.mxu0 0
  %365 = vmatpush1.bf16.msra.mxu0 %v347
  %366 = vmatprep.subr.bf16.mxu0 0
  %367 = vmatpush1.bf16.msra.mxu0 %v348
  %368 = vmatprep.subr.bf16.mxu0 0
  %369 = vmatpush1.bf16.msra.mxu0 %v349
  %370 = vmatprep.subr.bf16.mxu0 0
  %371 = vmatpush1.bf16.msra.mxu0 %v350
  %372 = vmatprep.subr.bf16.mxu0 0
  %373 = vmatpush1.bf16.msra.mxu0 %v351
  %374 = vmatprep.subr.bf16.mxu0 0
  %375 = vmatpush1.bf16.msra.mxu0 %v352
  %376 = vmatprep.subr.bf16.mxu0 0
  %377 = vmatpush1.bf16.msra.mxu0 %v353
  %378 = vmatprep.subr.bf16.mxu0 0
  %379 = vmatpush1.bf16.msra.mxu0 0
  %380 = vmatprep.subr.bf16.mxu0 0
  %381 = vmatpush1.bf16.msra.mxu0 0
  %382 = vmatprep.subr.bf16.mxu0 0
  %383 = vmatpush1.bf16.msra.mxu0 0
  %384 = vmatprep.subr.bf16.mxu0 0
  %385 = vmatpush1.bf16.msra.mxu0 0
  %386 = vmatprep.subr.bf16.mxu0 0
  %387 = vmatpush1.bf16.msra.mxu0 0
  %388 = vmatprep.subr.bf16.mxu0 0
  %389 = vmatpush1.bf16.msra.mxu0 0
  %390 = vmatprep.subr.bf16.mxu0 0
  %391 = vmatpush1.bf16.msra.mxu0 0
  %392 = vmatprep.subr.bf16.mxu0 0
  %393 = vmatpush1.bf16.msra.mxu0 0
  %394 = vmatprep.mubr.bf16.mxu0 0
  %395 = vmatmul.mubr.bf16.gmra.mrb[0].mxu0 %v250
  %v396 = vpop.f32.mrb[0].mxu0
  %v397 = vadd.f32 0.0, %v396
  %v398 = vpop.f32.mrb[0].mxu0
  %v399 = vpop.f32.mrb[0].mxu0
  %v400 = vadd.f32 0.0, %v399
  %v401 = vpop.f32.mrb[0].mxu0
  %402 = vmatprep.mubr.bf16.mxu0 0
  %403 = vmatmul.mubr.bf16.gmra.mrb[0].mxu0 %v251
  %v404 = vpop.f32.mrb[0].mxu0
  %v405 = vadd.f32 0.0, %v404
  %v406 = vpop.f32.mrb[0].mxu0
  %v407 = vpop.f32.mrb[0].mxu0
  %v408 = vadd.f32 0.0, %v407
  %v409 = vpop.f32.mrb[0].mxu0
  %410 = vmatprep.mubr.bf16.mxu0 0
  %411 = vmatmul.mubr.bf16.gmra.mrb[0].mxu0 %v252
  %v412 = vpop.f32.mrb[0].mxu0
  %v413 = vadd.f32 0.0, %v412
  %v414 = vpop.f32.mrb[0].mxu0
  %v415 = vpop.f32.mrb[0].mxu0
  %v416 = vadd.f32 0.0, %v415
  %v417 = vpop.f32.mrb[0].mxu0
  %418 = vmatprep.mubr.bf16.mxu0 0
  %419 = vmatmul.mubr.bf16.gmra.mrb[0].mxu0 %v253
  %v420 = vpop.f32.mrb[0].mxu0
  %v421 = vadd.f32 0.0, %v420
  %v422 = vpop.f32.mrb[0].mxu0
  %v423 = vpop.f32.mrb[0].mxu0
  %v424 = vadd.f32 0.0, %v423
  %v425 = vpop.f32.mrb[0].mxu0
  %426 = vmatprep.mubr.bf16.mxu0 0
  %427 = vmatmul.mubr.bf16.gmra.mrb[0].mxu0 %v254
  %v428 = vpop.f32.mrb[0].mxu0
  %v429 = vadd.f32 0.0, %v428
  %v430 = vpop.f32.mrb[0].mxu0
  %v431 = vpop.f32.mrb[0].mxu0
  %v432 = vadd.f32 0.0, %v431
  %v433 = vpop.f32.mrb[0].mxu0
  %434 = vmatprep.mubr.bf16.mxu0 0
  %435 = vmatmul.mubr.bf16.gmra.mrb[0].mxu0 %v255
  %v436 = vpop.f32.mrb[0].mxu0
  %v437 = vadd.f32 0.0, %v436
  %v438 = vpop.f32.mrb[0].mxu0
  %v439 = vpop.f32.mrb[0].mxu0
  %v440 = vadd.f32 0.0, %v439
  %v441 = vpop.f32.mrb[0].mxu0
  %442 = vmatprep.mubr.bf16.mxu0 0
  %443 = vmatmul.mubr.bf16.gmra.mrb[0].mxu0 %v256
  %v444 = vpop.f32.mrb[0].mxu0
  %v445 = vadd.f32 0.0, %v444
  %v446 = vpop.f32.mrb[0].mxu0
  %v447 = vpop.f32.mrb[0].mxu0
  %v448 = vadd.f32 0.0, %v447
  %v449 = vpop.f32.mrb[0].mxu0
  %450 = vmatprep.mubr.bf16.mxu0 0
  %451 = vmatmul.mubr.bf16.gmra.mrb[0].mxu0 %v257
  %v452 = vpop.f32.mrb[0].mxu0
  %v453 = vadd.f32 0.0, %v452
  %v454 = vpop.f32.mrb[0].mxu0
  %v455 = vpop.f32.mrb[0].mxu0
  %v456 = vadd.f32 0.0, %v455
  %v457 = vpop.f32.mrb[0].mxu0
  %458 = vmatprep.mubr.bf16.mxu0 0
  %459 = vmatmul.mubr.bf16.gmra.mrb[0].mxu0 %v258
  %v460 = vpop.f32.mrb[0].mxu0
  %v461 = vadd.f32 0.0, %v460
  %v462 = vpop.f32.mrb[0].mxu0
  %v463 = vpop.f32.mrb[0].mxu0
  %v464 = vadd.f32 0.0, %v463
  %v465 = vpop.f32.mrb[0].mxu0
  %466 = vmatprep.mubr.bf16.mxu0 0
  %467 = vmatmul.mubr.bf16.gmra.mrb[0].mxu0 %v259
  %v468 = vpop.f32.mrb[0].mxu0
  %v469 = vadd.f32 0.0, %v468
  %v470 = vpop.f32.mrb[0].mxu0
  %v471 = vpop.f32.mrb[0].mxu0
  %v472 = vadd.f32 0.0, %v471
  %v473 = vpop.f32.mrb[0].mxu0
  %474 = vmatprep.mubr.bf16.mxu0 0
  %475 = vmatmul.mubr.bf16.gmra.mrb[0].mxu0 %v260
  %v476 = vpop.f32.mrb[0].mxu0
  %v477 = vadd.f32 0.0, %v476
  %v478 = vpop.f32.mrb[0].mxu0
  %v479 = vpop.f32.mrb[0].mxu0
  %v480 = vadd.f32 0.0, %v479
  %v481 = vpop.f32.mrb[0].mxu0
  %482 = vmatprep.mubr.bf16.mxu0 0
  %483 = vmatmul.mubr.bf16.gmra.mrb[0].mxu0 %v261
  %v484 = vpop.f32.mrb[0].mxu0
  %v485 = vadd.f32 0.0, %v484
  %v486 = vpop.f32.mrb[0].mxu0
  %v487 = vpop.f32.mrb[0].mxu0
  %v488 = vadd.f32 0.0, %v487
  %v489 = vpop.f32.mrb[0].mxu0
  %490 = vmatprep.mubr.bf16.mxu0 0
  %491 = vmatmul.mubr.bf16.gmra.mrb[0].mxu0 %v262
  %v492 = vpop.f32.mrb[0].mxu0
  %v493 = vadd.f32 0.0, %v492
  %v494 = vpop.f32.mrb[0].mxu0
  %v495 = vpop.f32.mrb[0].mxu0
  %v496 = vadd.f32 0.0, %v495
  %v497 = vpop.f32.mrb[0].mxu0
  %498 = vmatprep.mubr.bf16.mxu0 0
  %499 = vmatmul.mubr.bf16.gmra.mrb[0].mxu0 %v263
  %v500 = vpop.f32.mrb[0].mxu0
  %v501 = vadd.f32 0.0, %v500
  %v502 = vpop.f32.mrb[0].mxu0
  %v503 = vpop.f32.mrb[0].mxu0
  %v504 = vadd.f32 0.0, %v503
  %v505 = vpop.f32.mrb[0].mxu0
  %506 = vmatprep.mubr.bf16.mxu0 0
  %507 = vmatmul.mubr.bf16.gmra.mrb[0].mxu0 %v264
  %v508 = vpop.f32.mrb[0].mxu0
  %v509 = vadd.f32 0.0, %v508
  %v510 = vpop.f32.mrb[0].mxu0
  %v511 = vpop.f32.mrb[0].mxu0
  %v512 = vadd.f32 0.0, %v511
  %v513 = vpop.f32.mrb[0].mxu0
  %514 = vmatprep.mubr.bf16.mxu0 0
  %515 = vmatmul.mubr.bf16.gmra.mrb[0].mxu0 %v265
  %v516 = vpop.f32.mrb[0].mxu0
  %v517 = vadd.f32 0.0, %v516
  %v518 = vpop.f32.mrb[0].mxu0
  %v519 = vpop.f32.mrb[0].mxu0
  %v520 = vadd.f32 0.0, %v519
  %v521 = vpop.f32.mrb[0].mxu0
  %522 = vmatprep.mubr.bf16.mxu0 0
  %523 = vmatmul.mubr.bf16.gmra.mrb[0].mxu0 %v266
  %v524 = vpop.f32.mrb[0].mxu0
  %v525 = vadd.f32 0.0, %v524
  %v526 = vpop.f32.mrb[0].mxu0
  %v527 = vpop.f32.mrb[0].mxu0
  %v528 = vadd.f32 0.0, %v527
  %v529 = vpop.f32.mrb[0].mxu0
  %530 = vmatprep.mubr.bf16.mxu0 0
  %531 = vmatmul.mubr.bf16.gmra.mrb[0].mxu0 %v267
  %v532 = vpop.f32.mrb[0].mxu0
  %v533 = vadd.f32 0.0, %v532
  %v534 = vpop.f32.mrb[0].mxu0
  %v535 = vpop.f32.mrb[0].mxu0
  %v536 = vadd.f32 0.0, %v535
  %v537 = vpop.f32.mrb[0].mxu0
  %538 = vmatprep.mubr.bf16.mxu0 0
  %539 = vmatmul.mubr.bf16.gmra.mrb[0].mxu0 %v268
  %v540 = vpop.f32.mrb[0].mxu0
  %v541 = vadd.f32 0.0, %v540
  %v542 = vpop.f32.mrb[0].mxu0
  %v543 = vpop.f32.mrb[0].mxu0
  %v544 = vadd.f32 0.0, %v543
  %v545 = vpop.f32.mrb[0].mxu0
  %546 = vmatprep.mubr.bf16.mxu0 0
  %547 = vmatmul.mubr.bf16.gmra.mrb[0].mxu0 %v269
  %v548 = vpop.f32.mrb[0].mxu0
  %v549 = vadd.f32 0.0, %v548
  %v550 = vpop.f32.mrb[0].mxu0
  %v551 = vpop.f32.mrb[0].mxu0
  %v552 = vadd.f32 0.0, %v551
  %v553 = vpop.f32.mrb[0].mxu0
  %554 = vmatprep.mubr.bf16.mxu0 0
  %555 = vmatmul.mubr.bf16.gmra.mrb[0].mxu0 %v270
  %v556 = vpop.f32.mrb[0].mxu0
  %v557 = vadd.f32 0.0, %v556
  %v558 = vpop.f32.mrb[0].mxu0
  %v559 = vpop.f32.mrb[0].mxu0
  %v560 = vadd.f32 0.0, %v559
  %v561 = vpop.f32.mrb[0].mxu0
  %562 = vmatprep.mubr.bf16.mxu0 0
  %563 = vmatmul.mubr.bf16.gmra.mrb[0].mxu0 %v271
  %v564 = vpop.f32.mrb[0].mxu0
  %v565 = vadd.f32 0.0, %v564
  %v566 = vpop.f32.mrb[0].mxu0
  %v567 = vpop.f32.mrb[0].mxu0
  %v568 = vadd.f32 0.0, %v567
  %v569 = vpop.f32.mrb[0].mxu0
  %570 = vmatprep.mubr.bf16.mxu0 0
  %571 = vmatmul.mubr.bf16.gmra.mrb[0].mxu0 %v272
  %v572 = vpop.f32.mrb[0].mxu0
  %v573 = vadd.f32 0.0, %v572
  %v574 = vpop.f32.mrb[0].mxu0
  %v575 = vpop.f32.mrb[0].mxu0
  %v576 = vadd.f32 0.0, %v575
  %v577 = vpop.f32.mrb[0].mxu0
  %578 = vmatprep.mubr.bf16.mxu0 0
  %579 = vmatmul.mubr.bf16.gmra.mrb[0].mxu0 %v273
  %v580 = vpop.f32.mrb[0].mxu0
  %v581 = vadd.f32 0.0, %v580
  %v582 = vpop.f32.mrb[0].mxu0
  %v583 = vpop.f32.mrb[0].mxu0
  %v584 = vadd.f32 0.0, %v583
  %v585 = vpop.f32.mrb[0].mxu0
  %586 = vmatprep.mubr.bf16.mxu0 0
  %587 = vmatmul.mubr.bf16.gmra.mrb[0].mxu0 %v274
  %v588 = vpop.f32.mrb[0].mxu0
  %v589 = vadd.f32 0.0, %v588
  %v590 = vpop.f32.mrb[0].mxu0
  %v591 = vpop.f32.mrb[0].mxu0
  %v592 = vadd.f32 0.0, %v591
  %v593 = vpop.f32.mrb[0].mxu0
  %594 = vmatprep.mubr.bf16.mxu0 0
  %595 = vmatmul.mubr.bf16.gmra.mrb[0].mxu0 %v275
  %v596 = vpop.f32.mrb[0].mxu0
  %v597 = vadd.f32 0.0, %v596
  %v598 = vpop.f32.mrb[0].mxu0
  %v599 = vpop.f32.mrb[0].mxu0
  %v600 = vadd.f32 0.0, %v599
  %v601 = vpop.f32.mrb[0].mxu0
  %602 = vmatprep.mubr.bf16.mxu0 0
  %603 = vmatmul.mubr.bf16.gmra.mrb[0].mxu0 %v276
  %v604 = vpop.f32.mrb[0].mxu0
  %v605 = vadd.f32 0.0, %v604
  %v606 = vpop.f32.mrb[0].mxu0
  %v607 = vpop.f32.mrb[0].mxu0
  %v608 = vadd.f32 0.0, %v607
  %v609 = vpop.f32.mrb[0].mxu0
  %610 = vmatprep.mubr.bf16.mxu0 0
  %611 = vmatmul.mubr.bf16.gmra.mrb[0].mxu0 %v277
  %v612 = vpop.f32.mrb[0].mxu0
  %v613 = vadd.f32 0.0, %v612
  %v614 = vpop.f32.mrb[0].mxu0
  %v615 = vpop.f32.mrb[0].mxu0
  %v616 = vadd.f32 0.0, %v615
  %v617 = vpop.f32.mrb[0].mxu0
  %618 = vmatprep.mubr.bf16.mxu0 0
  %619 = vmatmul.mubr.bf16.gmra.mrb[0].mxu0 %v278
  %v620 = vpop.f32.mrb[0].mxu0
  %v621 = vadd.f32 0.0, %v620
  %v622 = vpop.f32.mrb[0].mxu0
  %v623 = vpop.f32.mrb[0].mxu0
  %v624 = vadd.f32 0.0, %v623
  %v625 = vpop.f32.mrb[0].mxu0
  %626 = vmatprep.mubr.bf16.mxu0 0
  %627 = vmatmul.mubr.bf16.gmra.mrb[0].mxu0 %v279
  %v628 = vpop.f32.mrb[0].mxu0
  %v629 = vadd.f32 0.0, %v628
  %v630 = vpop.f32.mrb[0].mxu0
  %v631 = vpop.f32.mrb[0].mxu0
  %v632 = vadd.f32 0.0, %v631
  %v633 = vpop.f32.mrb[0].mxu0
  %634 = vmatprep.mubr.bf16.mxu0 0
  %635 = vmatmul.mubr.bf16.gmra.mrb[0].mxu0 %v280
  %v636 = vpop.f32.mrb[0].mxu0
  %v637 = vadd.f32 0.0, %v636
  %v638 = vpop.f32.mrb[0].mxu0
  %v639 = vpop.f32.mrb[0].mxu0
  %v640 = vadd.f32 0.0, %v639
  %v641 = vpop.f32.mrb[0].mxu0
  %642 = vmatprep.mubr.bf16.mxu0 0
  %643 = vmatmul.mubr.bf16.gmra.mrb[0].mxu0 %v281
  %v644 = vpop.f32.mrb[0].mxu0
  %v645 = vadd.f32 0.0, %v644
  %v646 = vpop.f32.mrb[0].mxu0
  %v647 = vpop.f32.mrb[0].mxu0
  %v648 = vadd.f32 0.0, %v647
  %v649 = vpop.f32.mrb[0].mxu0
  %650 = vdwg.mxu0
  %v651 = vld [vmem:[%s2] sm:$0x1]
  %v652 = vadd.f32 %v397, %v400
  %v653 = vadd.f32 %v652, %v405
  %v654 = vadd.f32 %v653, %v408
  %v655 = vadd.f32 %v654, %v413
  %v656 = vadd.f32 %v655, %v416
  %v657 = vadd.f32 %v656, %v421
  %v658 = vadd.f32 %v657, %v424
  %v659 = vadd.f32 %v658, %v429
  %v660 = vadd.f32 %v659, %v432
  %v661 = vadd.f32 %v660, %v437
  %v662 = vadd.f32 %v661, %v440
  %v663 = vadd.f32 %v662, %v445
  %v664 = vadd.f32 %v663, %v448
  %v665 = vadd.f32 %v664, %v453
  %v666 = vadd.f32 %v665, %v456
  %v667 = vadd.f32 %v666, %v461
  %v668 = vadd.f32 %v667, %v464
  %v669 = vadd.f32 %v668, %v469
  %v670 = vadd.f32 %v669, %v472
  %v671 = vadd.f32 %v670, %v477
  %v672 = vadd.f32 %v671, %v480
  %v673 = vadd.f32 %v672, %v485
  %v674 = vadd.f32 %v673, %v488
  %v675 = vadd.f32 %v674, %v493
  %v676 = vadd.f32 %v675, %v496
  %v677 = vadd.f32 %v676, %v501
  %v678 = vadd.f32 %v677, %v504
  %v679 = vadd.f32 %v678, %v509
  %v680 = vadd.f32 %v679, %v512
  %v681 = vadd.f32 %v680, %v517
  %v682 = vadd.f32 %v681, %v520
  %v683 = vadd.f32 %v682, %v525
  %v684 = vadd.f32 %v683, %v528
  %v685 = vadd.f32 %v684, %v533
  %v686 = vadd.f32 %v685, %v536
  %v687 = vadd.f32 %v686, %v541
  %v688 = vadd.f32 %v687, %v544
  %v689 = vadd.f32 %v688, %v549
  %v690 = vadd.f32 %v689, %v552
  %v691 = vadd.f32 %v690, %v557
  %v692 = vadd.f32 %v691, %v560
  %v693 = vadd.f32 %v692, %v565
  %v694 = vadd.f32 %v693, %v568
  %v695 = vadd.f32 %v694, %v573
  %v696 = vadd.f32 %v695, %v576
  %v697 = vadd.f32 %v696, %v581
  %v698 = vadd.f32 %v697, %v584
  %v699 = vadd.f32 %v698, %v589
  %v700 = vadd.f32 %v699, %v592
  %v701 = vadd.f32 %v700, %v597
  %v702 = vadd.f32 %v701, %v600
  %v703 = vadd.f32 %v702, %v605
  %v704 = vadd.f32 %v703, %v608
  %v705 = vadd.f32 %v704, %v613
  %v706 = vadd.f32 %v705, %v616
  %v707 = vadd.f32 %v706, %v621
  %v708 = vadd.f32 %v707, %v624
  %v709 = vadd.f32 %v708, %v629
  %v710 = vadd.f32 %v709, %v632
  %v711 = vadd.f32 %v710, %v637
  %v712 = vadd.f32 %v711, %v640
  %v713 = vadd.f32 %v712, %v645
  %v714 = vadd.f32 %v713, %v648
  %v715 = vrot.slane %v714, 4
  %v716 = vadd.f32 %v714, %v715
  %v717 = vrot.slane %v716, 2
  %v718 = vadd.f32 %v716, %v717
  %v719 = vrot.slane %v718, 1
  %v720 = vadd.f32 %v718, %v719
  %v721 = vadd.f32 %v651, %v720
  %722 = vst [vmem:[%s2] sm:$0x1] %v721
  %v723 = vld [vmem:[%s3] sm:$0x1]
  %v724 = vmul.f32 %v397, %v397
  %v725 = vmul.f32 %v400, %v400
  %v726 = vmul.f32 %v405, %v405
  %v727 = vmul.f32 %v408, %v408
  %v728 = vmul.f32 %v413, %v413
  %v729 = vmul.f32 %v416, %v416
  %v730 = vmul.f32 %v421, %v421
  %v731 = vmul.f32 %v424, %v424
  %v732 = vmul.f32 %v429, %v429
  %v733 = vmul.f32 %v432, %v432
  %v734 = vmul.f32 %v437, %v437
  %v735 = vmul.f32 %v440, %v440
  %v736 = vmul.f32 %v445, %v445
  %v737 = vmul.f32 %v448, %v448
  %v738 = vmul.f32 %v453, %v453
  %v739 = vmul.f32 %v456, %v456
  %v740 = vmul.f32 %v461, %v461
  %v741 = vmul.f32 %v464, %v464
  %v742 = vmul.f32 %v469, %v469
  %v743 = vmul.f32 %v472, %v472
  %v744 = vmul.f32 %v477, %v477
  %v745 = vmul.f32 %v480, %v480
  %v746 = vmul.f32 %v485, %v485
  %v747 = vmul.f32 %v488, %v488
  %v748 = vmul.f32 %v493, %v493
  %v749 = vmul.f32 %v496, %v496
  %v750 = vmul.f32 %v501, %v501
  %v751 = vmul.f32 %v504, %v504
  %v752 = vmul.f32 %v509, %v509
  %v753 = vmul.f32 %v512, %v512
  %v754 = vmul.f32 %v517, %v517
  %v755 = vmul.f32 %v520, %v520
  %v756 = vmul.f32 %v525, %v525
  %v757 = vmul.f32 %v528, %v528
  %v758 = vmul.f32 %v533, %v533
  %v759 = vmul.f32 %v536, %v536
  %v760 = vmul.f32 %v541, %v541
  %v761 = vmul.f32 %v544, %v544
  %v762 = vmul.f32 %v549, %v549
  %v763 = vmul.f32 %v552, %v552
  %v764 = vmul.f32 %v557, %v557
  %v765 = vmul.f32 %v560, %v560
  %v766 = vmul.f32 %v565, %v565
  %v767 = vmul.f32 %v568, %v568
  %v768 = vmul.f32 %v573, %v573
  %v769 = vmul.f32 %v576, %v576
  %v770 = vmul.f32 %v581, %v581
  %v771 = vmul.f32 %v584, %v584
  %v772 = vmul.f32 %v589, %v589
  %v773 = vmul.f32 %v592, %v592
  %v774 = vmul.f32 %v597, %v597
  %v775 = vmul.f32 %v600, %v600
  %v776 = vmul.f32 %v605, %v605
  %v777 = vmul.f32 %v608, %v608
  %v778 = vmul.f32 %v613, %v613
  %v779 = vmul.f32 %v616, %v616
  %v780 = vmul.f32 %v621, %v621
  %v781 = vmul.f32 %v624, %v624
  %v782 = vmul.f32 %v629, %v629
  %v783 = vmul.f32 %v632, %v632
  %v784 = vmul.f32 %v637, %v637
  %v785 = vmul.f32 %v640, %v640
  %v786 = vmul.f32 %v645, %v645
  %v787 = vmul.f32 %v648, %v648
  %v788 = vadd.f32 %v724, %v725
  %v789 = vadd.f32 %v788, %v726
  %v790 = vadd.f32 %v789, %v727
  %v791 = vadd.f32 %v790, %v728
  %v792 = vadd.f32 %v791, %v729
  %v793 = vadd.f32 %v792, %v730
  %v794 = vadd.f32 %v793, %v731
  %v795 = vadd.f32 %v794, %v732
  %v796 = vadd.f32 %v795, %v733
  %v797 = vadd.f32 %v796, %v734
  %v798 = vadd.f32 %v797, %v735
  %v799 = vadd.f32 %v798, %v736
  %v800 = vadd.f32 %v799, %v737
  %v801 = vadd.f32 %v800, %v738
  %v802 = vadd.f32 %v801, %v739
  %v803 = vadd.f32 %v802, %v740
  %v804 = vadd.f32 %v803, %v741
  %v805 = vadd.f32 %v804, %v742
  %v806 = vadd.f32 %v805, %v743
  %v807 = vadd.f32 %v806, %v744
  %v808 = vadd.f32 %v807, %v745
  %v809 = vadd.f32 %v808, %v746
  %v810 = vadd.f32 %v809, %v747
  %v811 = vadd.f32 %v810, %v748
  %v812 = vadd.f32 %v811, %v749
  %v813 = vadd.f32 %v812, %v750
  %v814 = vadd.f32 %v813, %v751
  %v815 = vadd.f32 %v814, %v752
  %v816 = vadd.f32 %v815, %v753
  %v817 = vadd.f32 %v816, %v754
  %v818 = vadd.f32 %v817, %v755
  %v819 = vadd.f32 %v818, %v756
  %v820 = vadd.f32 %v819, %v757
  %v821 = vadd.f32 %v820, %v758
  %v822 = vadd.f32 %v821, %v759
  %v823 = vadd.f32 %v822, %v760
  %v824 = vadd.f32 %v823, %v761
  %v825 = vadd.f32 %v824, %v762
  %v826 = vadd.f32 %v825, %v763
  %v827 = vadd.f32 %v826, %v764
  %v828 = vadd.f32 %v827, %v765
  %v829 = vadd.f32 %v828, %v766
  %v830 = vadd.f32 %v829, %v767
  %v831 = vadd.f32 %v830, %v768
  %v832 = vadd.f32 %v831, %v769
  %v833 = vadd.f32 %v832, %v770
  %v834 = vadd.f32 %v833, %v771
  %v835 = vadd.f32 %v834, %v772
  %v836 = vadd.f32 %v835, %v773
  %v837 = vadd.f32 %v836, %v774
  %v838 = vadd.f32 %v837, %v775
  %v839 = vadd.f32 %v838, %v776
  %v840 = vadd.f32 %v839, %v777
  %v841 = vadd.f32 %v840, %v778
  %v842 = vadd.f32 %v841, %v779
  %v843 = vadd.f32 %v842, %v780
  %v844 = vadd.f32 %v843, %v781
  %v845 = vadd.f32 %v844, %v782
  %v846 = vadd.f32 %v845, %v783
  %v847 = vadd.f32 %v846, %v784
  %v848 = vadd.f32 %v847, %v785
  %v849 = vadd.f32 %v848, %v786
  %v850 = vadd.f32 %v849, %v787
  %v851 = vrot.slane %v850, 4
  %v852 = vadd.f32 %v850, %v851
  %v853 = vrot.slane %v852, 2
  %v854 = vadd.f32 %v852, %v853
  %v855 = vrot.slane %v854, 1
  %v856 = vadd.f32 %v854, %v855
  %v857 = vadd.f32 %v723, %v856
  %858 = vst [vmem:[%s3] sm:$0x1] %v857
  // Predicated region
  $region14: #{convblock_forward.4} parent=0 // pred_check
    _
  $region15: #{convblock_forward.4} parent=0 // pred_check_branch
    %860 = sbr.rel (0) target = $region17
  $region16: #{convblock_forward.4} parent=0 // pred_region
    _
  $region17: #{convblock_forward.4} parent=0 // pred_fallthru
    _
  // Predicated region
  $region18: #{convblock_forward.4} parent=0 // pred_check
    _
  $region19: #{convblock_forward.4} parent=0 // pred_check_branch
    %862 = sbr.rel (0) target = $region21
  $region20: #{convblock_forward.4} parent=0 // pred_region
    _
  $region21: #{convblock_forward.4} parent=0 // pred_fallthru
    _
  // Predicated region
  $region22: #{convblock_forward.4} parent=0 // pred_check
    _
  $region23: #{convblock_forward.4} parent=0 // pred_check_branch
    %864 = sbr.rel (0) target = $region25
  $region24: #{convblock_forward.4} parent=0 // pred_region
    _
  $region25: #{convblock_forward.4} parent=0 // pred_fallthru
    _
  // Predicated region
  $region26: #{convblock_forward.4} parent=0 // pred_check
    _
  $region27: #{convblock_forward.4} parent=0 // pred_check_branch
    %866 = sbr.rel (0) target = $region29
  $region28: #{convblock_forward.4} parent=0 // pred_region
    _
  $region29: #{convblock_forward.4} parent=0 // pred_fallthru
    _

// kernel: convblock_forward.5
$region0: #{convblock_forward.5}
  #allocation0 [shape = 'u32[]', space=smem, size = 0x4, offset = 0x4, fixed_abs, tag = 'smem constant byte address 0x4 - core index']
  #allocation1 [shape = 'u32[144,128]{1,0:T(1,128)}', space=vmem, size = 0x12000, scoped, tag = 'internal scratch']
  %s0 = inlined_call_operand.vmem [shape: bf16[512,128], index: 0, kind: input, shape index: {}]
  %s1 = inlined_call_operand.vmem [shape: bf16[128,128], index: 1, kind: input, shape index: {}]
  %s2 = inlined_call_operand.vmem [shape: f32[1,128], index: 2, kind: input, shape index: {}]
  %s3 = inlined_call_operand.vmem [shape: f32[1,128], index: 3, kind: input, shape index: {}]
  %s4 = inlined_call_operand.vmem [shape: bf16[512,128], index: 4, kind: output, shape index: {}]
  %s5 = sld [smem:[#allocation0]]
  $region26: #{convblock_forward.5} parent=0
    _
  %s7 = ssub.s32 1, %s5
  %s8 = scalar_select 0, %s7, %s5
  // Predicated region
  $region2: #{convblock_forward.5} parent=0 // pred_check
    _
  $region3: #{convblock_forward.5} parent=0 // pred_check_branch
    %10 = sbr.rel (0) target = $region5
  $region4: #{convblock_forward.5} parent=0 // pred_region
    _
  $region5: #{convblock_forward.5} parent=0 // pred_fallthru
    _
  // Predicated region
  $region6: #{convblock_forward.5} parent=0 // pred_check
    _
  $region7: #{convblock_forward.5} parent=0 // pred_check_branch
    %12 = sbr.rel (0) target = $region9
  $region8: #{convblock_forward.5} parent=0 // pred_region
    _
  $region9: #{convblock_forward.5} parent=0 // pred_fallthru
    _
  // Predicated region
  $region10: #{convblock_forward.5} parent=0 // pred_check
    _
  $region11: #{convblock_forward.5} parent=0 // pred_check_branch
    %14 = sbr.rel (0) target = $region13
  $region12: #{convblock_forward.5} parent=0 // pred_region
    _
  $region13: #{convblock_forward.5} parent=0 // pred_fallthru
    _
  // Predicated region
  $region14: #{convblock_forward.5} parent=0 // pred_check
    _
  $region15: #{convblock_forward.5} parent=0 // pred_check_branch
    %16 = sbr.rel (0) target = $region17
  $region16: #{convblock_forward.5} parent=0 // pred_region
    _
  $region17: #{convblock_forward.5} parent=0 // pred_fallthru
    _
  %v18 = vld [vmem:[%s0] sm:$0xf]
  %v19 = vld [vmem:[%s0 + $0x4] sm:$0xf]
  %v20 = vld [vmem:[%s0 + $0x8] sm:$0xf]
  %v21 = vld [vmem:[%s0 + $0xc] sm:$0xf]
  %v22 = vld [vmem:[%s0 + $0x10] sm:$0xf]
  %v23 = vld [vmem:[%s0 + $0x14] sm:$0xf]
  %v24 = vld [vmem:[%s0 + $0x18] sm:$0xf]
  %v25 = vld [vmem:[%s0 + $0x1c] sm:$0xf]
  %v26 = vld [vmem:[%s0 + $0x20] sm:$0xf]
  %v27 = vld [vmem:[%s0 + $0x24] sm:$0xf]
  %v28 = vld [vmem:[%s0 + $0x28] sm:$0xf]
  %v29 = vld [vmem:[%s0 + $0x2c] sm:$0xf]
  %v30 = vld [vmem:[%s0 + $0x30] sm:$0xf]
  %v31 = vld [vmem:[%s0 + $0x34] sm:$0xf]
  %v32 = vld [vmem:[%s0 + $0x38] sm:$0xf]
  %v33 = vld [vmem:[%s0 + $0x3c] sm:$0xf]
  %v34 = vld [vmem:[%s0 + $0x40] sm:$0xf]
  %v35 = vld [vmem:[%s0 + $0x44] sm:$0xf]
  %v36 = vld [vmem:[%s0 + $0x48] sm:$0xf]
  %v37 = vld [vmem:[%s0 + $0x4c] sm:$0xf]
  %v38 = vld [vmem:[%s0 + $0x50] sm:$0xf]
  %v39 = vld [vmem:[%s0 + $0x54] sm:$0xf]
  %v40 = vld [vmem:[%s0 + $0x58] sm:$0xf]
  %v41 = vld [vmem:[%s0 + $0x5c] sm:$0xf]
  %v42 = vld [vmem:[%s0 + $0x60] sm:$0xf]
  %v43 = vld [vmem:[%s0 + $0x64] sm:$0xf]
  %v44 = vld [vmem:[%s0 + $0x68] sm:$0xf]
  %v45 = vld [vmem:[%s0 + $0x6c] sm:$0xf]
  %v46 = vld [vmem:[%s0 + $0x70] sm:$0xf]
  %v47 = vld [vmem:[%s0 + $0x74] sm:$0xf]
  %v48 = vld [vmem:[%s0 + $0x78] sm:$0xf]
  %v49 = vld [vmem:[%s0 + $0x7c] sm:$0xf]
  %v50 = vld [vmem:[%s0 + $0x80] sm:$0xf]
  %v51 = vld [vmem:[%s0 + $0x84] sm:$0xf]
  %v52 = vld [vmem:[%s0 + $0x88] sm:$0xf]
  %v53 = vld [vmem:[%s0 + $0x8c] sm:$0xf]
  %v54 = vld [vmem:[%s0 + $0x90] sm:$0xf]
  %v55 = vld [vmem:[%s0 + $0x94] sm:$0xf]
  %v56 = vld [vmem:[%s0 + $0x98] sm:$0xf]
  %v57 = vld [vmem:[%s0 + $0x9c] sm:$0xf]
  %v58 = vld [vmem:[%s0 + $0xa0] sm:$0xf]
  %v59 = vld [vmem:[%s0 + $0xa4] sm:$0xf]
  %v60 = vld [vmem:[%s0 + $0xa8] sm:$0xf]
  %v61 = vld [vmem:[%s0 + $0xac] sm:$0xf]
  %v62 = vld [vmem:[%s0 + $0xb0] sm:$0xf]
  %v63 = vld [vmem:[%s0 + $0xb4] sm:$0xf]
  %v64 = vld [vmem:[%s0 + $0xb8] sm:$0xf]
  %v65 = vld [vmem:[%s0 + $0xbc] sm:$0xf]
  %v66 = vld [vmem:[%s0 + $0xc0] sm:$0xf]
  %v67 = vld [vmem:[%s0 + $0xc4] sm:$0xf]
  %v68 = vld [vmem:[%s0 + $0xc8] sm:$0xf]
  %v69 = vld [vmem:[%s0 + $0xcc] sm:$0xf]
  %v70 = vld [vmem:[%s0 + $0xd0] sm:$0xf]
  %v71 = vld [vmem:[%s0 + $0xd4] sm:$0xf]
  %v72 = vld [vmem:[%s0 + $0xd8] sm:$0xf]
  %v73 = vld [vmem:[%s0 + $0xdc] sm:$0xf]
  %v74 = vld [vmem:[%s0 + $0xe0] sm:$0xf]
  %v75 = vld [vmem:[%s0 + $0xe4] sm:$0xf]
  %v76 = vld [vmem:[%s0 + $0xe8] sm:$0xf]
  %v77 = vld [vmem:[%s0 + $0xec] sm:$0xf]
  %v78 = vld [vmem:[%s0 + $0xf0] sm:$0xf]
  %v79 = vld [vmem:[%s0 + $0xf4] sm:$0xf]
  %v80 = vld [vmem:[%s0 + $0xf8] sm:$0xf]
  %v81 = vld [vmem:[%s0 + $0xfc] sm:$0xf]
  %v82 = vld [vmem:[%s1] sm:$0xf]
  %v83 = vld [vmem:[%s1 + $0x4] sm:$0xf]
  %v84 = vld [vmem:[%s1 + $0x8] sm:$0xf]
  %v85 = vld [vmem:[%s1 + $0xc] sm:$0xf]
  %v86 = vld [vmem:[%s1 + $0x10] sm:$0xf]
  %v87 = vld [vmem:[%s1 + $0x14] sm:$0xf]
  %v88 = vld [vmem:[%s1 + $0x18] sm:$0xf]
  %v89 = vld [vmem:[%s1 + $0x1c] sm:$0xf]
  %v90 = vld [vmem:[%s1 + $0x20] sm:$0xf]
  %v91 = vld [vmem:[%s1 + $0x24] sm:$0xf]
  %v92 = vld [vmem:[%s1 + $0x28] sm:$0xf]
  %v93 = vld [vmem:[%s1 + $0x2c] sm:$0xf]
  %v94 = vld [vmem:[%s1 + $0x30] sm:$0xf]
  %v95 = vld [vmem:[%s1 + $0x34] sm:$0xf]
  %v96 = vld [vmem:[%s1 + $0x38] sm:$0xf]
  %v97 = vld [vmem:[%s1 + $0x3c] sm:$0xf]
  %v162 = vunpack.c.l.b16 %v18
  %v163 = vunpack.c.l.b16 %v19
  %v164 = vunpack.c.l.b16 %v20
  %v165 = vunpack.c.l.b16 %v21
  %v166 = vunpack.c.l.b16 %v22
  %v167 = vunpack.c.l.b16 %v23
  %v168 = vunpack.c.l.b16 %v24
  %v169 = vunpack.c.l.b16 %v25
  %v170 = vunpack.c.l.b16 %v26
  %v171 = vunpack.c.l.b16 %v27
  %v172 = vunpack.c.l.b16 %v28
  %v173 = vunpack.c.l.b16 %v29
  %v174 = vunpack.c.l.b16 %v30
  %v175 = vunpack.c.l.b16 %v31
  %v176 = vunpack.c.l.b16 %v32
  %v177 = vunpack.c.l.b16 %v33
  %v178 = vunpack.c.l.b16 %v34
  %v179 = vunpack.c.l.b16 %v35
  %v180 = vunpack.c.l.b16 %v36
  %v181 = vunpack.c.l.b16 %v37
  %v182 = vunpack.c.l.b16 %v38
  %v183 = vunpack.c.l.b16 %v39
  %v184 = vunpack.c.l.b16 %v40
  %v185 = vunpack.c.l.b16 %v41
  %v186 = vunpack.c.l.b16 %v42
  %v187 = vunpack.c.l.b16 %v43
  %v188 = vunpack.c.l.b16 %v44
  %v189 = vunpack.c.l.b16 %v45
  %v190 = vunpack.c.l.b16 %v46
  %v191 = vunpack.c.l.b16 %v47
  %v192 = vunpack.c.l.b16 %v48
  %v193 = vunpack.c.l.b16 %v49
  %v194 = vunpack.c.l.b16 %v50
  %v195 = vunpack.c.l.b16 %v51
  %v196 = vunpack.c.l.b16 %v52
  %v197 = vunpack.c.l.b16 %v53
  %v198 = vunpack.c.l.b16 %v54
  %v199 = vunpack.c.l.b16 %v55
  %v200 = vunpack.c.l.b16 %v56
  %v201 = vunpack.c.l.b16 %v57
  %v202 = vunpack.c.l.b16 %v58
  %v203 = vunpack.c.l.b16 %v59
  %v204 = vunpack.c.l.b16 %v60
  %v205 = vunpack.c.l.b16 %v61
  %v206 = vunpack.c.l.b16 %v62
  %v207 = vunpack.c.l.b16 %v63
  %v208 = vunpack.c.l.b16 %v64
  %v209 = vunpack.c.l.b16 %v65
  %v210 = vunpack.c.l.b16 %v66
  %v211 = vunpack.c.l.b16 %v67
  %v212 = vunpack.c.l.b16 %v68
  %v213 = vunpack.c.l.b16 %v69
  %v214 = vunpack.c.l.b16 %v70
  %v215 = vunpack.c.l.b16 %v71
  %v216 = vunpack.c.l.b16 %v72
  %v217 = vunpack.c.l.b16 %v73
  %v218 = vunpack.c.l.b16 %v74
  %v219 = vunpack.c.l.b16 %v75
  %v220 = vunpack.c.l.b16 %v76
  %v221 = vunpack.c.l.b16 %v77
  %v222 = vunpack.c.l.b16 %v78
  %v223 = vunpack.c.l.b16 %v79
  %v224 = vunpack.c.l.b16 %v80
  %v225 = vunpack.c.l.b16 %v81
  %v226 = vpack.c.b16 %v163, %v162
  %v227 = vpack.c.b16 %v165, %v164
  %v228 = vpack.c.b16 %v167, %v166
  %v229 = vpack.c.b16 %v169, %v168
  %v230 = vpack.c.b16 %v171, %v170
  %v231 = vpack.c.b16 %v173, %v172
  %v232 = vpack.c.b16 %v175, %v174
  %v233 = vpack.c.b16 %v177, %v176
  %v234 = vpack.c.b16 %v179, %v178
  %v235 = vpack.c.b16 %v181, %v180
  %v236 = vpack.c.b16 %v183, %v182
  %v237 = vpack.c.b16 %v185, %v184
  %v238 = vpack.c.b16 %v187, %v186
  %v239 = vpack.c.b16 %v189, %v188
  %v240 = vpack.c.b16 %v191, %v190
  %v241 = vpack.c.b16 %v193, %v192
  %v242 = vpack.c.b16 %v195, %v194
  %v243 = vpack.c.b16 %v197, %v196
  %v244 = vpack.c.b16 %v199, %v198
  %v245 = vpack.c.b16 %v201, %v200
  %v246 = vpack.c.b16 %v203, %v202
  %v247 = vpack.c.b16 %v205, %v204
  %v248 = vpack.c.b16 %v207, %v206
  %v249 = vpack.c.b16 %v209, %v208
  %v250 = vpack.c.b16 %v211, %v210
  %v251 = vpack.c.b16 %v213, %v212
  %v252 = vpack.c.b16 %v215, %v214
  %v253 = vpack.c.b16 %v217, %v216
  %v254 = vpack.c.b16 %v219, %v218
  %v255 = vpack.c.b16 %v221, %v220
  %v256 = vpack.c.b16 %v223, %v222
  %v257 = vpack.c.b16 %v225, %v224
  %v306 = vunpack.c.l.b16 %v82
  %v307 = vunpack.c.l.b16 %v83
  %v308 = vunpack.c.l.b16 %v84
  %v309 = vunpack.c.l.b16 %v85
  %v310 = vunpack.c.l.b16 %v86
  %v311 = vunpack.c.l.b16 %v87
  %v312 = vunpack.c.l.b16 %v88
  %v313 = vunpack.c.l.b16 %v89
  %v314 = vunpack.c.l.b16 %v90
  %v315 = vunpack.c.l.b16 %v91
  %v316 = vunpack.c.l.b16 %v92
  %v317 = vunpack.c.l.b16 %v93
  %v318 = vunpack.c.l.b16 %v94
  %v319 = vunpack.c.l.b16 %v95
  %v320 = vunpack.c.l.b16 %v96
  %v321 = vunpack.c.l.b16 %v97
  %v322 = vpack.c.b16 %v307, %v306
  %v323 = vpack.c.b16 %v309, %v308
  %v324 = vpack.c.b16 %v311, %v310
  %v325 = vpack.c.b16 %v313, %v312
  %v326 = vpack.c.b16 %v315, %v314
  %v327 = vpack.c.b16 %v317, %v316
  %v328 = vpack.c.b16 %v319, %v318
  %v329 = vpack.c.b16 %v321, %v320
  %338 = vmatprep.subr.bf16.mxu0 0
  %339 = vmatpush1.bf16.msra.mxu0 %v322
  %340 = vmatprep.subr.bf16.mxu0 0
  %341 = vmatpush1.bf16.msra.mxu0 %v323
  %342 = vmatprep.subr.bf16.mxu0 0
  %343 = vmatpush1.bf16.msra.mxu0 %v324
  %344 = vmatprep.subr.bf16.mxu0 0
  %345 = vmatpush1.bf16.msra.mxu0 %v325
  %346 = vmatprep.subr.bf16.mxu0 0
  %347 = vmatpush1.bf16.msra.mxu0 %v326
  %348 = vmatprep.subr.bf16.mxu0 0
  %349 = vmatpush1.bf16.msra.mxu0 %v327
  %350 = vmatprep.subr.bf16.mxu0 0
  %351 = vmatpush1.bf16.msra.mxu0 %v328
  %352 = vmatprep.subr.bf16.mxu0 0
  %353 = vmatpush1.bf16.msra.mxu0 %v329
  %354 = vmatprep.subr.bf16.mxu0 0
  %355 = vmatpush1.bf16.msra.mxu0 0
  %356 = vmatprep.subr.bf16.mxu0 0
  %357 = vmatpush1.bf16.msra.mxu0 0
  %358 = vmatprep.subr.bf16.mxu0 0
  %359 = vmatpush1.bf16.msra.mxu0 0
  %360 = vmatprep.subr.bf16.mxu0 0
  %361 = vmatpush1.bf16.msra.mxu0 0
  %362 = vmatprep.subr.bf16.mxu0 0
  %363 = vmatpush1.bf16.msra.mxu0 0
  %364 = vmatprep.subr.bf16.mxu0 0
  %365 = vmatpush1.bf16.msra.mxu0 0
  %366 = vmatprep.subr.bf16.mxu0 0
  %367 = vmatpush1.bf16.msra.mxu0 0
  %368 = vmatprep.subr.bf16.mxu0 0
  %369 = vmatpush1.bf16.msra.mxu0 0
  %370 = vmatprep.mubr.bf16.mxu0 0
  %371 = vmatmul.mubr.bf16.gmra.mrb[0].mxu0 %v226
  %v372 = vpop.f32.mrb[0].mxu0
  %v373 = vadd.f32 0.0, %v372
  %v374 = vpop.f32.mrb[0].mxu0
  %v375 = vpop.f32.mrb[0].mxu0
  %v376 = vadd.f32 0.0, %v375
  %v377 = vpop.f32.mrb[0].mxu0
  %378 = vmatprep.mubr.bf16.mxu0 0
  %379 = vmatmul.mubr.bf16.gmra.mrb[0].mxu0 %v227
  %v380 = vpop.f32.mrb[0].mxu0
  %v381 = vadd.f32 0.0, %v380
  %v382 = vpop.f32.mrb[0].mxu0
  %v383 = vpop.f32.mrb[0].mxu0
  %v384 = vadd.f32 0.0, %v383
  %v385 = vpop.f32.mrb[0].mxu0
  %386 = vmatprep.mubr.bf16.mxu0 0
  %387 = vmatmul.mubr.bf16.gmra.mrb[0].mxu0 %v228
  %v388 = vpop.f32.mrb[0].mxu0
  %v389 = vadd.f32 0.0, %v388
  %v390 = vpop.f32.mrb[0].mxu0
  %v391 = vpop.f32.mrb[0].mxu0
  %v392 = vadd.f32 0.0, %v391
  %v393 = vpop.f32.mrb[0].mxu0
  %394 = vmatprep.mubr.bf16.mxu0 0
  %395 = vmatmul.mubr.bf16.gmra.mrb[0].mxu0 %v229
  %v396 = vpop.f32.mrb[0].mxu0
  %v397 = vadd.f32 0.0, %v396
  %v398 = vpop.f32.mrb[0].mxu0
  %v399 = vpop.f32.mrb[0].mxu0
  %v400 = vadd.f32 0.0, %v399
  %v401 = vpop.f32.mrb[0].mxu0
  %402 = vmatprep.mubr.bf16.mxu0 0
  %403 = vmatmul.mubr.bf16.gmra.mrb[0].mxu0 %v230
  %v404 = vpop.f32.mrb[0].mxu0
  %v405 = vadd.f32 0.0, %v404
  %v406 = vpop.f32.mrb[0].mxu0
  %v407 = vpop.f32.mrb[0].mxu0
  %v408 = vadd.f32 0.0, %v407
  %v409 = vpop.f32.mrb[0].mxu0
  %410 = vmatprep.mubr.bf16.mxu0 0
  %411 = vmatmul.mubr.bf16.gmra.mrb[0].mxu0 %v231
  %v412 = vpop.f32.mrb[0].mxu0
  %v413 = vadd.f32 0.0, %v412
  %v414 = vpop.f32.mrb[0].mxu0
  %v415 = vpop.f32.mrb[0].mxu0
  %v416 = vadd.f32 0.0, %v415
  %v417 = vpop.f32.mrb[0].mxu0
  %418 = vmatprep.mubr.bf16.mxu0 0
  %419 = vmatmul.mubr.bf16.gmra.mrb[0].mxu0 %v232
  %v420 = vpop.f32.mrb[0].mxu0
  %v421 = vadd.f32 0.0, %v420
  %v422 = vpop.f32.mrb[0].mxu0
  %v423 = vpop.f32.mrb[0].mxu0
  %v424 = vadd.f32 0.0, %v423
  %v425 = vpop.f32.mrb[0].mxu0
  %426 = vmatprep.mubr.bf16.mxu0 0
  %427 = vmatmul.mubr.bf16.gmra.mrb[0].mxu0 %v233
  %v428 = vpop.f32.mrb[0].mxu0
  %v429 = vadd.f32 0.0, %v428
  %v430 = vpop.f32.mrb[0].mxu0
  %v431 = vpop.f32.mrb[0].mxu0
  %v432 = vadd.f32 0.0, %v431
  %v433 = vpop.f32.mrb[0].mxu0
  %434 = vmatprep.mubr.bf16.mxu0 0
  %435 = vmatmul.mubr.bf16.gmra.mrb[0].mxu0 %v234
  %v436 = vpop.f32.mrb[0].mxu0
  %v437 = vadd.f32 0.0, %v436
  %v438 = vpop.f32.mrb[0].mxu0
  %v439 = vpop.f32.mrb[0].mxu0
  %v440 = vadd.f32 0.0, %v439
  %v441 = vpop.f32.mrb[0].mxu0
  %442 = vmatprep.mubr.bf16.mxu0 0
  %443 = vmatmul.mubr.bf16.gmra.mrb[0].mxu0 %v235
  %v444 = vpop.f32.mrb[0].mxu0
  %v445 = vadd.f32 0.0, %v444
  %v446 = vpop.f32.mrb[0].mxu0
  %v447 = vpop.f32.mrb[0].mxu0
  %v448 = vadd.f32 0.0, %v447
  %v449 = vpop.f32.mrb[0].mxu0
  %450 = vmatprep.mubr.bf16.mxu0 0
  %451 = vmatmul.mubr.bf16.gmra.mrb[0].mxu0 %v236
  %v452 = vpop.f32.mrb[0].mxu0
  %v453 = vadd.f32 0.0, %v452
  %v454 = vpop.f32.mrb[0].mxu0
  %v455 = vpop.f32.mrb[0].mxu0
  %v456 = vadd.f32 0.0, %v455
  %v457 = vpop.f32.mrb[0].mxu0
  %458 = vmatprep.mubr.bf16.mxu0 0
  %459 = vmatmul.mubr.bf16.gmra.mrb[0].mxu0 %v237
  %v460 = vpop.f32.mrb[0].mxu0
  %v461 = vadd.f32 0.0, %v460
  %v462 = vpop.f32.mrb[0].mxu0
  %v463 = vpop.f32.mrb[0].mxu0
  %v464 = vadd.f32 0.0, %v463
  %v465 = vpop.f32.mrb[0].mxu0
  %466 = vmatprep.mubr.bf16.mxu0 0
  %467 = vmatmul.mubr.bf16.gmra.mrb[0].mxu0 %v238
  %v468 = vpop.f32.mrb[0].mxu0
  %v469 = vadd.f32 0.0, %v468
  %v470 = vpop.f32.mrb[0].mxu0
  %v471 = vpop.f32.mrb[0].mxu0
  %v472 = vadd.f32 0.0, %v471
  %v473 = vpop.f32.mrb[0].mxu0
  %474 = vmatprep.mubr.bf16.mxu0 0
  %475 = vmatmul.mubr.bf16.gmra.mrb[0].mxu0 %v239
  %v476 = vpop.f32.mrb[0].mxu0
  %v477 = vadd.f32 0.0, %v476
  %v478 = vpop.f32.mrb[0].mxu0
  %v479 = vpop.f32.mrb[0].mxu0
  %v480 = vadd.f32 0.0, %v479
  %v481 = vpop.f32.mrb[0].mxu0
  %482 = vmatprep.mubr.bf16.mxu0 0
  %483 = vmatmul.mubr.bf16.gmra.mrb[0].mxu0 %v240
  %v484 = vpop.f32.mrb[0].mxu0
  %v485 = vadd.f32 0.0, %v484
  %v486 = vpop.f32.mrb[0].mxu0
  %v487 = vpop.f32.mrb[0].mxu0
  %v488 = vadd.f32 0.0, %v487
  %v489 = vpop.f32.mrb[0].mxu0
  %490 = vmatprep.mubr.bf16.mxu0 0
  %491 = vmatmul.mubr.bf16.gmra.mrb[0].mxu0 %v241
  %v492 = vpop.f32.mrb[0].mxu0
  %v493 = vadd.f32 0.0, %v492
  %v494 = vpop.f32.mrb[0].mxu0
  %v495 = vpop.f32.mrb[0].mxu0
  %v496 = vadd.f32 0.0, %v495
  %v497 = vpop.f32.mrb[0].mxu0
  %498 = vmatprep.mubr.bf16.mxu0 0
  %499 = vmatmul.mubr.bf16.gmra.mrb[0].mxu0 %v242
  %v500 = vpop.f32.mrb[0].mxu0
  %v501 = vadd.f32 0.0, %v500
  %v502 = vpop.f32.mrb[0].mxu0
  %v503 = vpop.f32.mrb[0].mxu0
  %v504 = vadd.f32 0.0, %v503
  %v505 = vpop.f32.mrb[0].mxu0
  %506 = vmatprep.mubr.bf16.mxu0 0
  %507 = vmatmul.mubr.bf16.gmra.mrb[0].mxu0 %v243
  %v508 = vpop.f32.mrb[0].mxu0
  %v509 = vadd.f32 0.0, %v508
  %v510 = vpop.f32.mrb[0].mxu0
  %v511 = vpop.f32.mrb[0].mxu0
  %v512 = vadd.f32 0.0, %v511
  %v513 = vpop.f32.mrb[0].mxu0
  %514 = vmatprep.mubr.bf16.mxu0 0
  %515 = vmatmul.mubr.bf16.gmra.mrb[0].mxu0 %v244
  %v516 = vpop.f32.mrb[0].mxu0
  %v517 = vadd.f32 0.0, %v516
  %v518 = vpop.f32.mrb[0].mxu0
  %v519 = vpop.f32.mrb[0].mxu0
  %v520 = vadd.f32 0.0, %v519
  %v521 = vpop.f32.mrb[0].mxu0
  %522 = vmatprep.mubr.bf16.mxu0 0
  %523 = vmatmul.mubr.bf16.gmra.mrb[0].mxu0 %v245
  %v524 = vpop.f32.mrb[0].mxu0
  %v525 = vadd.f32 0.0, %v524
  %v526 = vpop.f32.mrb[0].mxu0
  %v527 = vpop.f32.mrb[0].mxu0
  %v528 = vadd.f32 0.0, %v527
  %v529 = vpop.f32.mrb[0].mxu0
  %530 = vmatprep.mubr.bf16.mxu0 0
  %531 = vmatmul.mubr.bf16.gmra.mrb[0].mxu0 %v246
  %v532 = vpop.f32.mrb[0].mxu0
  %v533 = vadd.f32 0.0, %v532
  %v534 = vpop.f32.mrb[0].mxu0
  %v535 = vpop.f32.mrb[0].mxu0
  %v536 = vadd.f32 0.0, %v535
  %v537 = vpop.f32.mrb[0].mxu0
  %538 = vmatprep.mubr.bf16.mxu0 0
  %539 = vmatmul.mubr.bf16.gmra.mrb[0].mxu0 %v247
  %v540 = vpop.f32.mrb[0].mxu0
  %v541 = vadd.f32 0.0, %v540
  %v542 = vpop.f32.mrb[0].mxu0
  %v543 = vpop.f32.mrb[0].mxu0
  %v544 = vadd.f32 0.0, %v543
  %v545 = vpop.f32.mrb[0].mxu0
  %546 = vmatprep.mubr.bf16.mxu0 0
  %547 = vmatmul.mubr.bf16.gmra.mrb[0].mxu0 %v248
  %v548 = vpop.f32.mrb[0].mxu0
  %v549 = vadd.f32 0.0, %v548
  %v550 = vpop.f32.mrb[0].mxu0
  %v551 = vpop.f32.mrb[0].mxu0
  %v552 = vadd.f32 0.0, %v551
  %v553 = vpop.f32.mrb[0].mxu0
  %554 = vmatprep.mubr.bf16.mxu0 0
  %555 = vmatmul.mubr.bf16.gmra.mrb[0].mxu0 %v249
  %v556 = vpop.f32.mrb[0].mxu0
  %v557 = vadd.f32 0.0, %v556
  %v558 = vpop.f32.mrb[0].mxu0
  %v559 = vpop.f32.mrb[0].mxu0
  %v560 = vadd.f32 0.0, %v559
  %v561 = vpop.f32.mrb[0].mxu0
  %562 = vmatprep.mubr.bf16.mxu0 0
  %563 = vmatmul.mubr.bf16.gmra.mrb[0].mxu0 %v250
  %v564 = vpop.f32.mrb[0].mxu0
  %v565 = vadd.f32 0.0, %v564
  %v566 = vpop.f32.mrb[0].mxu0
  %v567 = vpop.f32.mrb[0].mxu0
  %v568 = vadd.f32 0.0, %v567
  %v569 = vpop.f32.mrb[0].mxu0
  %570 = vmatprep.mubr.bf16.mxu0 0
  %571 = vmatmul.mubr.bf16.gmra.mrb[0].mxu0 %v251
  %v572 = vpop.f32.mrb[0].mxu0
  %v573 = vadd.f32 0.0, %v572
  %v574 = vpop.f32.mrb[0].mxu0
  %v575 = vpop.f32.mrb[0].mxu0
  %v576 = vadd.f32 0.0, %v575
  %v577 = vpop.f32.mrb[0].mxu0
  %578 = vmatprep.mubr.bf16.mxu0 0
  %579 = vmatmul.mubr.bf16.gmra.mrb[0].mxu0 %v252
  %v580 = vpop.f32.mrb[0].mxu0
  %v581 = vadd.f32 0.0, %v580
  %v582 = vpop.f32.mrb[0].mxu0
  %v583 = vpop.f32.mrb[0].mxu0
  %v584 = vadd.f32 0.0, %v583
  %v585 = vpop.f32.mrb[0].mxu0
  %586 = vmatprep.mubr.bf16.mxu0 0
  %587 = vmatmul.mubr.bf16.gmra.mrb[0].mxu0 %v253
  %v588 = vpop.f32.mrb[0].mxu0
  %v589 = vadd.f32 0.0, %v588
  %v590 = vpop.f32.mrb[0].mxu0
  %v591 = vpop.f32.mrb[0].mxu0
  %v592 = vadd.f32 0.0, %v591
  %v593 = vpop.f32.mrb[0].mxu0
  %594 = vmatprep.mubr.bf16.mxu0 0
  %595 = vmatmul.mubr.bf16.gmra.mrb[0].mxu0 %v254
  %v596 = vpop.f32.mrb[0].mxu0
  %v597 = vadd.f32 0.0, %v596
  %v598 = vpop.f32.mrb[0].mxu0
  %v599 = vpop.f32.mrb[0].mxu0
  %v600 = vadd.f32 0.0, %v599
  %v601 = vpop.f32.mrb[0].mxu0
  %602 = vmatprep.mubr.bf16.mxu0 0
  %603 = vmatmul.mubr.bf16.gmra.mrb[0].mxu0 %v255
  %v604 = vpop.f32.mrb[0].mxu0
  %v605 = vadd.f32 0.0, %v604
  %v606 = vpop.f32.mrb[0].mxu0
  %v607 = vpop.f32.mrb[0].mxu0
  %v608 = vadd.f32 0.0, %v607
  %v609 = vpop.f32.mrb[0].mxu0
  %610 = vmatprep.mubr.bf16.mxu0 0
  %611 = vmatmul.mubr.bf16.gmra.mrb[0].mxu0 %v256
  %v612 = vpop.f32.mrb[0].mxu0
  %v613 = vadd.f32 0.0, %v612
  %v614 = vpop.f32.mrb[0].mxu0
  %v615 = vpop.f32.mrb[0].mxu0
  %v616 = vadd.f32 0.0, %v615
  %v617 = vpop.f32.mrb[0].mxu0
  %618 = vmatprep.mubr.bf16.mxu0 0
  %619 = vmatmul.mubr.bf16.gmra.mrb[0].mxu0 %v257
  %v620 = vpop.f32.mrb[0].mxu0
  %v621 = vadd.f32 0.0, %v620
  %v622 = vpop.f32.mrb[0].mxu0
  %v623 = vpop.f32.mrb[0].mxu0
  %v624 = vadd.f32 0.0, %v623
  %v625 = vpop.f32.mrb[0].mxu0
  %626 = vdwg.mxu0
  %v627 = vld [vmem:[%s2] sm:$0x1]
  %v629 = vlaneseq
  %v630 = vshrl.u32 %v629, 7
  %v631 = vsub.s32 0, %v630
  %v632 = vrot.slane %v627, %v631
  %v634 = vmul.f32 %v373, %v632
  %v635 = vmul.f32 %v376, %v632
  %v636 = vmul.f32 %v381, %v632
  %v637 = vmul.f32 %v384, %v632
  %v638 = vmul.f32 %v389, %v632
  %v639 = vmul.f32 %v392, %v632
  %v640 = vmul.f32 %v397, %v632
  %v641 = vmul.f32 %v400, %v632
  %v642 = vmul.f32 %v405, %v632
  %v643 = vmul.f32 %v408, %v632
  %v644 = vmul.f32 %v413, %v632
  %v645 = vmul.f32 %v416, %v632
  %v646 = vmul.f32 %v421, %v632
  %v647 = vmul.f32 %v424, %v632
  %v648 = vmul.f32 %v429, %v632
  %v649 = vmul.f32 %v432, %v632
  %v650 = vmul.f32 %v437, %v632
  %v651 = vmul.f32 %v440, %v632
  %v652 = vmul.f32 %v445, %v632
  %v653 = vmul.f32 %v448, %v632
  %v654 = vmul.f32 %v453, %v632
  %v655 = vmul.f32 %v456, %v632
  %v656 = vmul.f32 %v461, %v632
  %v657 = vmul.f32 %v464, %v632
  %v658 = vmul.f32 %v469, %v632
  %v659 = vmul.f32 %v472, %v632
  %v660 = vmul.f32 %v477, %v632
  %v661 = vmul.f32 %v480, %v632
  %v662 = vmul.f32 %v485, %v632
  %v663 = vmul.f32 %v488, %v632
  %v664 = vmul.f32 %v493, %v632
  %v665 = vmul.f32 %v496, %v632
  %v666 = vmul.f32 %v501, %v632
  %v667 = vmul.f32 %v504, %v632
  %v668 = vmul.f32 %v509, %v632
  %v669 = vmul.f32 %v512, %v632
  %v670 = vmul.f32 %v517, %v632
  %v671 = vmul.f32 %v520, %v632
  %v672 = vmul.f32 %v525, %v632
  %v673 = vmul.f32 %v528, %v632
  %v674 = vmul.f32 %v533, %v632
  %v675 = vmul.f32 %v536, %v632
  %v676 = vmul.f32 %v541, %v632
  %v677 = vmul.f32 %v544, %v632
  %v678 = vmul.f32 %v549, %v632
  %v679 = vmul.f32 %v552, %v632
  %v680 = vmul.f32 %v557, %v632
  %v681 = vmul.f32 %v560, %v632
  %v682 = vmul.f32 %v565, %v632
  %v683 = vmul.f32 %v568, %v632
  %v684 = vmul.f32 %v573, %v632
  %v685 = vmul.f32 %v576, %v632
  %v686 = vmul.f32 %v581, %v632
  %v687 = vmul.f32 %v584, %v632
  %v688 = vmul.f32 %v589, %v632
  %v689 = vmul.f32 %v592, %v632
  %v690 = vmul.f32 %v597, %v632
  %v691 = vmul.f32 %v600, %v632
  %v692 = vmul.f32 %v605, %v632
  %v693 = vmul.f32 %v608, %v632
  %v694 = vmul.f32 %v613, %v632
  %v695 = vmul.f32 %v616, %v632
  %v696 = vmul.f32 %v621, %v632
  %v697 = vmul.f32 %v624, %v632
  %v698 = vld [vmem:[%s3] sm:$0x1]
  %v700 = vlaneseq
  %v701 = vshrl.u32 %v700, 7
  %v702 = vsub.s32 0, %v701
  %v703 = vrot.slane %v698, %v702
  %v705 = vadd.f32 %v634, %v703
  %v706 = vadd.f32 %v635, %v703
  %v707 = vadd.f32 %v636, %v703
  %v708 = vadd.f32 %v637, %v703
  %v709 = vadd.f32 %v638, %v703
  %v710 = vadd.f32 %v639, %v703
  %v711 = vadd.f32 %v640, %v703
  %v712 = vadd.f32 %v641, %v703
  %v713 = vadd.f32 %v642, %v703
  %v714 = vadd.f32 %v643, %v703
  %v715 = vadd.f32 %v644, %v703
  %v716 = vadd.f32 %v645, %v703
  %v717 = vadd.f32 %v646, %v703
  %v718 = vadd.f32 %v647, %v703
  %v719 = vadd.f32 %v648, %v703
  %v720 = vadd.f32 %v649, %v703
  %v721 = vadd.f32 %v650, %v703
  %v722 = vadd.f32 %v651, %v703
  %v723 = vadd.f32 %v652, %v703
  %v724 = vadd.f32 %v653, %v703
  %v725 = vadd.f32 %v654, %v703
  %v726 = vadd.f32 %v655, %v703
  %v727 = vadd.f32 %v656, %v703
  %v728 = vadd.f32 %v657, %v703
  %v729 = vadd.f32 %v658, %v703
  %v730 = vadd.f32 %v659, %v703
  %v731 = vadd.f32 %v660, %v703
  %v732 = vadd.f32 %v661, %v703
  %v733 = vadd.f32 %v662, %v703
  %v734 = vadd.f32 %v663, %v703
  %v735 = vadd.f32 %v664, %v703
  %v736 = vadd.f32 %v665, %v703
  %v737 = vadd.f32 %v666, %v703
  %v738 = vadd.f32 %v667, %v703
  %v739 = vadd.f32 %v668, %v703
  %v740 = vadd.f32 %v669, %v703
  %v741 = vadd.f32 %v670, %v703
  %v742 = vadd.f32 %v671, %v703
  %v743 = vadd.f32 %v672, %v703
  %v744 = vadd.f32 %v673, %v703
  %v745 = vadd.f32 %v674, %v703
  %v746 = vadd.f32 %v675, %v703
  %v747 = vadd.f32 %v676, %v703
  %v748 = vadd.f32 %v677, %v703
  %v749 = vadd.f32 %v678, %v703
  %v750 = vadd.f32 %v679, %v703
  %v751 = vadd.f32 %v680, %v703
  %v752 = vadd.f32 %v681, %v703
  %v753 = vadd.f32 %v682, %v703
  %v754 = vadd.f32 %v683, %v703
  %v755 = vadd.f32 %v684, %v703
  %v756 = vadd.f32 %v685, %v703
  %v757 = vadd.f32 %v686, %v703
  %v758 = vadd.f32 %v687, %v703
  %v759 = vadd.f32 %v688, %v703
  %v760 = vadd.f32 %v689, %v703
  %v761 = vadd.f32 %v690, %v703
  %v762 = vadd.f32 %v691, %v703
  %v763 = vadd.f32 %v692, %v703
  %v764 = vadd.f32 %v693, %v703
  %v765 = vadd.f32 %v694, %v703
  %v766 = vadd.f32 %v695, %v703
  %v767 = vadd.f32 %v696, %v703
  %v768 = vadd.f32 %v697, %v703
  %v769 = vmul.f32 %v705, 0.5
  %v770 = vmul.f32 %v706, 0.5
  %v771 = vmul.f32 %v707, 0.5
  %v772 = vmul.f32 %v708, 0.5
  %v773 = vmul.f32 %v709, 0.5
  %v774 = vmul.f32 %v710, 0.5
  %v775 = vmul.f32 %v711, 0.5
  %v776 = vmul.f32 %v712, 0.5
  %v777 = vmul.f32 %v713, 0.5
  %v778 = vmul.f32 %v714, 0.5
  %v779 = vmul.f32 %v715, 0.5
  %v780 = vmul.f32 %v716, 0.5
  %v781 = vmul.f32 %v717, 0.5
  %v782 = vmul.f32 %v718, 0.5
  %v783 = vmul.f32 %v719, 0.5
  %v784 = vmul.f32 %v720, 0.5
  %v785 = vmul.f32 %v721, 0.5
  %v786 = vmul.f32 %v722, 0.5
  %v787 = vmul.f32 %v723, 0.5
  %v788 = vmul.f32 %v724, 0.5
  %v789 = vmul.f32 %v725, 0.5
  %v790 = vmul.f32 %v726, 0.5
  %v791 = vmul.f32 %v727, 0.5
  %v792 = vmul.f32 %v728, 0.5
  %v793 = vmul.f32 %v729, 0.5
  %v794 = vmul.f32 %v730, 0.5
  %v795 = vmul.f32 %v731, 0.5
  %v796 = vmul.f32 %v732, 0.5
  %v797 = vmul.f32 %v733, 0.5
  %v798 = vmul.f32 %v734, 0.5
  %v799 = vmul.f32 %v735, 0.5
  %v800 = vmul.f32 %v736, 0.5
  %v801 = vmul.f32 %v737, 0.5
  %v802 = vmul.f32 %v738, 0.5
  %v803 = vmul.f32 %v739, 0.5
  %v804 = vmul.f32 %v740, 0.5
  %v805 = vmul.f32 %v741, 0.5
  %v806 = vmul.f32 %v742, 0.5
  %v807 = vmul.f32 %v743, 0.5
  %v808 = vmul.f32 %v744, 0.5
  %v809 = vmul.f32 %v745, 0.5
  %v810 = vmul.f32 %v746, 0.5
  %v811 = vmul.f32 %v747, 0.5
  %v812 = vmul.f32 %v748, 0.5
  %v813 = vmul.f32 %v749, 0.5
  %v814 = vmul.f32 %v750, 0.5
  %v815 = vmul.f32 %v751, 0.5
  %v816 = vmul.f32 %v752, 0.5
  %v817 = vmul.f32 %v753, 0.5
  %v818 = vmul.f32 %v754, 0.5
  %v819 = vmul.f32 %v755, 0.5
  %v820 = vmul.f32 %v756, 0.5
  %v821 = vmul.f32 %v757, 0.5
  %v822 = vmul.f32 %v758, 0.5
  %v823 = vmul.f32 %v759, 0.5
  %v824 = vmul.f32 %v760, 0.5
  %v825 = vmul.f32 %v761, 0.5
  %v826 = vmul.f32 %v762, 0.5
  %v827 = vmul.f32 %v763, 0.5
  %v828 = vmul.f32 %v764, 0.5
  %v829 = vmul.f32 %v765, 0.5
  %v830 = vmul.f32 %v766, 0.5
  %v831 = vmul.f32 %v767, 0.5
  %v832 = vmul.f32 %v768, 0.5
  %v833 = vmul.f32 %v705, 0.70710677
  %v834 = vmul.f32 %v706, 0.70710677
  %v835 = vmul.f32 %v707, 0.70710677
  %v836 = vmul.f32 %v708, 0.70710677
  %v837 = vmul.f32 %v709, 0.70710677
  %v838 = vmul.f32 %v710, 0.70710677
  %v839 = vmul.f32 %v711, 0.70710677
  %v840 = vmul.f32 %v712, 0.70710677
  %v841 = vmul.f32 %v713, 0.70710677
  %v842 = vmul.f32 %v714, 0.70710677
  %v843 = vmul.f32 %v715, 0.70710677
  %v844 = vmul.f32 %v716, 0.70710677
  %v845 = vmul.f32 %v717, 0.70710677
  %v846 = vmul.f32 %v718, 0.70710677
  %v847 = vmul.f32 %v719, 0.70710677
  %v848 = vmul.f32 %v720, 0.70710677
  %v849 = vmul.f32 %v721, 0.70710677
  %v850 = vmul.f32 %v722, 0.70710677
  %v851 = vmul.f32 %v723, 0.70710677
  %v852 = vmul.f32 %v724, 0.70710677
  %v853 = vmul.f32 %v725, 0.70710677
  %v854 = vmul.f32 %v726, 0.70710677
  %v855 = vmul.f32 %v727, 0.70710677
  %v856 = vmul.f32 %v728, 0.70710677
  %v857 = vmul.f32 %v729, 0.70710677
  %v858 = vmul.f32 %v730, 0.70710677
  %v859 = vmul.f32 %v731, 0.70710677
  %v860 = vmul.f32 %v732, 0.70710677
  %v861 = vmul.f32 %v733, 0.70710677
  %v862 = vmul.f32 %v734, 0.70710677
  %v863 = vmul.f32 %v735, 0.70710677
  %v864 = vmul.f32 %v736, 0.70710677
  %v865 = vmul.f32 %v737, 0.70710677
  %v866 = vmul.f32 %v738, 0.70710677
  %v867 = vmul.f32 %v739, 0.70710677
  %v868 = vmul.f32 %v740, 0.70710677
  %v869 = vmul.f32 %v741, 0.70710677
  %v870 = vmul.f32 %v742, 0.70710677
  %v871 = vmul.f32 %v743, 0.70710677
  %v872 = vmul.f32 %v744, 0.70710677
  %v873 = vmul.f32 %v745, 0.70710677
  %v874 = vmul.f32 %v746, 0.70710677
  %v875 = vmul.f32 %v747, 0.70710677
  %v876 = vmul.f32 %v748, 0.70710677
  %v877 = vmul.f32 %v749, 0.70710677
  %v878 = vmul.f32 %v750, 0.70710677
  %v879 = vmul.f32 %v751, 0.70710677
  %v880 = vmul.f32 %v752, 0.70710677
  %v881 = vmul.f32 %v753, 0.70710677
  %v882 = vmul.f32 %v754, 0.70710677
  %v883 = vmul.f32 %v755, 0.70710677
  %v884 = vmul.f32 %v756, 0.70710677
  %v885 = vmul.f32 %v757, 0.70710677
  %v886 = vmul.f32 %v758, 0.70710677
  %v887 = vmul.f32 %v759, 0.70710677
  %v888 = vmul.f32 %v760, 0.70710677
  %v889 = vmul.f32 %v761, 0.70710677
  %v890 = vmul.f32 %v762, 0.70710677
  %v891 = vmul.f32 %v763, 0.70710677
  %v892 = vmul.f32 %v764, 0.70710677
  %v893 = vmul.f32 %v765, 0.70710677
  %v894 = vmul.f32 %v766, 0.70710677
  %v895 = vmul.f32 %v767, 0.70710677
  %v896 = vmul.f32 %v768, 0.70710677
  %v897 = verf.f32.pop %v833
  %v898 = verf.f32.pop %v834
  %v899 = verf.f32.pop %v835
  %v900 = verf.f32.pop %v836
  %v901 = verf.f32.pop %v837
  %v902 = verf.f32.pop %v838
  %v903 = verf.f32.pop %v839
  %v904 = verf.f32.pop %v840
  %v905 = verf.f32.pop %v841
  %v906 = verf.f32.pop %v842
  %v907 = verf.f32.pop %v843
  %v908 = verf.f32.pop %v844
  %v909 = verf.f32.pop %v845
  %v910 = verf.f32.pop %v846
  %v911 = verf.f32.pop %v847
  %v912 = verf.f32.pop %v848
  %v913 = verf.f32.pop %v849
  %v914 = verf.f32.pop %v850
  %v915 = verf.f32.pop %v851
  %v916 = verf.f32.pop %v852
  %v917 = verf.f32.pop %v853
  %v918 = verf.f32.pop %v854
  %v919 = verf.f32.pop %v855
  %v920 = verf.f32.pop %v856
  %v921 = verf.f32.pop %v857
  %v922 = verf.f32.pop %v858
  %v923 = verf.f32.pop %v859
  %v924 = verf.f32.pop %v860
  %v925 = verf.f32.pop %v861
  %v926 = verf.f32.pop %v862
  %v927 = verf.f32.pop %v863
  %v928 = verf.f32.pop %v864
  %v929 = verf.f32.pop %v865
  %v930 = verf.f32.pop %v866
  %v931 = verf.f32.pop %v867
  %v932 = verf.f32.pop %v868
  %v933 = verf.f32.pop %v869
  %v934 = verf.f32.pop %v870
  %v935 = verf.f32.pop %v871
  %v936 = verf.f32.pop %v872
  %v937 = verf.f32.pop %v873
  %v938 = verf.f32.pop %v874
  %v939 = verf.f32.pop %v875
  %v940 = verf.f32.pop %v876
  %v941 = verf.f32.pop %v877
  %v942 = verf.f32.pop %v878
  %v943 = verf.f32.pop %v879
  %v944 = verf.f32.pop %v880
  %v945 = verf.f32.pop %v881
  %v946 = verf.f32.pop %v882
  %v947 = verf.f32.pop %v883
  %v948 = verf.f32.pop %v884
  %v949 = verf.f32.pop %v885
  %v950 = verf.f32.pop %v886
  %v951 = verf.f32.pop %v887
  %v952 = verf.f32.pop %v888
  %v953 = verf.f32.pop %v889
  %v954 = verf.f32.pop %v890
  %v955 = verf.f32.pop %v891
  %v956 = verf.f32.pop %v892
  %v957 = verf.f32.pop %v893
  %v958 = verf.f32.pop %v894
  %v959 = verf.f32.pop %v895
  %v960 = verf.f32.pop %v896
  %v961 = vadd.f32 %v897, 1.0
  %v962 = vadd.f32 %v898, 1.0
  %v963 = vadd.f32 %v899, 1.0
  %v964 = vadd.f32 %v900, 1.0
  %v965 = vadd.f32 %v901, 1.0
  %v966 = vadd.f32 %v902, 1.0
  %v967 = vadd.f32 %v903, 1.0
  %v968 = vadd.f32 %v904, 1.0
  %v969 = vadd.f32 %v905, 1.0
  %v970 = vadd.f32 %v906, 1.0
  %v971 = vadd.f32 %v907, 1.0
  %v972 = vadd.f32 %v908, 1.0
  %v973 = vadd.f32 %v909, 1.0
  %v974 = vadd.f32 %v910, 1.0
  %v975 = vadd.f32 %v911, 1.0
  %v976 = vadd.f32 %v912, 1.0
  %v977 = vadd.f32 %v913, 1.0
  %v978 = vadd.f32 %v914, 1.0
  %v979 = vadd.f32 %v915, 1.0
  %v980 = vadd.f32 %v916, 1.0
  %v981 = vadd.f32 %v917, 1.0
  %v982 = vadd.f32 %v918, 1.0
  %v983 = vadd.f32 %v919, 1.0
  %v984 = vadd.f32 %v920, 1.0
  %v985 = vadd.f32 %v921, 1.0
  %v986 = vadd.f32 %v922, 1.0
  %v987 = vadd.f32 %v923, 1.0
  %v988 = vadd.f32 %v924, 1.0
  %v989 = vadd.f32 %v925, 1.0
  %v990 = vadd.f32 %v926, 1.0
  %v991 = vadd.f32 %v927, 1.0
  %v992 = vadd.f32 %v928, 1.0
  %v993 = vadd.f32 %v929, 1.0
  %v994 = vadd.f32 %v930, 1.0
  %v995 = vadd.f32 %v931, 1.0
  %v996 = vadd.f32 %v932, 1.0
  %v997 = vadd.f32 %v933, 1.0
  %v998 = vadd.f32 %v934, 1.0
  %v999 = vadd.f32 %v935, 1.0
  %v1000 = vadd.f32 %v936, 1.0
  %v1001 = vadd.f32 %v937, 1.0
  %v1002 = vadd.f32 %v938, 1.0
  %v1003 = vadd.f32 %v939, 1.0
  %v1004 = vadd.f32 %v940, 1.0
  %v1005 = vadd.f32 %v941, 1.0
  %v1006 = vadd.f32 %v942, 1.0
  %v1007 = vadd.f32 %v943, 1.0
  %v1008 = vadd.f32 %v944, 1.0
  %v1009 = vadd.f32 %v945, 1.0
  %v1010 = vadd.f32 %v946, 1.0
  %v1011 = vadd.f32 %v947, 1.0
  %v1012 = vadd.f32 %v948, 1.0
  %v1013 = vadd.f32 %v949, 1.0
  %v1014 = vadd.f32 %v950, 1.0
  %v1015 = vadd.f32 %v951, 1.0
  %v1016 = vadd.f32 %v952, 1.0
  %v1017 = vadd.f32 %v953, 1.0
  %v1018 = vadd.f32 %v954, 1.0
  %v1019 = vadd.f32 %v955, 1.0
  %v1020 = vadd.f32 %v956, 1.0
  %v1021 = vadd.f32 %v957, 1.0
  %v1022 = vadd.f32 %v958, 1.0
  %v1023 = vadd.f32 %v959, 1.0
  %v1024 = vadd.f32 %v960, 1.0
  %v1025 = vmul.f32 %v769, %v961
  %v1026 = vmul.f32 %v770, %v962
  %v1027 = vmul.f32 %v771, %v963
  %v1028 = vmul.f32 %v772, %v964
  %v1029 = vmul.f32 %v773, %v965
  %v1030 = vmul.f32 %v774, %v966
  %v1031 = vmul.f32 %v775, %v967
  %v1032 = vmul.f32 %v776, %v968
  %v1033 = vmul.f32 %v777, %v969
  %v1034 = vmul.f32 %v778, %v970
  %v1035 = vmul.f32 %v779, %v971
  %v1036 = vmul.f32 %v780, %v972
  %v1037 = vmul.f32 %v781, %v973
  %v1038 = vmul.f32 %v782, %v974
  %v1039 = vmul.f32 %v783, %v975
  %v1040 = vmul.f32 %v784, %v976
  %v1041 = vmul.f32 %v785, %v977
  %v1042 = vmul.f32 %v786, %v978
  %v1043 = vmul.f32 %v787, %v979
  %v1044 = vmul.f32 %v788, %v980
  %v1045 = vmul.f32 %v789, %v981
  %v1046 = vmul.f32 %v790, %v982
  %v1047 = vmul.f32 %v791, %v983
  %v1048 = vmul.f32 %v792, %v984
  %v1049 = vmul.f32 %v793, %v985
  %v1050 = vmul.f32 %v794, %v986
  %v1051 = vmul.f32 %v795, %v987
  %v1052 = vmul.f32 %v796, %v988
  %v1053 = vmul.f32 %v797, %v989
  %v1054 = vmul.f32 %v798, %v990
  %v1055 = vmul.f32 %v799, %v991
  %v1056 = vmul.f32 %v800, %v992
  %v1057 = vmul.f32 %v801, %v993
  %v1058 = vmul.f32 %v802, %v994
  %v1059 = vmul.f32 %v803, %v995
  %v1060 = vmul.f32 %v804, %v996
  %v1061 = vmul.f32 %v805, %v997
  %v1062 = vmul.f32 %v806, %v998
  %v1063 = vmul.f32 %v807, %v999
  %v1064 = vmul.f32 %v808, %v1000
  %v1065 = vmul.f32 %v809, %v1001
  %v1066 = vmul.f32 %v810, %v1002
  %v1067 = vmul.f32 %v811, %v1003
  %v1068 = vmul.f32 %v812, %v1004
  %v1069 = vmul.f32 %v813, %v1005
  %v1070 = vmul.f32 %v814, %v1006
  %v1071 = vmul.f32 %v815, %v1007
  %v1072 = vmul.f32 %v816, %v1008
  %v1073 = vmul.f32 %v817, %v1009
  %v1074 = vmul.f32 %v818, %v1010
  %v1075 = vmul.f32 %v819, %v1011
  %v1076 = vmul.f32 %v820, %v1012
  %v1077 = vmul.f32 %v821, %v1013
  %v1078 = vmul.f32 %v822, %v1014
  %v1079 = vmul.f32 %v823, %v1015
  %v1080 = vmul.f32 %v824, %v1016
  %v1081 = vmul.f32 %v825, %v1017
  %v1082 = vmul.f32 %v826, %v1018
  %v1083 = vmul.f32 %v827, %v1019
  %v1084 = vmul.f32 %v828, %v1020
  %v1085 = vmul.f32 %v829, %v1021
  %v1086 = vmul.f32 %v830, %v1022
  %v1087 = vmul.f32 %v831, %v1023
  %v1088 = vmul.f32 %v832, %v1024
  %v1089 = vpack.c.bf16 %v1026, %v1025
  %v1090 = vpack.c.bf16 %v1028, %v1027
  %v1091 = vpack.c.bf16 %v1030, %v1029
  %v1092 = vpack.c.bf16 %v1032, %v1031
  %v1093 = vpack.c.bf16 %v1034, %v1033
  %v1094 = vpack.c.bf16 %v1036, %v1035
  %v1095 = vpack.c.bf16 %v1038, %v1037
  %v1096 = vpack.c.bf16 %v1040, %v1039
  %v1097 = vpack.c.bf16 %v1042, %v1041
  %v1098 = vpack.c.bf16 %v1044, %v1043
  %v1099 = vpack.c.bf16 %v1046, %v1045
  %v1100 = vpack.c.bf16 %v1048, %v1047
  %v1101 = vpack.c.bf16 %v1050, %v1049
  %v1102 = vpack.c.bf16 %v1052, %v1051
  %v1103 = vpack.c.bf16 %v1054, %v1053
  %v1104 = vpack.c.bf16 %v1056, %v1055
  %v1105 = vpack.c.bf16 %v1058, %v1057
  %v1106 = vpack.c.bf16 %v1060, %v1059
  %v1107 = vpack.c.bf16 %v1062, %v1061
  %v1108 = vpack.c.bf16 %v1064, %v1063
  %v1109 = vpack.c.bf16 %v1066, %v1065
  %v1110 = vpack.c.bf16 %v1068, %v1067
  %v1111 = vpack.c.bf16 %v1070, %v1069
  %v1112 = vpack.c.bf16 %v1072, %v1071
  %v1113 = vpack.c.bf16 %v1074, %v1073
  %v1114 = vpack.c.bf16 %v1076, %v1075
  %v1115 = vpack.c.bf16 %v1078, %v1077
  %v1116 = vpack.c.bf16 %v1080, %v1079
  %v1117 = vpack.c.bf16 %v1082, %v1081
  %v1118 = vpack.c.bf16 %v1084, %v1083
  %v1119 = vpack.c.bf16 %v1086, %v1085
  %v1120 = vpack.c.bf16 %v1088, %v1087
  %v1153 = vunpack.c.l.b16 %v1089
  %v1154 = vunpack.c.h.b16 %v1089
  %v1155 = vunpack.c.l.b16 %v1090
  %v1156 = vunpack.c.h.b16 %v1090
  %v1157 = vunpack.c.l.b16 %v1091
  %v1158 = vunpack.c.h.b16 %v1091
  %v1159 = vunpack.c.l.b16 %v1092
  %v1160 = vunpack.c.h.b16 %v1092
  %v1161 = vunpack.c.l.b16 %v1093
  %v1162 = vunpack.c.h.b16 %v1093
  %v1163 = vunpack.c.l.b16 %v1094
  %v1164 = vunpack.c.h.b16 %v1094
  %v1165 = vunpack.c.l.b16 %v1095
  %v1166 = vunpack.c.h.b16 %v1095
  %v1167 = vunpack.c.l.b16 %v1096
  %v1168 = vunpack.c.h.b16 %v1096
  %v1169 = vunpack.c.l.b16 %v1097
  %v1170 = vunpack.c.h.b16 %v1097
  %v1171 = vunpack.c.l.b16 %v1098
  %v1172 = vunpack.c.h.b16 %v1098
  %v1173 = vunpack.c.l.b16 %v1099
  %v1174 = vunpack.c.h.b16 %v1099
  %v1175 = vunpack.c.l.b16 %v1100
  %v1176 = vunpack.c.h.b16 %v1100
  %v1177 = vunpack.c.l.b16 %v1101
  %v1178 = vunpack.c.h.b16 %v1101
  %v1179 = vunpack.c.l.b16 %v1102
  %v1180 = vunpack.c.h.b16 %v1102
  %v1181 = vunpack.c.l.b16 %v1103
  %v1182 = vunpack.c.h.b16 %v1103
  %v1183 = vunpack.c.l.b16 %v1104
  %v1184 = vunpack.c.h.b16 %v1104
  %v1185 = vunpack.c.l.b16 %v1105
  %v1186 = vunpack.c.h.b16 %v1105
  %v1187 = vunpack.c.l.b16 %v1106
  %v1188 = vunpack.c.h.b16 %v1106
  %v1189 = vunpack.c.l.b16 %v1107
  %v1190 = vunpack.c.h.b16 %v1107
  %v1191 = vunpack.c.l.b16 %v1108
  %v1192 = vunpack.c.h.b16 %v1108
  %v1193 = vunpack.c.l.b16 %v1109
  %v1194 = vunpack.c.h.b16 %v1109
  %v1195 = vunpack.c.l.b16 %v1110
  %v1196 = vunpack.c.h.b16 %v1110
  %v1197 = vunpack.c.l.b16 %v1111
  %v1198 = vunpack.c.h.b16 %v1111
  %v1199 = vunpack.c.l.b16 %v1112
  %v1200 = vunpack.c.h.b16 %v1112
  %v1201 = vunpack.c.l.b16 %v1113
  %v1202 = vunpack.c.h.b16 %v1113
  %v1203 = vunpack.c.l.b16 %v1114
  %v1204 = vunpack.c.h.b16 %v1114
  %v1205 = vunpack.c.l.b16 %v1115
  %v1206 = vunpack.c.h.b16 %v1115
  %v1207 = vunpack.c.l.b16 %v1116
  %v1208 = vunpack.c.h.b16 %v1116
  %v1209 = vunpack.c.l.b16 %v1117
  %v1210 = vunpack.c.h.b16 %v1117
  %v1211 = vunpack.c.l.b16 %v1118
  %v1212 = vunpack.c.h.b16 %v1118
  %v1213 = vunpack.c.l.b16 %v1119
  %v1214 = vunpack.c.h.b16 %v1119
  %v1215 = vunpack.c.l.b16 %v1120
  %v1216 = vunpack.c.h.b16 %v1120
  %v1217 = vpack.c.b16 %v1153, %v1153
  %v1218 = vpack.c.b16 %v1154, %v1154
  %v1219 = vpack.c.b16 %v1155, %v1155
  %v1220 = vpack.c.b16 %v1156, %v1156
  %v1221 = vpack.c.b16 %v1157, %v1157
  %v1222 = vpack.c.b16 %v1158, %v1158
  %v1223 = vpack.c.b16 %v1159, %v1159
  %v1224 = vpack.c.b16 %v1160, %v1160
  %v1225 = vpack.c.b16 %v1161, %v1161
  %v1226 = vpack.c.b16 %v1162, %v1162
  %v1227 = vpack.c.b16 %v1163, %v1163
  %v1228 = vpack.c.b16 %v1164, %v1164
  %v1229 = vpack.c.b16 %v1165, %v1165
  %v1230 = vpack.c.b16 %v1166, %v1166
  %v1231 = vpack.c.b16 %v1167, %v1167
  %v1232 = vpack.c.b16 %v1168, %v1168
  %v1233 = vpack.c.b16 %v1169, %v1169
  %v1234 = vpack.c.b16 %v1170, %v1170
  %v1235 = vpack.c.b16 %v1171, %v1171
  %v1236 = vpack.c.b16 %v1172, %v1172
  %v1237 = vpack.c.b16 %v1173, %v1173
  %v1238 = vpack.c.b16 %v1174, %v1174
  %v1239 = vpack.c.b16 %v1175, %v1175
  %v1240 = vpack.c.b16 %v1176, %v1176
  %v1241 = vpack.c.b16 %v1177, %v1177
  %v1242 = vpack.c.b16 %v1178, %v1178
  %v1243 = vpack.c.b16 %v1179, %v1179
  %v1244 = vpack.c.b16 %v1180, %v1180
  %v1245 = vpack.c.b16 %v1181, %v1181
  %v1246 = vpack.c.b16 %v1182, %v1182
  %v1247 = vpack.c.b16 %v1183, %v1183
  %v1248 = vpack.c.b16 %v1184, %v1184
  %v1249 = vpack.c.b16 %v1185, %v1185
  %v1250 = vpack.c.b16 %v1186, %v1186
  %v1251 = vpack.c.b16 %v1187, %v1187
  %v1252 = vpack.c.b16 %v1188, %v1188
  %v1253 = vpack.c.b16 %v1189, %v1189
  %v1254 = vpack.c.b16 %v1190, %v1190
  %v1255 = vpack.c.b16 %v1191, %v1191
  %v1256 = vpack.c.b16 %v1192, %v1192
  %v1257 = vpack.c.b16 %v1193, %v1193
  %v1258 = vpack.c.b16 %v1194, %v1194
  %v1259 = vpack.c.b16 %v1195, %v1195
  %v1260 = vpack.c.b16 %v1196, %v1196
  %v1261 = vpack.c.b16 %v1197, %v1197
  %v1262 = vpack.c.b16 %v1198, %v1198
  %v1263 = vpack.c.b16 %v1199, %v1199
  %v1264 = vpack.c.b16 %v1200, %v1200
  %v1265 = vpack.c.b16 %v1201, %v1201
  %v1266 = vpack.c.b16 %v1202, %v1202
  %v1267 = vpack.c.b16 %v1203, %v1203
  %v1268 = vpack.c.b16 %v1204, %v1204
  %v1269 = vpack.c.b16 %v1205, %v1205
  %v1270 = vpack.c.b16 %v1206, %v1206
  %v1271 = vpack.c.b16 %v1207, %v1207
  %v1272 = vpack.c.b16 %v1208, %v1208
  %v1273 = vpack.c.b16 %v1209, %v1209
  %v1274 = vpack.c.b16 %v1210, %v1210
  %v1275 = vpack.c.b16 %v1211, %v1211
  %v1276 = vpack.c.b16 %v1212, %v1212
  %v1277 = vpack.c.b16 %v1213, %v1213
  %v1278 = vpack.c.b16 %v1214, %v1214
  %v1279 = vpack.c.b16 %v1215, %v1215
  %v1280 = vpack.c.b16 %v1216, %v1216
  %1345 = vst [vmem:[%s4] sm:$0xf] %v1217
  %1346 = vst [vmem:[%s4 + $0x4] sm:$0xf] %v1218
  %1347 = vst [vmem:[%s4 + $0x8] sm:$0xf] %v1219
  %1348 = vst [vmem:[%s4 + $0xc] sm:$0xf] %v1220
  %1349 = vst [vmem:[%s4 + $0x10] sm:$0xf] %v1221
  %1350 = vst [vmem:[%s4 + $0x14] sm:$0xf] %v1222
  %1351 = vst [vmem:[%s4 + $0x18] sm:$0xf] %v1223
  %1352 = vst [vmem:[%s4 + $0x1c] sm:$0xf] %v1224
  %1353 = vst [vmem:[%s4 + $0x20] sm:$0xf] %v1225
  %1354 = vst [vmem:[%s4 + $0x24] sm:$0xf] %v1226
  %1355 = vst [vmem:[%s4 + $0x28] sm:$0xf] %v1227
  %1356 = vst [vmem:[%s4 + $0x2c] sm:$0xf] %v1228
  %1357 = vst [vmem:[%s4 + $0x30] sm:$0xf] %v1229
  %1358 = vst [vmem:[%s4 + $0x34] sm:$0xf] %v1230
  %1359 = vst [vmem:[%s4 + $0x38] sm:$0xf] %v1231
  %1360 = vst [vmem:[%s4 + $0x3c] sm:$0xf] %v1232
  %1361 = vst [vmem:[%s4 + $0x40] sm:$0xf] %v1233
  %1362 = vst [vmem:[%s4 + $0x44] sm:$0xf] %v1234
  %1363 = vst [vmem:[%s4 + $0x48] sm:$0xf] %v1235
  %1364 = vst [vmem:[%s4 + $0x4c] sm:$0xf] %v1236
  %1365 = vst [vmem:[%s4 + $0x50] sm:$0xf] %v1237
  %1366 = vst [vmem:[%s4 + $0x54] sm:$0xf] %v1238
  %1367 = vst [vmem:[%s4 + $0x58] sm:$0xf] %v1239
  %1368 = vst [vmem:[%s4 + $0x5c] sm:$0xf] %v1240
  %1369 = vst [vmem:[%s4 + $0x60] sm:$0xf] %v1241
  %1370 = vst [vmem:[%s4 + $0x64] sm:$0xf] %v1242
  %1371 = vst [vmem:[%s4 + $0x68] sm:$0xf] %v1243
  %1372 = vst [vmem:[%s4 + $0x6c] sm:$0xf] %v1244
  %1373 = vst [vmem:[%s4 + $0x70] sm:$0xf] %v1245
  %1374 = vst [vmem:[%s4 + $0x74] sm:$0xf] %v1246
  %1375 = vst [vmem:[%s4 + $0x78] sm:$0xf] %v1247
  %1376 = vst [vmem:[%s4 + $0x7c] sm:$0xf] %v1248
  %1377 = vst [vmem:[%s4 + $0x80] sm:$0xf] %v1249
  %1378 = vst [vmem:[%s4 + $0x84] sm:$0xf] %v1250
  %1379 = vst [vmem:[%s4 + $0x88] sm:$0xf] %v1251
  %1380 = vst [vmem:[%s4 + $0x8c] sm:$0xf] %v1252
  %1381 = vst [vmem:[%s4 + $0x90] sm:$0xf] %v1253
  %1382 = vst [vmem:[%s4 + $0x94] sm:$0xf] %v1254
  %1383 = vst [vmem:[%s4 + $0x98] sm:$0xf] %v1255
  %1384 = vst [vmem:[%s4 + $0x9c] sm:$0xf] %v1256
  %1385 = vst [vmem:[%s4 + $0xa0] sm:$0xf] %v1257
  %1386 = vst [vmem:[%s4 + $0xa4] sm:$0xf] %v1258
  %1387 = vst [vmem:[%s4 + $0xa8] sm:$0xf] %v1259
  %1388 = vst [vmem:[%s4 + $0xac] sm:$0xf] %v1260
  %1389 = vst [vmem:[%s4 + $0xb0] sm:$0xf] %v1261
  %1390 = vst [vmem:[%s4 + $0xb4] sm:$0xf] %v1262
  %1391 = vst [vmem:[%s4 + $0xb8] sm:$0xf] %v1263
  %1392 = vst [vmem:[%s4 + $0xbc] sm:$0xf] %v1264
  %1393 = vst [vmem:[%s4 + $0xc0] sm:$0xf] %v1265
  %1394 = vst [vmem:[%s4 + $0xc4] sm:$0xf] %v1266
  %1395 = vst [vmem:[%s4 + $0xc8] sm:$0xf] %v1267
  %1396 = vst [vmem:[%s4 + $0xcc] sm:$0xf] %v1268
  %1397 = vst [vmem:[%s4 + $0xd0] sm:$0xf] %v1269
  %1398 = vst [vmem:[%s4 + $0xd4] sm:$0xf] %v1270
  %1399 = vst [vmem:[%s4 + $0xd8] sm:$0xf] %v1271
  %1400 = vst [vmem:[%s4 + $0xdc] sm:$0xf] %v1272
  %1401 = vst [vmem:[%s4 + $0xe0] sm:$0xf] %v1273
  %1402 = vst [vmem:[%s4 + $0xe4] sm:$0xf] %v1274
  %1403 = vst [vmem:[%s4 + $0xe8] sm:$0xf] %v1275
  %1404 = vst [vmem:[%s4 + $0xec] sm:$0xf] %v1276
  %1405 = vst [vmem:[%s4 + $0xf0] sm:$0xf] %v1277
  %1406 = vst [vmem:[%s4 + $0xf4] sm:$0xf] %v1278
  %1407 = vst [vmem:[%s4 + $0xf8] sm:$0xf] %v1279
  %1408 = vst [vmem:[%s4 + $0xfc] sm:$0xf] %v1280
  // Predicated region
  $region18: #{convblock_forward.5} parent=0 // pred_check
    _
  $region19: #{convblock_forward.5} parent=0 // pred_check_branch
    %1410 = sbr.rel (0) target = $region21
  $region20: #{convblock_forward.5} parent=0 // pred_region
    _
  $region21: #{convblock_forward.5} parent=0 // pred_fallthru
    _
  // Predicated region
  $region22: #{convblock_forward.5} parent=0 // pred_check
    _
  $region23: #{convblock_forward.5} parent=0 // pred_check_branch
    %1412 = sbr.rel (0) target = $region25
  $region24: #{convblock_forward.5} parent=0 // pred_region
    _
  $region25: #{convblock_forward.5} parent=0 // pred_fallthru
    _

// kernel: convblock_forward.7
$region0: #{convblock_forward.7}
  #allocation0 [shape = 'u32[]', space=smem, size = 0x4, offset = 0x4, fixed_abs, tag = 'smem constant byte address 0x4 - core index']
  #allocation1 [shape = 'u32[144,128]{1,0:T(1,128)}', space=vmem, size = 0x12000, scoped, tag = 'internal scratch']
  %s0 = inlined_call_operand.vmem [shape: bf16[512,128], index: 0, kind: input, shape index: {}]
  %s1 = inlined_call_operand.vmem [shape: bf16[128,128], index: 1, kind: input, shape index: {}]
  %s2 = inlined_call_operand.vmem [shape: f32[1,128], index: 2, kind: input, shape index: {}]
  %s3 = inlined_call_operand.vmem [shape: f32[1,128], index: 3, kind: input, shape index: {}]
  %s4 = inlined_call_operand.vmem [shape: f32[512,128], index: 4, kind: output, shape index: {}]
  %s5 = sld [smem:[#allocation0]]
  $region26: #{convblock_forward.7} parent=0
    _
  %s7 = ssub.s32 1, %s5
  %s8 = scalar_select 0, %s7, %s5
  // Predicated region
  $region2: #{convblock_forward.7} parent=0 // pred_check
    _
  $region3: #{convblock_forward.7} parent=0 // pred_check_branch
    %10 = sbr.rel (0) target = $region5
  $region4: #{convblock_forward.7} parent=0 // pred_region
    _
  $region5: #{convblock_forward.7} parent=0 // pred_fallthru
    _
  // Predicated region
  $region6: #{convblock_forward.7} parent=0 // pred_check
    _
  $region7: #{convblock_forward.7} parent=0 // pred_check_branch
    %12 = sbr.rel (0) target = $region9
  $region8: #{convblock_forward.7} parent=0 // pred_region
    _
  $region9: #{convblock_forward.7} parent=0 // pred_fallthru
    _
  // Predicated region
  $region10: #{convblock_forward.7} parent=0 // pred_check
    _
  $region11: #{convblock_forward.7} parent=0 // pred_check_branch
    %14 = sbr.rel (0) target = $region13
  $region12: #{convblock_forward.7} parent=0 // pred_region
    _
  $region13: #{convblock_forward.7} parent=0 // pred_fallthru
    _
  // Predicated region
  $region14: #{convblock_forward.7} parent=0 // pred_check
    _
  $region15: #{convblock_forward.7} parent=0 // pred_check_branch
    %16 = sbr.rel (0) target = $region17
  $region16: #{convblock_forward.7} parent=0 // pred_region
    _
  $region17: #{convblock_forward.7} parent=0 // pred_fallthru
    _
  %v18 = vld [vmem:[%s0] sm:$0xf]
  %v19 = vld [vmem:[%s0 + $0x4] sm:$0xf]
  %v20 = vld [vmem:[%s0 + $0x8] sm:$0xf]
  %v21 = vld [vmem:[%s0 + $0xc] sm:$0xf]
  %v22 = vld [vmem:[%s0 + $0x10] sm:$0xf]
  %v23 = vld [vmem:[%s0 + $0x14] sm:$0xf]
  %v24 = vld [vmem:[%s0 + $0x18] sm:$0xf]
  %v25 = vld [vmem:[%s0 + $0x1c] sm:$0xf]
  %v26 = vld [vmem:[%s0 + $0x20] sm:$0xf]
  %v27 = vld [vmem:[%s0 + $0x24] sm:$0xf]
  %v28 = vld [vmem:[%s0 + $0x28] sm:$0xf]
  %v29 = vld [vmem:[%s0 + $0x2c] sm:$0xf]
  %v30 = vld [vmem:[%s0 + $0x30] sm:$0xf]
  %v31 = vld [vmem:[%s0 + $0x34] sm:$0xf]
  %v32 = vld [vmem:[%s0 + $0x38] sm:$0xf]
  %v33 = vld [vmem:[%s0 + $0x3c] sm:$0xf]
  %v34 = vld [vmem:[%s0 + $0x40] sm:$0xf]
  %v35 = vld [vmem:[%s0 + $0x44] sm:$0xf]
  %v36 = vld [vmem:[%s0 + $0x48] sm:$0xf]
  %v37 = vld [vmem:[%s0 + $0x4c] sm:$0xf]
  %v38 = vld [vmem:[%s0 + $0x50] sm:$0xf]
  %v39 = vld [vmem:[%s0 + $0x54] sm:$0xf]
  %v40 = vld [vmem:[%s0 + $0x58] sm:$0xf]
  %v41 = vld [vmem:[%s0 + $0x5c] sm:$0xf]
  %v42 = vld [vmem:[%s0 + $0x60] sm:$0xf]
  %v43 = vld [vmem:[%s0 + $0x64] sm:$0xf]
  %v44 = vld [vmem:[%s0 + $0x68] sm:$0xf]
  %v45 = vld [vmem:[%s0 + $0x6c] sm:$0xf]
  %v46 = vld [vmem:[%s0 + $0x70] sm:$0xf]
  %v47 = vld [vmem:[%s0 + $0x74] sm:$0xf]
  %v48 = vld [vmem:[%s0 + $0x78] sm:$0xf]
  %v49 = vld [vmem:[%s0 + $0x7c] sm:$0xf]
  %v50 = vld [vmem:[%s0 + $0x80] sm:$0xf]
  %v51 = vld [vmem:[%s0 + $0x84] sm:$0xf]
  %v52 = vld [vmem:[%s0 + $0x88] sm:$0xf]
  %v53 = vld [vmem:[%s0 + $0x8c] sm:$0xf]
  %v54 = vld [vmem:[%s0 + $0x90] sm:$0xf]
  %v55 = vld [vmem:[%s0 + $0x94] sm:$0xf]
  %v56 = vld [vmem:[%s0 + $0x98] sm:$0xf]
  %v57 = vld [vmem:[%s0 + $0x9c] sm:$0xf]
  %v58 = vld [vmem:[%s0 + $0xa0] sm:$0xf]
  %v59 = vld [vmem:[%s0 + $0xa4] sm:$0xf]
  %v60 = vld [vmem:[%s0 + $0xa8] sm:$0xf]
  %v61 = vld [vmem:[%s0 + $0xac] sm:$0xf]
  %v62 = vld [vmem:[%s0 + $0xb0] sm:$0xf]
  %v63 = vld [vmem:[%s0 + $0xb4] sm:$0xf]
  %v64 = vld [vmem:[%s0 + $0xb8] sm:$0xf]
  %v65 = vld [vmem:[%s0 + $0xbc] sm:$0xf]
  %v66 = vld [vmem:[%s0 + $0xc0] sm:$0xf]
  %v67 = vld [vmem:[%s0 + $0xc4] sm:$0xf]
  %v68 = vld [vmem:[%s0 + $0xc8] sm:$0xf]
  %v69 = vld [vmem:[%s0 + $0xcc] sm:$0xf]
  %v70 = vld [vmem:[%s0 + $0xd0] sm:$0xf]
  %v71 = vld [vmem:[%s0 + $0xd4] sm:$0xf]
  %v72 = vld [vmem:[%s0 + $0xd8] sm:$0xf]
  %v73 = vld [vmem:[%s0 + $0xdc] sm:$0xf]
  %v74 = vld [vmem:[%s0 + $0xe0] sm:$0xf]
  %v75 = vld [vmem:[%s0 + $0xe4] sm:$0xf]
  %v76 = vld [vmem:[%s0 + $0xe8] sm:$0xf]
  %v77 = vld [vmem:[%s0 + $0xec] sm:$0xf]
  %v78 = vld [vmem:[%s0 + $0xf0] sm:$0xf]
  %v79 = vld [vmem:[%s0 + $0xf4] sm:$0xf]
  %v80 = vld [vmem:[%s0 + $0xf8] sm:$0xf]
  %v81 = vld [vmem:[%s0 + $0xfc] sm:$0xf]
  %v82 = vld [vmem:[%s1] sm:$0xf]
  %v83 = vld [vmem:[%s1 + $0x4] sm:$0xf]
  %v84 = vld [vmem:[%s1 + $0x8] sm:$0xf]
  %v85 = vld [vmem:[%s1 + $0xc] sm:$0xf]
  %v86 = vld [vmem:[%s1 + $0x10] sm:$0xf]
  %v87 = vld [vmem:[%s1 + $0x14] sm:$0xf]
  %v88 = vld [vmem:[%s1 + $0x18] sm:$0xf]
  %v89 = vld [vmem:[%s1 + $0x1c] sm:$0xf]
  %v90 = vld [vmem:[%s1 + $0x20] sm:$0xf]
  %v91 = vld [vmem:[%s1 + $0x24] sm:$0xf]
  %v92 = vld [vmem:[%s1 + $0x28] sm:$0xf]
  %v93 = vld [vmem:[%s1 + $0x2c] sm:$0xf]
  %v94 = vld [vmem:[%s1 + $0x30] sm:$0xf]
  %v95 = vld [vmem:[%s1 + $0x34] sm:$0xf]
  %v96 = vld [vmem:[%s1 + $0x38] sm:$0xf]
  %v97 = vld [vmem:[%s1 + $0x3c] sm:$0xf]
  %v162 = vunpack.c.l.b16 %v18
  %v163 = vunpack.c.l.b16 %v19
  %v164 = vunpack.c.l.b16 %v20
  %v165 = vunpack.c.l.b16 %v21
  %v166 = vunpack.c.l.b16 %v22
  %v167 = vunpack.c.l.b16 %v23
  %v168 = vunpack.c.l.b16 %v24
  %v169 = vunpack.c.l.b16 %v25
  %v170 = vunpack.c.l.b16 %v26
  %v171 = vunpack.c.l.b16 %v27
  %v172 = vunpack.c.l.b16 %v28
  %v173 = vunpack.c.l.b16 %v29
  %v174 = vunpack.c.l.b16 %v30
  %v175 = vunpack.c.l.b16 %v31
  %v176 = vunpack.c.l.b16 %v32
  %v177 = vunpack.c.l.b16 %v33
  %v178 = vunpack.c.l.b16 %v34
  %v179 = vunpack.c.l.b16 %v35
  %v180 = vunpack.c.l.b16 %v36
  %v181 = vunpack.c.l.b16 %v37
  %v182 = vunpack.c.l.b16 %v38
  %v183 = vunpack.c.l.b16 %v39
  %v184 = vunpack.c.l.b16 %v40
  %v185 = vunpack.c.l.b16 %v41
  %v186 = vunpack.c.l.b16 %v42
  %v187 = vunpack.c.l.b16 %v43
  %v188 = vunpack.c.l.b16 %v44
  %v189 = vunpack.c.l.b16 %v45
  %v190 = vunpack.c.l.b16 %v46
  %v191 = vunpack.c.l.b16 %v47
  %v192 = vunpack.c.l.b16 %v48
  %v193 = vunpack.c.l.b16 %v49
  %v194 = vunpack.c.l.b16 %v50
  %v195 = vunpack.c.l.b16 %v51
  %v196 = vunpack.c.l.b16 %v52
  %v197 = vunpack.c.l.b16 %v53
  %v198 = vunpack.c.l.b16 %v54
  %v199 = vunpack.c.l.b16 %v55
  %v200 = vunpack.c.l.b16 %v56
  %v201 = vunpack.c.l.b16 %v57
  %v202 = vunpack.c.l.b16 %v58
  %v203 = vunpack.c.l.b16 %v59
  %v204 = vunpack.c.l.b16 %v60
  %v205 = vunpack.c.l.b16 %v61
  %v206 = vunpack.c.l.b16 %v62
  %v207 = vunpack.c.l.b16 %v63
  %v208 = vunpack.c.l.b16 %v64
  %v209 = vunpack.c.l.b16 %v65
  %v210 = vunpack.c.l.b16 %v66
  %v211 = vunpack.c.l.b16 %v67
  %v212 = vunpack.c.l.b16 %v68
  %v213 = vunpack.c.l.b16 %v69
  %v214 = vunpack.c.l.b16 %v70
  %v215 = vunpack.c.l.b16 %v71
  %v216 = vunpack.c.l.b16 %v72
  %v217 = vunpack.c.l.b16 %v73
  %v218 = vunpack.c.l.b16 %v74
  %v219 = vunpack.c.l.b16 %v75
  %v220 = vunpack.c.l.b16 %v76
  %v221 = vunpack.c.l.b16 %v77
  %v222 = vunpack.c.l.b16 %v78
  %v223 = vunpack.c.l.b16 %v79
  %v224 = vunpack.c.l.b16 %v80
  %v225 = vunpack.c.l.b16 %v81
  %v226 = vpack.c.b16 %v163, %v162
  %v227 = vpack.c.b16 %v165, %v164
  %v228 = vpack.c.b16 %v167, %v166
  %v229 = vpack.c.b16 %v169, %v168
  %v230 = vpack.c.b16 %v171, %v170
  %v231 = vpack.c.b16 %v173, %v172
  %v232 = vpack.c.b16 %v175, %v174
  %v233 = vpack.c.b16 %v177, %v176
  %v234 = vpack.c.b16 %v179, %v178
  %v235 = vpack.c.b16 %v181, %v180
  %v236 = vpack.c.b16 %v183, %v182
  %v237 = vpack.c.b16 %v185, %v184
  %v238 = vpack.c.b16 %v187, %v186
  %v239 = vpack.c.b16 %v189, %v188
  %v240 = vpack.c.b16 %v191, %v190
  %v241 = vpack.c.b16 %v193, %v192
  %v242 = vpack.c.b16 %v195, %v194
  %v243 = vpack.c.b16 %v197, %v196
  %v244 = vpack.c.b16 %v199, %v198
  %v245 = vpack.c.b16 %v201, %v200
  %v246 = vpack.c.b16 %v203, %v202
  %v247 = vpack.c.b16 %v205, %v204
  %v248 = vpack.c.b16 %v207, %v206
  %v249 = vpack.c.b16 %v209, %v208
  %v250 = vpack.c.b16 %v211, %v210
  %v251 = vpack.c.b16 %v213, %v212
  %v252 = vpack.c.b16 %v215, %v214
  %v253 = vpack.c.b16 %v217, %v216
  %v254 = vpack.c.b16 %v219, %v218
  %v255 = vpack.c.b16 %v221, %v220
  %v256 = vpack.c.b16 %v223, %v222
  %v257 = vpack.c.b16 %v225, %v224
  %v306 = vunpack.c.l.b16 %v82
  %v307 = vunpack.c.l.b16 %v83
  %v308 = vunpack.c.l.b16 %v84
  %v309 = vunpack.c.l.b16 %v85
  %v310 = vunpack.c.l.b16 %v86
  %v311 = vunpack.c.l.b16 %v87
  %v312 = vunpack.c.l.b16 %v88
  %v313 = vunpack.c.l.b16 %v89
  %v314 = vunpack.c.l.b16 %v90
  %v315 = vunpack.c.l.b16 %v91
  %v316 = vunpack.c.l.b16 %v92
  %v317 = vunpack.c.l.b16 %v93
  %v318 = vunpack.c.l.b16 %v94
  %v319 = vunpack.c.l.b16 %v95
  %v320 = vunpack.c.l.b16 %v96
  %v321 = vunpack.c.l.b16 %v97
  %v322 = vpack.c.b16 %v307, %v306
  %v323 = vpack.c.b16 %v309, %v308
  %v324 = vpack.c.b16 %v311, %v310
  %v325 = vpack.c.b16 %v313, %v312
  %v326 = vpack.c.b16 %v315, %v314
  %v327 = vpack.c.b16 %v317, %v316
  %v328 = vpack.c.b16 %v319, %v318
  %v329 = vpack.c.b16 %v321, %v320
  %338 = vmatprep.subr.bf16.mxu0 0
  %339 = vmatpush1.bf16.msra.mxu0 %v322
  %340 = vmatprep.subr.bf16.mxu0 0
  %341 = vmatpush1.bf16.msra.mxu0 %v323
  %342 = vmatprep.subr.bf16.mxu0 0
  %343 = vmatpush1.bf16.msra.mxu0 %v324
  %344 = vmatprep.subr.bf16.mxu0 0
  %345 = vmatpush1.bf16.msra.mxu0 %v325
  %346 = vmatprep.subr.bf16.mxu0 0
  %347 = vmatpush1.bf16.msra.mxu0 %v326
  %348 = vmatprep.subr.bf16.mxu0 0
  %349 = vmatpush1.bf16.msra.mxu0 %v327
  %350 = vmatprep.subr.bf16.mxu0 0
  %351 = vmatpush1.bf16.msra.mxu0 %v328
  %352 = vmatprep.subr.bf16.mxu0 0
  %353 = vmatpush1.bf16.msra.mxu0 %v329
  %354 = vmatprep.subr.bf16.mxu0 0
  %355 = vmatpush1.bf16.msra.mxu0 0
  %356 = vmatprep.subr.bf16.mxu0 0
  %357 = vmatpush1.bf16.msra.mxu0 0
  %358 = vmatprep.subr.bf16.mxu0 0
  %359 = vmatpush1.bf16.msra.mxu0 0
  %360 = vmatprep.subr.bf16.mxu0 0
  %361 = vmatpush1.bf16.msra.mxu0 0
  %362 = vmatprep.subr.bf16.mxu0 0
  %363 = vmatpush1.bf16.msra.mxu0 0
  %364 = vmatprep.subr.bf16.mxu0 0
  %365 = vmatpush1.bf16.msra.mxu0 0
  %366 = vmatprep.subr.bf16.mxu0 0
  %367 = vmatpush1.bf16.msra.mxu0 0
  %368 = vmatprep.subr.bf16.mxu0 0
  %369 = vmatpush1.bf16.msra.mxu0 0
  %370 = vmatprep.mubr.bf16.mxu0 0
  %371 = vmatmul.mubr.bf16.gmra.mrb[0].mxu0 %v226
  %v372 = vpop.f32.mrb[0].mxu0
  %v373 = vadd.f32 0.0, %v372
  %v374 = vpop.f32.mrb[0].mxu0
  %v375 = vpop.f32.mrb[0].mxu0
  %v376 = vadd.f32 0.0, %v375
  %v377 = vpop.f32.mrb[0].mxu0
  %378 = vmatprep.mubr.bf16.mxu0 0
  %379 = vmatmul.mubr.bf16.gmra.mrb[0].mxu0 %v227
  %v380 = vpop.f32.mrb[0].mxu0
  %v381 = vadd.f32 0.0, %v380
  %v382 = vpop.f32.mrb[0].mxu0
  %v383 = vpop.f32.mrb[0].mxu0
  %v384 = vadd.f32 0.0, %v383
  %v385 = vpop.f32.mrb[0].mxu0
  %386 = vmatprep.mubr.bf16.mxu0 0
  %387 = vmatmul.mubr.bf16.gmra.mrb[0].mxu0 %v228
  %v388 = vpop.f32.mrb[0].mxu0
  %v389 = vadd.f32 0.0, %v388
  %v390 = vpop.f32.mrb[0].mxu0
  %v391 = vpop.f32.mrb[0].mxu0
  %v392 = vadd.f32 0.0, %v391
  %v393 = vpop.f32.mrb[0].mxu0
  %394 = vmatprep.mubr.bf16.mxu0 0
  %395 = vmatmul.mubr.bf16.gmra.mrb[0].mxu0 %v229
  %v396 = vpop.f32.mrb[0].mxu0
  %v397 = vadd.f32 0.0, %v396
  %v398 = vpop.f32.mrb[0].mxu0
  %v399 = vpop.f32.mrb[0].mxu0
  %v400 = vadd.f32 0.0, %v399
  %v401 = vpop.f32.mrb[0].mxu0
  %402 = vmatprep.mubr.bf16.mxu0 0
  %403 = vmatmul.mubr.bf16.gmra.mrb[0].mxu0 %v230
  %v404 = vpop.f32.mrb[0].mxu0
  %v405 = vadd.f32 0.0, %v404
  %v406 = vpop.f32.mrb[0].mxu0
  %v407 = vpop.f32.mrb[0].mxu0
  %v408 = vadd.f32 0.0, %v407
  %v409 = vpop.f32.mrb[0].mxu0
  %410 = vmatprep.mubr.bf16.mxu0 0
  %411 = vmatmul.mubr.bf16.gmra.mrb[0].mxu0 %v231
  %v412 = vpop.f32.mrb[0].mxu0
  %v413 = vadd.f32 0.0, %v412
  %v414 = vpop.f32.mrb[0].mxu0
  %v415 = vpop.f32.mrb[0].mxu0
  %v416 = vadd.f32 0.0, %v415
  %v417 = vpop.f32.mrb[0].mxu0
  %418 = vmatprep.mubr.bf16.mxu0 0
  %419 = vmatmul.mubr.bf16.gmra.mrb[0].mxu0 %v232
  %v420 = vpop.f32.mrb[0].mxu0
  %v421 = vadd.f32 0.0, %v420
  %v422 = vpop.f32.mrb[0].mxu0
  %v423 = vpop.f32.mrb[0].mxu0
  %v424 = vadd.f32 0.0, %v423
  %v425 = vpop.f32.mrb[0].mxu0
  %426 = vmatprep.mubr.bf16.mxu0 0
  %427 = vmatmul.mubr.bf16.gmra.mrb[0].mxu0 %v233
  %v428 = vpop.f32.mrb[0].mxu0
  %v429 = vadd.f32 0.0, %v428
  %v430 = vpop.f32.mrb[0].mxu0
  %v431 = vpop.f32.mrb[0].mxu0
  %v432 = vadd.f32 0.0, %v431
  %v433 = vpop.f32.mrb[0].mxu0
  %434 = vmatprep.mubr.bf16.mxu0 0
  %435 = vmatmul.mubr.bf16.gmra.mrb[0].mxu0 %v234
  %v436 = vpop.f32.mrb[0].mxu0
  %v437 = vadd.f32 0.0, %v436
  %v438 = vpop.f32.mrb[0].mxu0
  %v439 = vpop.f32.mrb[0].mxu0
  %v440 = vadd.f32 0.0, %v439
  %v441 = vpop.f32.mrb[0].mxu0
  %442 = vmatprep.mubr.bf16.mxu0 0
  %443 = vmatmul.mubr.bf16.gmra.mrb[0].mxu0 %v235
  %v444 = vpop.f32.mrb[0].mxu0
  %v445 = vadd.f32 0.0, %v444
  %v446 = vpop.f32.mrb[0].mxu0
  %v447 = vpop.f32.mrb[0].mxu0
  %v448 = vadd.f32 0.0, %v447
  %v449 = vpop.f32.mrb[0].mxu0
  %450 = vmatprep.mubr.bf16.mxu0 0
  %451 = vmatmul.mubr.bf16.gmra.mrb[0].mxu0 %v236
  %v452 = vpop.f32.mrb[0].mxu0
  %v453 = vadd.f32 0.0, %v452
  %v454 = vpop.f32.mrb[0].mxu0
  %v455 = vpop.f32.mrb[0].mxu0
  %v456 = vadd.f32 0.0, %v455
  %v457 = vpop.f32.mrb[0].mxu0
  %458 = vmatprep.mubr.bf16.mxu0 0
  %459 = vmatmul.mubr.bf16.gmra.mrb[0].mxu0 %v237
  %v460 = vpop.f32.mrb[0].mxu0
  %v461 = vadd.f32 0.0, %v460
  %v462 = vpop.f32.mrb[0].mxu0
  %v463 = vpop.f32.mrb[0].mxu0
  %v464 = vadd.f32 0.0, %v463
  %v465 = vpop.f32.mrb[0].mxu0
  %466 = vmatprep.mubr.bf16.mxu0 0
  %467 = vmatmul.mubr.bf16.gmra.mrb[0].mxu0 %v238
  %v468 = vpop.f32.mrb[0].mxu0
  %v469 = vadd.f32 0.0, %v468
  %v470 = vpop.f32.mrb[0].mxu0
  %v471 = vpop.f32.mrb[0].mxu0
  %v472 = vadd.f32 0.0, %v471
  %v473 = vpop.f32.mrb[0].mxu0
  %474 = vmatprep.mubr.bf16.mxu0 0
  %475 = vmatmul.mubr.bf16.gmra.mrb[0].mxu0 %v239
  %v476 = vpop.f32.mrb[0].mxu0
  %v477 = vadd.f32 0.0, %v476
  %v478 = vpop.f32.mrb[0].mxu0
  %v479 = vpop.f32.mrb[0].mxu0
  %v480 = vadd.f32 0.0, %v479
  %v481 = vpop.f32.mrb[0].mxu0
  %482 = vmatprep.mubr.bf16.mxu0 0
  %483 = vmatmul.mubr.bf16.gmra.mrb[0].mxu0 %v240
  %v484 = vpop.f32.mrb[0].mxu0
  %v485 = vadd.f32 0.0, %v484
  %v486 = vpop.f32.mrb[0].mxu0
  %v487 = vpop.f32.mrb[0].mxu0
  %v488 = vadd.f32 0.0, %v487
  %v489 = vpop.f32.mrb[0].mxu0
  %490 = vmatprep.mubr.bf16.mxu0 0
  %491 = vmatmul.mubr.bf16.gmra.mrb[0].mxu0 %v241
  %v492 = vpop.f32.mrb[0].mxu0
  %v493 = vadd.f32 0.0, %v492
  %v494 = vpop.f32.mrb[0].mxu0
  %v495 = vpop.f32.mrb[0].mxu0
  %v496 = vadd.f32 0.0, %v495
  %v497 = vpop.f32.mrb[0].mxu0
  %498 = vmatprep.mubr.bf16.mxu0 0
  %499 = vmatmul.mubr.bf16.gmra.mrb[0].mxu0 %v242
  %v500 = vpop.f32.mrb[0].mxu0
  %v501 = vadd.f32 0.0, %v500
  %v502 = vpop.f32.mrb[0].mxu0
  %v503 = vpop.f32.mrb[0].mxu0
  %v504 = vadd.f32 0.0, %v503
  %v505 = vpop.f32.mrb[0].mxu0
  %506 = vmatprep.mubr.bf16.mxu0 0
  %507 = vmatmul.mubr.bf16.gmra.mrb[0].mxu0 %v243
  %v508 = vpop.f32.mrb[0].mxu0
  %v509 = vadd.f32 0.0, %v508
  %v510 = vpop.f32.mrb[0].mxu0
  %v511 = vpop.f32.mrb[0].mxu0
  %v512 = vadd.f32 0.0, %v511
  %v513 = vpop.f32.mrb[0].mxu0
  %514 = vmatprep.mubr.bf16.mxu0 0
  %515 = vmatmul.mubr.bf16.gmra.mrb[0].mxu0 %v244
  %v516 = vpop.f32.mrb[0].mxu0
  %v517 = vadd.f32 0.0, %v516
  %v518 = vpop.f32.mrb[0].mxu0
  %v519 = vpop.f32.mrb[0].mxu0
  %v520 = vadd.f32 0.0, %v519
  %v521 = vpop.f32.mrb[0].mxu0
  %522 = vmatprep.mubr.bf16.mxu0 0
  %523 = vmatmul.mubr.bf16.gmra.mrb[0].mxu0 %v245
  %v524 = vpop.f32.mrb[0].mxu0
  %v525 = vadd.f32 0.0, %v524
  %v526 = vpop.f32.mrb[0].mxu0
  %v527 = vpop.f32.mrb[0].mxu0
  %v528 = vadd.f32 0.0, %v527
  %v529 = vpop.f32.mrb[0].mxu0
  %530 = vmatprep.mubr.bf16.mxu0 0
  %531 = vmatmul.mubr.bf16.gmra.mrb[0].mxu0 %v246
  %v532 = vpop.f32.mrb[0].mxu0
  %v533 = vadd.f32 0.0, %v532
  %v534 = vpop.f32.mrb[0].mxu0
  %v535 = vpop.f32.mrb[0].mxu0
  %v536 = vadd.f32 0.0, %v535
  %v537 = vpop.f32.mrb[0].mxu0
  %538 = vmatprep.mubr.bf16.mxu0 0
  %539 = vmatmul.mubr.bf16.gmra.mrb[0].mxu0 %v247
  %v540 = vpop.f32.mrb[0].mxu0
  %v541 = vadd.f32 0.0, %v540
  %v542 = vpop.f32.mrb[0].mxu0
  %v543 = vpop.f32.mrb[0].mxu0
  %v544 = vadd.f32 0.0, %v543
  %v545 = vpop.f32.mrb[0].mxu0
  %546 = vmatprep.mubr.bf16.mxu0 0
  %547 = vmatmul.mubr.bf16.gmra.mrb[0].mxu0 %v248
  %v548 = vpop.f32.mrb[0].mxu0
  %v549 = vadd.f32 0.0, %v548
  %v550 = vpop.f32.mrb[0].mxu0
  %v551 = vpop.f32.mrb[0].mxu0
  %v552 = vadd.f32 0.0, %v551
  %v553 = vpop.f32.mrb[0].mxu0
  %554 = vmatprep.mubr.bf16.mxu0 0
  %555 = vmatmul.mubr.bf16.gmra.mrb[0].mxu0 %v249
  %v556 = vpop.f32.mrb[0].mxu0
  %v557 = vadd.f32 0.0, %v556
  %v558 = vpop.f32.mrb[0].mxu0
  %v559 = vpop.f32.mrb[0].mxu0
  %v560 = vadd.f32 0.0, %v559
  %v561 = vpop.f32.mrb[0].mxu0
  %562 = vmatprep.mubr.bf16.mxu0 0
  %563 = vmatmul.mubr.bf16.gmra.mrb[0].mxu0 %v250
  %v564 = vpop.f32.mrb[0].mxu0
  %v565 = vadd.f32 0.0, %v564
  %v566 = vpop.f32.mrb[0].mxu0
  %v567 = vpop.f32.mrb[0].mxu0
  %v568 = vadd.f32 0.0, %v567
  %v569 = vpop.f32.mrb[0].mxu0
  %570 = vmatprep.mubr.bf16.mxu0 0
  %571 = vmatmul.mubr.bf16.gmra.mrb[0].mxu0 %v251
  %v572 = vpop.f32.mrb[0].mxu0
  %v573 = vadd.f32 0.0, %v572
  %v574 = vpop.f32.mrb[0].mxu0
  %v575 = vpop.f32.mrb[0].mxu0
  %v576 = vadd.f32 0.0, %v575
  %v577 = vpop.f32.mrb[0].mxu0
  %578 = vmatprep.mubr.bf16.mxu0 0
  %579 = vmatmul.mubr.bf16.gmra.mrb[0].mxu0 %v252
  %v580 = vpop.f32.mrb[0].mxu0
  %v581 = vadd.f32 0.0, %v580
  %v582 = vpop.f32.mrb[0].mxu0
  %v583 = vpop.f32.mrb[0].mxu0
  %v584 = vadd.f32 0.0, %v583
  %v585 = vpop.f32.mrb[0].mxu0
  %586 = vmatprep.mubr.bf16.mxu0 0
  %587 = vmatmul.mubr.bf16.gmra.mrb[0].mxu0 %v253
  %v588 = vpop.f32.mrb[0].mxu0
  %v589 = vadd.f32 0.0, %v588
  %v590 = vpop.f32.mrb[0].mxu0
  %v591 = vpop.f32.mrb[0].mxu0
  %v592 = vadd.f32 0.0, %v591
  %v593 = vpop.f32.mrb[0].mxu0
  %594 = vmatprep.mubr.bf16.mxu0 0
  %595 = vmatmul.mubr.bf16.gmra.mrb[0].mxu0 %v254
  %v596 = vpop.f32.mrb[0].mxu0
  %v597 = vadd.f32 0.0, %v596
  %v598 = vpop.f32.mrb[0].mxu0
  %v599 = vpop.f32.mrb[0].mxu0
  %v600 = vadd.f32 0.0, %v599
  %v601 = vpop.f32.mrb[0].mxu0
  %602 = vmatprep.mubr.bf16.mxu0 0
  %603 = vmatmul.mubr.bf16.gmra.mrb[0].mxu0 %v255
  %v604 = vpop.f32.mrb[0].mxu0
  %v605 = vadd.f32 0.0, %v604
  %v606 = vpop.f32.mrb[0].mxu0
  %v607 = vpop.f32.mrb[0].mxu0
  %v608 = vadd.f32 0.0, %v607
  %v609 = vpop.f32.mrb[0].mxu0
  %610 = vmatprep.mubr.bf16.mxu0 0
  %611 = vmatmul.mubr.bf16.gmra.mrb[0].mxu0 %v256
  %v612 = vpop.f32.mrb[0].mxu0
  %v613 = vadd.f32 0.0, %v612
  %v614 = vpop.f32.mrb[0].mxu0
  %v615 = vpop.f32.mrb[0].mxu0
  %v616 = vadd.f32 0.0, %v615
  %v617 = vpop.f32.mrb[0].mxu0
  %618 = vmatprep.mubr.bf16.mxu0 0
  %619 = vmatmul.mubr.bf16.gmra.mrb[0].mxu0 %v257
  %v620 = vpop.f32.mrb[0].mxu0
  %v621 = vadd.f32 0.0, %v620
  %v622 = vpop.f32.mrb[0].mxu0
  %v623 = vpop.f32.mrb[0].mxu0
  %v624 = vadd.f32 0.0, %v623
  %v625 = vpop.f32.mrb[0].mxu0
  %626 = vdwg.mxu0
  %v627 = vld [vmem:[%s2] sm:$0x1]
  %v629 = vlaneseq
  %v630 = vshrl.u32 %v629, 7
  %v631 = vsub.s32 0, %v630
  %v632 = vrot.slane %v627, %v631
  %v634 = vmul.f32 %v373, %v632
  %v635 = vmul.f32 %v376, %v632
  %v636 = vmul.f32 %v381, %v632
  %v637 = vmul.f32 %v384, %v632
  %v638 = vmul.f32 %v389, %v632
  %v639 = vmul.f32 %v392, %v632
  %v640 = vmul.f32 %v397, %v632
  %v641 = vmul.f32 %v400, %v632
  %v642 = vmul.f32 %v405, %v632
  %v643 = vmul.f32 %v408, %v632
  %v644 = vmul.f32 %v413, %v632
  %v645 = vmul.f32 %v416, %v632
  %v646 = vmul.f32 %v421, %v632
  %v647 = vmul.f32 %v424, %v632
  %v648 = vmul.f32 %v429, %v632
  %v649 = vmul.f32 %v432, %v632
  %v650 = vmul.f32 %v437, %v632
  %v651 = vmul.f32 %v440, %v632
  %v652 = vmul.f32 %v445, %v632
  %v653 = vmul.f32 %v448, %v632
  %v654 = vmul.f32 %v453, %v632
  %v655 = vmul.f32 %v456, %v632
  %v656 = vmul.f32 %v461, %v632
  %v657 = vmul.f32 %v464, %v632
  %v658 = vmul.f32 %v469, %v632
  %v659 = vmul.f32 %v472, %v632
  %v660 = vmul.f32 %v477, %v632
  %v661 = vmul.f32 %v480, %v632
  %v662 = vmul.f32 %v485, %v632
  %v663 = vmul.f32 %v488, %v632
  %v664 = vmul.f32 %v493, %v632
  %v665 = vmul.f32 %v496, %v632
  %v666 = vmul.f32 %v501, %v632
  %v667 = vmul.f32 %v504, %v632
  %v668 = vmul.f32 %v509, %v632
  %v669 = vmul.f32 %v512, %v632
  %v670 = vmul.f32 %v517, %v632
  %v671 = vmul.f32 %v520, %v632
  %v672 = vmul.f32 %v525, %v632
  %v673 = vmul.f32 %v528, %v632
  %v674 = vmul.f32 %v533, %v632
  %v675 = vmul.f32 %v536, %v632
  %v676 = vmul.f32 %v541, %v632
  %v677 = vmul.f32 %v544, %v632
  %v678 = vmul.f32 %v549, %v632
  %v679 = vmul.f32 %v552, %v632
  %v680 = vmul.f32 %v557, %v632
  %v681 = vmul.f32 %v560, %v632
  %v682 = vmul.f32 %v565, %v632
  %v683 = vmul.f32 %v568, %v632
  %v684 = vmul.f32 %v573, %v632
  %v685 = vmul.f32 %v576, %v632
  %v686 = vmul.f32 %v581, %v632
  %v687 = vmul.f32 %v584, %v632
  %v688 = vmul.f32 %v589, %v632
  %v689 = vmul.f32 %v592, %v632
  %v690 = vmul.f32 %v597, %v632
  %v691 = vmul.f32 %v600, %v632
  %v692 = vmul.f32 %v605, %v632
  %v693 = vmul.f32 %v608, %v632
  %v694 = vmul.f32 %v613, %v632
  %v695 = vmul.f32 %v616, %v632
  %v696 = vmul.f32 %v621, %v632
  %v697 = vmul.f32 %v624, %v632
  %v698 = vld [vmem:[%s3] sm:$0x1]
  %v700 = vlaneseq
  %v701 = vshrl.u32 %v700, 7
  %v702 = vsub.s32 0, %v701
  %v703 = vrot.slane %v698, %v702
  %v705 = vadd.f32 %v634, %v703
  %v706 = vadd.f32 %v635, %v703
  %v707 = vadd.f32 %v636, %v703
  %v708 = vadd.f32 %v637, %v703
  %v709 = vadd.f32 %v638, %v703
  %v710 = vadd.f32 %v639, %v703
  %v711 = vadd.f32 %v640, %v703
  %v712 = vadd.f32 %v641, %v703
  %v713 = vadd.f32 %v642, %v703
  %v714 = vadd.f32 %v643, %v703
  %v715 = vadd.f32 %v644, %v703
  %v716 = vadd.f32 %v645, %v703
  %v717 = vadd.f32 %v646, %v703
  %v718 = vadd.f32 %v647, %v703
  %v719 = vadd.f32 %v648, %v703
  %v720 = vadd.f32 %v649, %v703
  %v721 = vadd.f32 %v650, %v703
  %v722 = vadd.f32 %v651, %v703
  %v723 = vadd.f32 %v652, %v703
  %v724 = vadd.f32 %v653, %v703
  %v725 = vadd.f32 %v654, %v703
  %v726 = vadd.f32 %v655, %v703
  %v727 = vadd.f32 %v656, %v703
  %v728 = vadd.f32 %v657, %v703
  %v729 = vadd.f32 %v658, %v703
  %v730 = vadd.f32 %v659, %v703
  %v731 = vadd.f32 %v660, %v703
  %v732 = vadd.f32 %v661, %v703
  %v733 = vadd.f32 %v662, %v703
  %v734 = vadd.f32 %v663, %v703
  %v735 = vadd.f32 %v664, %v703
  %v736 = vadd.f32 %v665, %v703
  %v737 = vadd.f32 %v666, %v703
  %v738 = vadd.f32 %v667, %v703
  %v739 = vadd.f32 %v668, %v703
  %v740 = vadd.f32 %v669, %v703
  %v741 = vadd.f32 %v670, %v703
  %v742 = vadd.f32 %v671, %v703
  %v743 = vadd.f32 %v672, %v703
  %v744 = vadd.f32 %v673, %v703
  %v745 = vadd.f32 %v674, %v703
  %v746 = vadd.f32 %v675, %v703
  %v747 = vadd.f32 %v676, %v703
  %v748 = vadd.f32 %v677, %v703
  %v749 = vadd.f32 %v678, %v703
  %v750 = vadd.f32 %v679, %v703
  %v751 = vadd.f32 %v680, %v703
  %v752 = vadd.f32 %v681, %v703
  %v753 = vadd.f32 %v682, %v703
  %v754 = vadd.f32 %v683, %v703
  %v755 = vadd.f32 %v684, %v703
  %v756 = vadd.f32 %v685, %v703
  %v757 = vadd.f32 %v686, %v703
  %v758 = vadd.f32 %v687, %v703
  %v759 = vadd.f32 %v688, %v703
  %v760 = vadd.f32 %v689, %v703
  %v761 = vadd.f32 %v690, %v703
  %v762 = vadd.f32 %v691, %v703
  %v763 = vadd.f32 %v692, %v703
  %v764 = vadd.f32 %v693, %v703
  %v765 = vadd.f32 %v694, %v703
  %v766 = vadd.f32 %v695, %v703
  %v767 = vadd.f32 %v696, %v703
  %v768 = vadd.f32 %v697, %v703
  %v769 = vmul.f32 %v705, 0.5
  %v770 = vmul.f32 %v706, 0.5
  %v771 = vmul.f32 %v707, 0.5
  %v772 = vmul.f32 %v708, 0.5
  %v773 = vmul.f32 %v709, 0.5
  %v774 = vmul.f32 %v710, 0.5
  %v775 = vmul.f32 %v711, 0.5
  %v776 = vmul.f32 %v712, 0.5
  %v777 = vmul.f32 %v713, 0.5
  %v778 = vmul.f32 %v714, 0.5
  %v779 = vmul.f32 %v715, 0.5
  %v780 = vmul.f32 %v716, 0.5
  %v781 = vmul.f32 %v717, 0.5
  %v782 = vmul.f32 %v718, 0.5
  %v783 = vmul.f32 %v719, 0.5
  %v784 = vmul.f32 %v720, 0.5
  %v785 = vmul.f32 %v721, 0.5
  %v786 = vmul.f32 %v722, 0.5
  %v787 = vmul.f32 %v723, 0.5
  %v788 = vmul.f32 %v724, 0.5
  %v789 = vmul.f32 %v725, 0.5
  %v790 = vmul.f32 %v726, 0.5
  %v791 = vmul.f32 %v727, 0.5
  %v792 = vmul.f32 %v728, 0.5
  %v793 = vmul.f32 %v729, 0.5
  %v794 = vmul.f32 %v730, 0.5
  %v795 = vmul.f32 %v731, 0.5
  %v796 = vmul.f32 %v732, 0.5
  %v797 = vmul.f32 %v733, 0.5
  %v798 = vmul.f32 %v734, 0.5
  %v799 = vmul.f32 %v735, 0.5
  %v800 = vmul.f32 %v736, 0.5
  %v801 = vmul.f32 %v737, 0.5
  %v802 = vmul.f32 %v738, 0.5
  %v803 = vmul.f32 %v739, 0.5
  %v804 = vmul.f32 %v740, 0.5
  %v805 = vmul.f32 %v741, 0.5
  %v806 = vmul.f32 %v742, 0.5
  %v807 = vmul.f32 %v743, 0.5
  %v808 = vmul.f32 %v744, 0.5
  %v809 = vmul.f32 %v745, 0.5
  %v810 = vmul.f32 %v746, 0.5
  %v811 = vmul.f32 %v747, 0.5
  %v812 = vmul.f32 %v748, 0.5
  %v813 = vmul.f32 %v749, 0.5
  %v814 = vmul.f32 %v750, 0.5
  %v815 = vmul.f32 %v751, 0.5
  %v816 = vmul.f32 %v752, 0.5
  %v817 = vmul.f32 %v753, 0.5
  %v818 = vmul.f32 %v754, 0.5
  %v819 = vmul.f32 %v755, 0.5
  %v820 = vmul.f32 %v756, 0.5
  %v821 = vmul.f32 %v757, 0.5
  %v822 = vmul.f32 %v758, 0.5
  %v823 = vmul.f32 %v759, 0.5
  %v824 = vmul.f32 %v760, 0.5
  %v825 = vmul.f32 %v761, 0.5
  %v826 = vmul.f32 %v762, 0.5
  %v827 = vmul.f32 %v763, 0.5
  %v828 = vmul.f32 %v764, 0.5
  %v829 = vmul.f32 %v765, 0.5
  %v830 = vmul.f32 %v766, 0.5
  %v831 = vmul.f32 %v767, 0.5
  %v832 = vmul.f32 %v768, 0.5
  %v833 = vmul.f32 %v705, 0.70710677
  %v834 = vmul.f32 %v706, 0.70710677
  %v835 = vmul.f32 %v707, 0.70710677
  %v836 = vmul.f32 %v708, 0.70710677
  %v837 = vmul.f32 %v709, 0.70710677
  %v838 = vmul.f32 %v710, 0.70710677
  %v839 = vmul.f32 %v711, 0.70710677
  %v840 = vmul.f32 %v712, 0.70710677
  %v841 = vmul.f32 %v713, 0.70710677
  %v842 = vmul.f32 %v714, 0.70710677
  %v843 = vmul.f32 %v715, 0.70710677
  %v844 = vmul.f32 %v716, 0.70710677
  %v845 = vmul.f32 %v717, 0.70710677
  %v846 = vmul.f32 %v718, 0.70710677
  %v847 = vmul.f32 %v719, 0.70710677
  %v848 = vmul.f32 %v720, 0.70710677
  %v849 = vmul.f32 %v721, 0.70710677
  %v850 = vmul.f32 %v722, 0.70710677
  %v851 = vmul.f32 %v723, 0.70710677
  %v852 = vmul.f32 %v724, 0.70710677
  %v853 = vmul.f32 %v725, 0.70710677
  %v854 = vmul.f32 %v726, 0.70710677
  %v855 = vmul.f32 %v727, 0.70710677
  %v856 = vmul.f32 %v728, 0.70710677
  %v857 = vmul.f32 %v729, 0.70710677
  %v858 = vmul.f32 %v730, 0.70710677
  %v859 = vmul.f32 %v731, 0.70710677
  %v860 = vmul.f32 %v732, 0.70710677
  %v861 = vmul.f32 %v733, 0.70710677
  %v862 = vmul.f32 %v734, 0.70710677
  %v863 = vmul.f32 %v735, 0.70710677
  %v864 = vmul.f32 %v736, 0.70710677
  %v865 = vmul.f32 %v737, 0.70710677
  %v866 = vmul.f32 %v738, 0.70710677
  %v867 = vmul.f32 %v739, 0.70710677
  %v868 = vmul.f32 %v740, 0.70710677
  %v869 = vmul.f32 %v741, 0.70710677
  %v870 = vmul.f32 %v742, 0.70710677
  %v871 = vmul.f32 %v743, 0.70710677
  %v872 = vmul.f32 %v744, 0.70710677
  %v873 = vmul.f32 %v745, 0.70710677
  %v874 = vmul.f32 %v746, 0.70710677
  %v875 = vmul.f32 %v747, 0.70710677
  %v876 = vmul.f32 %v748, 0.70710677
  %v877 = vmul.f32 %v749, 0.70710677
  %v878 = vmul.f32 %v750, 0.70710677
  %v879 = vmul.f32 %v751, 0.70710677
  %v880 = vmul.f32 %v752, 0.70710677
  %v881 = vmul.f32 %v753, 0.70710677
  %v882 = vmul.f32 %v754, 0.70710677
  %v883 = vmul.f32 %v755, 0.70710677
  %v884 = vmul.f32 %v756, 0.70710677
  %v885 = vmul.f32 %v757, 0.70710677
  %v886 = vmul.f32 %v758, 0.70710677
  %v887 = vmul.f32 %v759, 0.70710677
  %v888 = vmul.f32 %v760, 0.70710677
  %v889 = vmul.f32 %v761, 0.70710677
  %v890 = vmul.f32 %v762, 0.70710677
  %v891 = vmul.f32 %v763, 0.70710677
  %v892 = vmul.f32 %v764, 0.70710677
  %v893 = vmul.f32 %v765, 0.70710677
  %v894 = vmul.f32 %v766, 0.70710677
  %v895 = vmul.f32 %v767, 0.70710677
  %v896 = vmul.f32 %v768, 0.70710677
  %v897 = verf.f32.pop %v833
  %v898 = verf.f32.pop %v834
  %v899 = verf.f32.pop %v835
  %v900 = verf.f32.pop %v836
  %v901 = verf.f32.pop %v837
  %v902 = verf.f32.pop %v838
  %v903 = verf.f32.pop %v839
  %v904 = verf.f32.pop %v840
  %v905 = verf.f32.pop %v841
  %v906 = verf.f32.pop %v842
  %v907 = verf.f32.pop %v843
  %v908 = verf.f32.pop %v844
  %v909 = verf.f32.pop %v845
  %v910 = verf.f32.pop %v846
  %v911 = verf.f32.pop %v847
  %v912 = verf.f32.pop %v848
  %v913 = verf.f32.pop %v849
  %v914 = verf.f32.pop %v850
  %v915 = verf.f32.pop %v851
  %v916 = verf.f32.pop %v852
  %v917 = verf.f32.pop %v853
  %v918 = verf.f32.pop %v854
  %v919 = verf.f32.pop %v855
  %v920 = verf.f32.pop %v856
  %v921 = verf.f32.pop %v857
  %v922 = verf.f32.pop %v858
  %v923 = verf.f32.pop %v859
  %v924 = verf.f32.pop %v860
  %v925 = verf.f32.pop %v861
  %v926 = verf.f32.pop %v862
  %v927 = verf.f32.pop %v863
  %v928 = verf.f32.pop %v864
  %v929 = verf.f32.pop %v865
  %v930 = verf.f32.pop %v866
  %v931 = verf.f32.pop %v867
  %v932 = verf.f32.pop %v868
  %v933 = verf.f32.pop %v869
  %v934 = verf.f32.pop %v870
  %v935 = verf.f32.pop %v871
  %v936 = verf.f32.pop %v872
  %v937 = verf.f32.pop %v873
  %v938 = verf.f32.pop %v874
  %v939 = verf.f32.pop %v875
  %v940 = verf.f32.pop %v876
  %v941 = verf.f32.pop %v877
  %v942 = verf.f32.pop %v878
  %v943 = verf.f32.pop %v879
  %v944 = verf.f32.pop %v880
  %v945 = verf.f32.pop %v881
  %v946 = verf.f32.pop %v882
  %v947 = verf.f32.pop %v883
  %v948 = verf.f32.pop %v884
  %v949 = verf.f32.pop %v885
  %v950 = verf.f32.pop %v886
  %v951 = verf.f32.pop %v887
  %v952 = verf.f32.pop %v888
  %v953 = verf.f32.pop %v889
  %v954 = verf.f32.pop %v890
  %v955 = verf.f32.pop %v891
  %v956 = verf.f32.pop %v892
  %v957 = verf.f32.pop %v893
  %v958 = verf.f32.pop %v894
  %v959 = verf.f32.pop %v895
  %v960 = verf.f32.pop %v896
  %v961 = vadd.f32 %v897, 1.0
  %v962 = vadd.f32 %v898, 1.0
  %v963 = vadd.f32 %v899, 1.0
  %v964 = vadd.f32 %v900, 1.0
  %v965 = vadd.f32 %v901, 1.0
  %v966 = vadd.f32 %v902, 1.0
  %v967 = vadd.f32 %v903, 1.0
  %v968 = vadd.f32 %v904, 1.0
  %v969 = vadd.f32 %v905, 1.0
  %v970 = vadd.f32 %v906, 1.0
  %v971 = vadd.f32 %v907, 1.0
  %v972 = vadd.f32 %v908, 1.0
  %v973 = vadd.f32 %v909, 1.0
  %v974 = vadd.f32 %v910, 1.0
  %v975 = vadd.f32 %v911, 1.0
  %v976 = vadd.f32 %v912, 1.0
  %v977 = vadd.f32 %v913, 1.0
  %v978 = vadd.f32 %v914, 1.0
  %v979 = vadd.f32 %v915, 1.0
  %v980 = vadd.f32 %v916, 1.0
  %v981 = vadd.f32 %v917, 1.0
  %v982 = vadd.f32 %v918, 1.0
  %v983 = vadd.f32 %v919, 1.0
  %v984 = vadd.f32 %v920, 1.0
  %v985 = vadd.f32 %v921, 1.0
  %v986 = vadd.f32 %v922, 1.0
  %v987 = vadd.f32 %v923, 1.0
  %v988 = vadd.f32 %v924, 1.0
  %v989 = vadd.f32 %v925, 1.0
  %v990 = vadd.f32 %v926, 1.0
  %v991 = vadd.f32 %v927, 1.0
  %v992 = vadd.f32 %v928, 1.0
  %v993 = vadd.f32 %v929, 1.0
  %v994 = vadd.f32 %v930, 1.0
  %v995 = vadd.f32 %v931, 1.0
  %v996 = vadd.f32 %v932, 1.0
  %v997 = vadd.f32 %v933, 1.0
  %v998 = vadd.f32 %v934, 1.0
  %v999 = vadd.f32 %v935, 1.0
  %v1000 = vadd.f32 %v936, 1.0
  %v1001 = vadd.f32 %v937, 1.0
  %v1002 = vadd.f32 %v938, 1.0
  %v1003 = vadd.f32 %v939, 1.0
  %v1004 = vadd.f32 %v940, 1.0
  %v1005 = vadd.f32 %v941, 1.0
  %v1006 = vadd.f32 %v942, 1.0
  %v1007 = vadd.f32 %v943, 1.0
  %v1008 = vadd.f32 %v944, 1.0
  %v1009 = vadd.f32 %v945, 1.0
  %v1010 = vadd.f32 %v946, 1.0
  %v1011 = vadd.f32 %v947, 1.0
  %v1012 = vadd.f32 %v948, 1.0
  %v1013 = vadd.f32 %v949, 1.0
  %v1014 = vadd.f32 %v950, 1.0
  %v1015 = vadd.f32 %v951, 1.0
  %v1016 = vadd.f32 %v952, 1.0
  %v1017 = vadd.f32 %v953, 1.0
  %v1018 = vadd.f32 %v954, 1.0
  %v1019 = vadd.f32 %v955, 1.0
  %v1020 = vadd.f32 %v956, 1.0
  %v1021 = vadd.f32 %v957, 1.0
  %v1022 = vadd.f32 %v958, 1.0
  %v1023 = vadd.f32 %v959, 1.0
  %v1024 = vadd.f32 %v960, 1.0
  %v1025 = vmul.f32 %v769, %v961
  %v1026 = vmul.f32 %v770, %v962
  %v1027 = vmul.f32 %v771, %v963
  %v1028 = vmul.f32 %v772, %v964
  %v1029 = vmul.f32 %v773, %v965
  %v1030 = vmul.f32 %v774, %v966
  %v1031 = vmul.f32 %v775, %v967
  %v1032 = vmul.f32 %v776, %v968
  %v1033 = vmul.f32 %v777, %v969
  %v1034 = vmul.f32 %v778, %v970
  %v1035 = vmul.f32 %v779, %v971
  %v1036 = vmul.f32 %v780, %v972
  %v1037 = vmul.f32 %v781, %v973
  %v1038 = vmul.f32 %v782, %v974
  %v1039 = vmul.f32 %v783, %v975
  %v1040 = vmul.f32 %v784, %v976
  %v1041 = vmul.f32 %v785, %v977
  %v1042 = vmul.f32 %v786, %v978
  %v1043 = vmul.f32 %v787, %v979
  %v1044 = vmul.f32 %v788, %v980
  %v1045 = vmul.f32 %v789, %v981
  %v1046 = vmul.f32 %v790, %v982
  %v1047 = vmul.f32 %v791, %v983
  %v1048 = vmul.f32 %v792, %v984
  %v1049 = vmul.f32 %v793, %v985
  %v1050 = vmul.f32 %v794, %v986
  %v1051 = vmul.f32 %v795, %v987
  %v1052 = vmul.f32 %v796, %v988
  %v1053 = vmul.f32 %v797, %v989
  %v1054 = vmul.f32 %v798, %v990
  %v1055 = vmul.f32 %v799, %v991
  %v1056 = vmul.f32 %v800, %v992
  %v1057 = vmul.f32 %v801, %v993
  %v1058 = vmul.f32 %v802, %v994
  %v1059 = vmul.f32 %v803, %v995
  %v1060 = vmul.f32 %v804, %v996
  %v1061 = vmul.f32 %v805, %v997
  %v1062 = vmul.f32 %v806, %v998
  %v1063 = vmul.f32 %v807, %v999
  %v1064 = vmul.f32 %v808, %v1000
  %v1065 = vmul.f32 %v809, %v1001
  %v1066 = vmul.f32 %v810, %v1002
  %v1067 = vmul.f32 %v811, %v1003
  %v1068 = vmul.f32 %v812, %v1004
  %v1069 = vmul.f32 %v813, %v1005
  %v1070 = vmul.f32 %v814, %v1006
  %v1071 = vmul.f32 %v815, %v1007
  %v1072 = vmul.f32 %v816, %v1008
  %v1073 = vmul.f32 %v817, %v1009
  %v1074 = vmul.f32 %v818, %v1010
  %v1075 = vmul.f32 %v819, %v1011
  %v1076 = vmul.f32 %v820, %v1012
  %v1077 = vmul.f32 %v821, %v1013
  %v1078 = vmul.f32 %v822, %v1014
  %v1079 = vmul.f32 %v823, %v1015
  %v1080 = vmul.f32 %v824, %v1016
  %v1081 = vmul.f32 %v825, %v1017
  %v1082 = vmul.f32 %v826, %v1018
  %v1083 = vmul.f32 %v827, %v1019
  %v1084 = vmul.f32 %v828, %v1020
  %v1085 = vmul.f32 %v829, %v1021
  %v1086 = vmul.f32 %v830, %v1022
  %v1087 = vmul.f32 %v831, %v1023
  %v1088 = vmul.f32 %v832, %v1024
  %1089 = vst [vmem:[%s4] sm:$0xff] %v1025
  %1090 = vst [vmem:[%s4 + $0x8] sm:$0xff] %v1026
  %1091 = vst [vmem:[%s4 + $0x10] sm:$0xff] %v1027
  %1092 = vst [vmem:[%s4 + $0x18] sm:$0xff] %v1028
  %1093 = vst [vmem:[%s4 + $0x20] sm:$0xff] %v1029
  %1094 = vst [vmem:[%s4 + $0x28] sm:$0xff] %v1030
  %1095 = vst [vmem:[%s4 + $0x30] sm:$0xff] %v1031
  %1096 = vst [vmem:[%s4 + $0x38] sm:$0xff] %v1032
  %1097 = vst [vmem:[%s4 + $0x40] sm:$0xff] %v1033
  %1098 = vst [vmem:[%s4 + $0x48] sm:$0xff] %v1034
  %1099 = vst [vmem:[%s4 + $0x50] sm:$0xff] %v1035
  %1100 = vst [vmem:[%s4 + $0x58] sm:$0xff] %v1036
  %1101 = vst [vmem:[%s4 + $0x60] sm:$0xff] %v1037
  %1102 = vst [vmem:[%s4 + $0x68] sm:$0xff] %v1038
  %1103 = vst [vmem:[%s4 + $0x70] sm:$0xff] %v1039
  %1104 = vst [vmem:[%s4 + $0x78] sm:$0xff] %v1040
  %1105 = vst [vmem:[%s4 + $0x80] sm:$0xff] %v1041
  %1106 = vst [vmem:[%s4 + $0x88] sm:$0xff] %v1042
  %1107 = vst [vmem:[%s4 + $0x90] sm:$0xff] %v1043
  %1108 = vst [vmem:[%s4 + $0x98] sm:$0xff] %v1044
  %1109 = vst [vmem:[%s4 + $0xa0] sm:$0xff] %v1045
  %1110 = vst [vmem:[%s4 + $0xa8] sm:$0xff] %v1046
  %1111 = vst [vmem:[%s4 + $0xb0] sm:$0xff] %v1047
  %1112 = vst [vmem:[%s4 + $0xb8] sm:$0xff] %v1048
  %1113 = vst [vmem:[%s4 + $0xc0] sm:$0xff] %v1049
  %1114 = vst [vmem:[%s4 + $0xc8] sm:$0xff] %v1050
  %1115 = vst [vmem:[%s4 + $0xd0] sm:$0xff] %v1051
  %1116 = vst [vmem:[%s4 + $0xd8] sm:$0xff] %v1052
  %1117 = vst [vmem:[%s4 + $0xe0] sm:$0xff] %v1053
  %1118 = vst [vmem:[%s4 + $0xe8] sm:$0xff] %v1054
  %1119 = vst [vmem:[%s4 + $0xf0] sm:$0xff] %v1055
  %1120 = vst [vmem:[%s4 + $0xf8] sm:$0xff] %v1056
  %1121 = vst [vmem:[%s4 + $0x100] sm:$0xff] %v1057
  %1122 = vst [vmem:[%s4 + $0x108] sm:$0xff] %v1058
  %1123 = vst [vmem:[%s4 + $0x110] sm:$0xff] %v1059
  %1124 = vst [vmem:[%s4 + $0x118] sm:$0xff] %v1060
  %1125 = vst [vmem:[%s4 + $0x120] sm:$0xff] %v1061
  %1126 = vst [vmem:[%s4 + $0x128] sm:$0xff] %v1062
  %1127 = vst [vmem:[%s4 + $0x130] sm:$0xff] %v1063
  %1128 = vst [vmem:[%s4 + $0x138] sm:$0xff] %v1064
  %1129 = vst [vmem:[%s4 + $0x140] sm:$0xff] %v1065
  %1130 = vst [vmem:[%s4 + $0x148] sm:$0xff] %v1066
  %1131 = vst [vmem:[%s4 + $0x150] sm:$0xff] %v1067
  %1132 = vst [vmem:[%s4 + $0x158] sm:$0xff] %v1068
  %1133 = vst [vmem:[%s4 + $0x160] sm:$0xff] %v1069
  %1134 = vst [vmem:[%s4 + $0x168] sm:$0xff] %v1070
  %1135 = vst [vmem:[%s4 + $0x170] sm:$0xff] %v1071
  %1136 = vst [vmem:[%s4 + $0x178] sm:$0xff] %v1072
  %1137 = vst [vmem:[%s4 + $0x180] sm:$0xff] %v1073
  %1138 = vst [vmem:[%s4 + $0x188] sm:$0xff] %v1074
  %1139 = vst [vmem:[%s4 + $0x190] sm:$0xff] %v1075
  %1140 = vst [vmem:[%s4 + $0x198] sm:$0xff] %v1076
  %1141 = vst [vmem:[%s4 + $0x1a0] sm:$0xff] %v1077
  %1142 = vst [vmem:[%s4 + $0x1a8] sm:$0xff] %v1078
  %1143 = vst [vmem:[%s4 + $0x1b0] sm:$0xff] %v1079
  %1144 = vst [vmem:[%s4 + $0x1b8] sm:$0xff] %v1080
  %1145 = vst [vmem:[%s4 + $0x1c0] sm:$0xff] %v1081
  %1146 = vst [vmem:[%s4 + $0x1c8] sm:$0xff] %v1082
  %1147 = vst [vmem:[%s4 + $0x1d0] sm:$0xff] %v1083
  %1148 = vst [vmem:[%s4 + $0x1d8] sm:$0xff] %v1084
  %1149 = vst [vmem:[%s4 + $0x1e0] sm:$0xff] %v1085
  %1150 = vst [vmem:[%s4 + $0x1e8] sm:$0xff] %v1086
  %1151 = vst [vmem:[%s4 + $0x1f0] sm:$0xff] %v1087
  %1152 = vst [vmem:[%s4 + $0x1f8] sm:$0xff] %v1088
  // Predicated region
  $region18: #{convblock_forward.7} parent=0 // pred_check
    _
  $region19: #{convblock_forward.7} parent=0 // pred_check_branch
    %1154 = sbr.rel (0) target = $region21
  $region20: #{convblock_forward.7} parent=0 // pred_region
    _
  $region21: #{convblock_forward.7} parent=0 // pred_fallthru
    _
  // Predicated region
  $region22: #{convblock_forward.7} parent=0 // pred_check
    _
  $region23: #{convblock_forward.7} parent=0 // pred_check_branch
    %1156 = sbr.rel (0) target = $region25
  $region24: #{convblock_forward.7} parent=0 // pred_region
    _
  $region25: #{convblock_forward.7} parent=0 // pred_fallthru
    _

</llo_original>
